<compile_context>
chip_gen: v7x
topology: tpu7x:2x2x1
jax: 0.10.0
libtpu: 0.0.40
codegen_flags: <defaults>
</compile_context>

<pallas_src>
import jax
import jax.numpy as jnp
from jax.experimental import pallas as pl
from jax.experimental.pallas import tpu as pltpu

HIDDEN = 512
N_NETS = 4
NETS_PER_STEP = 2       # 2 nets per grid step
LN_EPS = 1e-6
LEAKY_SLOPE = 0.01      # torch F.leaky_relu default

# Packed small-param row layout (per net), padded to 16 sublanes:
#   rows 0..2 : b0, gamma0, beta0
#   rows 3..5 : b1, gamma1, beta1
#   rows 6..8 : b2, gamma2, beta2
#   row  9    : last_fc weight (512,)
#   row 10    : last_fc bias broadcast across the row (only col 0 is read —
#               layout footgun: never read the full row as a vector)
#   row 11    : per-output-channel dequant scale for w1 (int8 -> bf16)
#   row 12    : per-output-channel dequant scale for w2
#   rows 13..15: zero padding
SP_ROWS = 16


def _dequant_bf16(w_i8, scale_row_f32):
    """int8 weights * per-output-channel scale -> bf16 (cheap VPU work)."""
    return w_i8.astype(jnp.bfloat16) * scale_row_f32.astype(jnp.bfloat16)


def _ln_lrelu(z, g, be):
    """Torch-style LayerNorm (unbiased std, eps added to std) -> leaky_relu."""
    n = z.shape[-1]
    mean = jnp.mean(z, axis=-1, keepdims=True)
    d = z - mean
    var = jnp.sum(d * d, axis=-1, keepdims=True) / (n - 1)
    inv = pl.reciprocal(jnp.sqrt(var) + LN_EPS, approx=True)   # EUP slot
    y = g * (d * inv) + be
    return jnp.maximum(y, LEAKY_SLOPE * y)   # == leaky_relu for 0 < slope < 1


def critic_kernel(s_ref, a_ref, w0s_ref, w0a_ref, w1_ref, w2_ref, sp_ref,
                  out_ref):
    s16 = s_ref[...].astype(jnp.bfloat16)             # (B, Ds)
    a16 = a_ref[...].astype(jnp.bfloat16)             # (B, Da)
    for j in range(NETS_PER_STEP):                    # static, unrolled
        sp = sp_ref[j]                                # (SP_ROWS, H) f32
        # ---- layer 0: split matmul (no wrapper concat HLO), bf16 weights
        z = (jnp.dot(s16, w0s_ref[j], preferred_element_type=jnp.float32)
             + jnp.dot(a16, w0a_ref[j], preferred_element_type=jnp.float32)
             + sp[0:1])
        h = _ln_lrelu(z, sp[1:2], sp[2:3])
        # ---- layer 1: int8 weights, VPU dequant -> bf16 -> MXU (f32 accum)
        w1 = _dequant_bf16(w1_ref[j], sp[11:12])
        z = jnp.dot(h.astype(jnp.bfloat16), w1,
                    preferred_element_type=jnp.float32) + sp[3:4]
        h = _ln_lrelu(z, sp[4:5], sp[5:6])
        # ---- layer 2
        w2 = _dequant_bf16(w2_ref[j], sp[12:13])
        z = jnp.dot(h.astype(jnp.bfloat16), w2,
                    preferred_element_type=jnp.float32) + sp[6:7]
        h = _ln_lrelu(z, sp[7:8], sp[8:9])
        # ---- last_fc as a VPU reduction (avoids a lane-1 MXU pass)
        wl = sp[9:10]                                 # (1, H)
        bl = sp[10:11, 0:1]                           # (1, 1)
        out_ref[j] = jnp.sum(h * wl, axis=-1, keepdims=True) + bl   # (B, 1)


def init_critic_params(key, state_dim, action_dim, n_nets=N_NETS, hidden=HIDDEN):
    """Deterministic synthetic params.

    Layer-0 weight is bf16 and pre-split into (state, action) halves with
    layout (net, in, out). Layers 1/2 are int8 with per-output-channel scales.
    All 1-D params + scales are packed per-net into one f32
    (n_nets, SP_ROWS, hidden) array (row layout above).
    """
    d_in = state_dim + action_dim
    keys = jax.random.split(key, 8)
    ki = 0
    sp = jnp.zeros((n_nets, SP_ROWS, hidden), jnp.float32)
    params = {}

    # layer 0: bf16, split into state / action input halves
    bound = 1.0 / (d_in ** 0.5)
    w0 = jax.random.uniform(keys[ki], (n_nets, d_in, hidden), jnp.float32,
                            -bound, bound); ki += 1
    b0 = jax.random.uniform(keys[ki], (n_nets, hidden), jnp.float32,
                            -bound, bound); ki += 1
    params["w0s"] = w0[:, :state_dim, :].astype(jnp.bfloat16)
    params["w0a"] = w0[:, state_dim:, :].astype(jnp.bfloat16)
    sp = sp.at[:, 0].set(b0)
    sp = sp.at[:, 1].set(1.0)          # gamma0; beta0 (row 2) stays 0

    # layers 1, 2: int8 + per-output-channel scale (sp rows 11, 12)
    for li in (1, 2):
        bound = 1.0 / (hidden ** 0.5)
        w = jax.random.uniform(keys[ki], (n_nets, hidden, hidden), jnp.float32,
                               -bound, bound); ki += 1
        b = jax.random.uniform(keys[ki], (n_nets, hidden), jnp.float32,
                               -bound, bound); ki += 1
        scale = jnp.max(jnp.abs(w), axis=1) / 127.0        # (n_nets, hidden)
        params[f"w{li}"] = jnp.round(w / scale[:, None, :]).astype(jnp.int8)
        sp = sp.at[:, 3 * li].set(b)
        sp = sp.at[:, 3 * li + 1].set(1.0)
        sp = sp.at[:, 10 + li].set(scale)

    # last_fc, with torch-style .mul_(0.1); tiny -> kept f32 inside the pack.
    bound = 1.0 / (hidden ** 0.5)
    wl = 0.1 * jax.random.uniform(keys[ki], (n_nets, hidden), jnp.float32,
                                  -bound, bound); ki += 1
    bl = 0.1 * jax.random.uniform(keys[ki], (n_nets,), jnp.float32,
                                  -bound, bound); ki += 1
    sp = sp.at[:, 9].set(wl)
    sp = sp.at[:, 10].set(bl[:, None])
    params["sp"] = sp
    return params


@jax.jit
def critic_forward(state, action, params):
    state = state.astype(jnp.float32)
    action = action.astype(jnp.float32)
    B, ds = state.shape
    _, da = action.shape
    n_nets = params["w1"].shape[0]
    assert n_nets % NETS_PER_STEP == 0
    n_steps = n_nets // NETS_PER_STEP

    def per_pair(shape):
        # (NETS_PER_STEP, full, full): last two dims equal the full array dims.
        return pl.BlockSpec((NETS_PER_STEP,) + shape[1:], lambda n: (n, 0, 0))

    out = pl.pallas_call(
        critic_kernel,
        out_shape=jax.ShapeDtypeStruct((n_nets, B, 1), jnp.float32),
        grid_spec=pltpu.PrefetchScalarGridSpec(
            num_scalar_prefetch=0,
            grid=(n_steps,),
            in_specs=[
                pl.BlockSpec((B, ds), lambda n: (0, 0)),   # state (shared)
                pl.BlockSpec((B, da), lambda n: (0, 0)),   # action (shared)
                per_pair(params["w0s"].shape),             # bf16
                per_pair(params["w0a"].shape),             # bf16
                per_pair(params["w1"].shape),              # int8
                per_pair(params["w2"].shape),              # int8
                per_pair(params["sp"].shape),              # packed small params
            ],
            out_specs=pl.BlockSpec((NETS_PER_STEP, B, 1), lambda n: (n, 0, 0)),
        ),
        compiler_params=pltpu.CompilerParams(
            # Disjoint output blocks per net pair -> safe to parallelize; on
            # v7x the two steps shard across its 2 TensorCores (no-op on
            # v5e/v6e, where the collapsed 2-step grid minimizes overhead).
            dimension_semantics=("parallel",)),
    )(state, action, params["w0s"], params["w0a"], params["w1"],
      params["w2"], params["sp"])

    # (n_nets, B, 1) -> (B, n_nets, 1), matching torch.stack(..., dim=1).
    # Tiny, foldable transpose; direct (B, n_nets, 1) blocks are not
    # expressible while keeping the parallel net-pair grid axis.
    return jnp.transpose(out, (1, 0, 2))


def critic_forward_ref(state, action, params):
    """Pure-JAX reference mirroring the module on the same quantized weights."""
    sa = jnp.concatenate([state, action], axis=-1).astype(jnp.float32)
    n_nets = params["w1"].shape[0]
    outs = []
    for n in range(n_nets):
        sp = params["sp"][n]
        w0 = jnp.concatenate([params["w0s"][n], params["w0a"][n]], axis=0)
        w1 = params["w1"][n].astype(jnp.bfloat16) * sp[11].astype(jnp.bfloat16)
        w2 = params["w2"][n].astype(jnp.bfloat16) * sp[12].astype(jnp.bfloat16)
        h = sa
        for li, w in enumerate((w0, w1, w2)):
            b, g, be = sp[3 * li], sp[3 * li + 1], sp[3 * li + 2]
            z = jnp.dot(h.astype(jnp.bfloat16), w,
                        preferred_element_type=jnp.float32) + b
            mean = jnp.mean(z, axis=-1, keepdims=True)
            d = z - mean
            std = jnp.sqrt(jnp.sum(d * d, axis=-1, keepdims=True)
                           / (z.shape[-1] - 1))
            y = g * d / (std + LN_EPS) + be
            h = jnp.where(y > 0, y, LEAKY_SLOPE * y)
        outs.append(jnp.sum(h * sp[9], axis=-1, keepdims=True) + sp[10, :1])
    return jnp.stack(outs, axis=1)   # (B, n_nets, 1)


if __name__ == "__main__":
    key = jax.random.PRNGKey(0)
    k_p, k_s, k_a = jax.random.split(key, 3)

    batch = 2
    state_dim = 12
    action_dim = 4

    params = init_critic_params(k_p, state_dim, action_dim)
    state = jax.random.normal(k_s, (batch, state_dim), jnp.float32)
    action = jax.random.normal(k_a, (batch, action_dim), jnp.float32)

    q = critic_forward(state, action, params)
    q = jax.block_until_ready(q)

    q_ref = critic_forward_ref(state, action, params)
    assert q.shape == (batch, N_NETS, 1), q.shape
    # int8-dequant weights (shared with the ref), bf16 matmul inputs and the
    # approx EUP reciprocal -> modest tolerance.
    assert jnp.allclose(q, q_ref, atol=2e-3, rtol=2e-3), (q, q_ref)

    print("KERNEL_OK")
</pallas_src>

<mosaic_0001>
module attributes {stable_mosaic.version = 11 : i64} {
  func.func @critic_kernel(%arg0: i32, %arg1: memref<2x12xf32, #tpu.memory_space<vmem>>, %arg2: memref<2x4xf32, #tpu.memory_space<vmem>>, %arg3: memref<2x12x512xbf16, #tpu.memory_space<vmem>>, %arg4: memref<2x4x512xbf16, #tpu.memory_space<vmem>>, %arg5: memref<2x512x512xi8, #tpu.memory_space<vmem>>, %arg6: memref<2x512x512xi8, #tpu.memory_space<vmem>>, %arg7: memref<2x16x512xf32, #tpu.memory_space<vmem>>, %arg8: memref<2x2x1xf32, #tpu.memory_space<vmem>>) attributes {dimension_semantics = [#tpu.dimension_semantics<parallel>], iteration_bounds = array<i64: 2>, scalar_prefetch = 0 : i64, scratch_operands = 0 : i64, tpu.core_type = #tpu.core_type<tc>, window_params = [{pipeline_mode = #tpu.pipeline_mode<synchronous>, transform_indices = @transform_0, window_bounds = array<i64: 2, 12>}, {pipeline_mode = #tpu.pipeline_mode<synchronous>, transform_indices = @transform_1, window_bounds = array<i64: 2, 4>}, {transform_indices = @transform_2, window_bounds = array<i64: 2, 12, 512>}, {transform_indices = @transform_3, window_bounds = array<i64: 2, 4, 512>}, {transform_indices = @transform_4, window_bounds = array<i64: 2, 512, 512>}, {transform_indices = @transform_5, window_bounds = array<i64: 2, 512, 512>}, {transform_indices = @transform_6, window_bounds = array<i64: 2, 16, 512>}, {transform_indices = @transform_7, window_bounds = array<i64: 2, 2, 1>}]} {
    %c0 = arith.constant 0 : index
    %c0_0 = arith.constant 0 : index
    %0 = vector.load %arg1[%c0, %c0_0] : memref<2x12xf32, #tpu.memory_space<vmem>>, vector<2x12xf32>
    %1 = arith.truncf %0 : vector<2x12xf32> to vector<2x12xbf16>
    %c0_1 = arith.constant 0 : index
    %c0_2 = arith.constant 0 : index
    %2 = vector.load %arg2[%c0_1, %c0_2] : memref<2x4xf32, #tpu.memory_space<vmem>>, vector<2x4xf32>
    %3 = arith.truncf %2 : vector<2x4xf32> to vector<2x4xbf16>
    %c0_3 = arith.constant 0 : index
    %c0_4 = arith.constant 0 : index
    %c0_5 = arith.constant 0 : index
    %4 = vector.load %arg7[%c0_3, %c0_4, %c0_5] : memref<2x16x512xf32, #tpu.memory_space<vmem>>, vector<1x16x512xf32>
    %5 = vector.shape_cast %4 : vector<1x16x512xf32> to vector<16x512xf32>
    %c0_6 = arith.constant 0 : index
    %c0_7 = arith.constant 0 : index
    %c0_8 = arith.constant 0 : index
    %6 = vector.load %arg3[%c0_6, %c0_7, %c0_8] : memref<2x12x512xbf16, #tpu.memory_space<vmem>>, vector<1x12x512xbf16>
    %7 = vector.shape_cast %6 : vector<1x12x512xbf16> to vector<12x512xbf16>
    %cst = arith.constant dense<0.000000e+00> : vector<2x512xf32>
    %8 = tpu.matmul %1, %7, %cst {dimension_numbers = #tpu.dot_dimension_numbers<[1], [0], [0], [1], [0, 0, 1, 1], [], []>} : vector<2x12xbf16>, vector<12x512xbf16>, vector<2x512xf32> -> vector<2x512xf32>
    %c0_9 = arith.constant 0 : index
    %c0_10 = arith.constant 0 : index
    %c0_11 = arith.constant 0 : index
    %9 = vector.load %arg4[%c0_9, %c0_10, %c0_11] : memref<2x4x512xbf16, #tpu.memory_space<vmem>>, vector<1x4x512xbf16>
    %10 = vector.shape_cast %9 : vector<1x4x512xbf16> to vector<4x512xbf16>
    %cst_12 = arith.constant dense<0.000000e+00> : vector<2x512xf32>
    %11 = tpu.matmul %3, %10, %cst_12 {dimension_numbers = #tpu.dot_dimension_numbers<[1], [0], [0], [1], [0, 0, 1, 1], [], []>} : vector<2x4xbf16>, vector<4x512xbf16>, vector<2x512xf32> -> vector<2x512xf32>
    %12 = arith.addf %8, %11 : vector<2x512xf32>
    %13 = vector.extract_strided_slice %5 {offsets = [0, 0], sizes = [1, 512], strides = [1, 1]} : vector<16x512xf32> to vector<1x512xf32>
    %14 = vector.broadcast %13 : vector<1x512xf32> to vector<2x512xf32>
    %15 = arith.addf %12, %14 : vector<2x512xf32>
    %16 = vector.extract_strided_slice %5 {offsets = [1, 0], sizes = [1, 512], strides = [1, 1]} : vector<16x512xf32> to vector<1x512xf32>
    %17 = vector.extract_strided_slice %5 {offsets = [2, 0], sizes = [1, 512], strides = [1, 1]} : vector<16x512xf32> to vector<1x512xf32>
    %cst_13 = arith.constant dense<0.000000e+00> : vector<2xf32>
    %18 = vector.multi_reduction <add>, %15, %cst_13 [1] : vector<2x512xf32> to vector<2xf32>
    %19 = vector.shape_cast %18 : vector<2xf32> to vector<2x1xf32>
    %cst_14 = arith.constant 5.120000e+02 : f32
    %20 = vector.broadcast %cst_14 : f32 to vector<2x1xf32>
    %21 = arith.divf %19, %20 : vector<2x1xf32>
    %22 = vector.broadcast %21 : vector<2x1xf32> to vector<2x512xf32>
    %23 = arith.subf %15, %22 : vector<2x512xf32>
    %24 = arith.mulf %23, %23 : vector<2x512xf32>
    %cst_15 = arith.constant dense<0.000000e+00> : vector<2xf32>
    %25 = vector.multi_reduction <add>, %24, %cst_15 [1] : vector<2x512xf32> to vector<2xf32>
    %26 = vector.shape_cast %25 : vector<2xf32> to vector<2x1xf32>
    %cst_16 = arith.constant 5.110000e+02 : f32
    %27 = vector.broadcast %cst_16 : f32 to vector<2x1xf32>
    %28 = arith.divf %26, %27 : vector<2x1xf32>
    %29 = math.sqrt %28 : vector<2x1xf32>
    %cst_17 = arith.constant 9.99999997E-7 : f32
    %30 = vector.broadcast %cst_17 : f32 to vector<2x1xf32>
    %31 = arith.addf %29, %30 : vector<2x1xf32>
    %32 = tpu.reciprocal %31 {approx = true} : vector<2x1xf32> -> vector<2x1xf32>
    %33 = vector.broadcast %32 : vector<2x1xf32> to vector<2x512xf32>
    %34 = arith.mulf %23, %33 : vector<2x512xf32>
    %35 = vector.broadcast %16 : vector<1x512xf32> to vector<2x512xf32>
    %36 = arith.mulf %35, %34 : vector<2x512xf32>
    %37 = vector.broadcast %17 : vector<1x512xf32> to vector<2x512xf32>
    %38 = arith.addf %36, %37 : vector<2x512xf32>
    %cst_18 = arith.constant 0.00999999977 : f32
    %39 = vector.broadcast %cst_18 : f32 to vector<2x512xf32>
    %40 = arith.mulf %39, %38 : vector<2x512xf32>
    %41 = arith.maximumf %38, %40 : vector<2x512xf32>
    %c0_19 = arith.constant 0 : index
    %c0_20 = arith.constant 0 : index
    %c0_21 = arith.constant 0 : index
    %42 = vector.load %arg5[%c0_19, %c0_20, %c0_21] : memref<2x512x512xi8, #tpu.memory_space<vmem>>, vector<1x512x512xi8>
    %43 = vector.shape_cast %42 : vector<1x512x512xi8> to vector<512x512xi8>
    %44 = vector.extract_strided_slice %5 {offsets = [11, 0], sizes = [1, 512], strides = [1, 1]} : vector<16x512xf32> to vector<1x512xf32>
    %45 = arith.sitofp %43 : vector<512x512xi8> to vector<512x512xbf16>
    %46 = arith.truncf %44 : vector<1x512xf32> to vector<1x512xbf16>
    %47 = vector.broadcast %46 : vector<1x512xbf16> to vector<512x512xbf16>
    %48 = arith.mulf %45, %47 : vector<512x512xbf16>
    %49 = arith.truncf %41 : vector<2x512xf32> to vector<2x512xbf16>
    %cst_22 = arith.constant dense<0.000000e+00> : vector<2x512xf32>
    %50 = tpu.matmul %49, %48, %cst_22 {dimension_numbers = #tpu.dot_dimension_numbers<[1], [0], [0], [1], [0, 0, 1, 1], [], []>} : vector<2x512xbf16>, vector<512x512xbf16>, vector<2x512xf32> -> vector<2x512xf32>
    %51 = vector.extract_strided_slice %5 {offsets = [3, 0], sizes = [1, 512], strides = [1, 1]} : vector<16x512xf32> to vector<1x512xf32>
    %52 = vector.broadcast %51 : vector<1x512xf32> to vector<2x512xf32>
    %53 = arith.addf %50, %52 : vector<2x512xf32>
    %54 = vector.extract_strided_slice %5 {offsets = [4, 0], sizes = [1, 512], strides = [1, 1]} : vector<16x512xf32> to vector<1x512xf32>
    %55 = vector.extract_strided_slice %5 {offsets = [5, 0], sizes = [1, 512], strides = [1, 1]} : vector<16x512xf32> to vector<1x512xf32>
    %cst_23 = arith.constant dense<0.000000e+00> : vector<2xf32>
    %56 = vector.multi_reduction <add>, %53, %cst_23 [1] : vector<2x512xf32> to vector<2xf32>
    %57 = vector.shape_cast %56 : vector<2xf32> to vector<2x1xf32>
    %cst_24 = arith.constant 5.120000e+02 : f32
    %58 = vector.broadcast %cst_24 : f32 to vector<2x1xf32>
    %59 = arith.divf %57, %58 : vector<2x1xf32>
    %60 = vector.broadcast %59 : vector<2x1xf32> to vector<2x512xf32>
    %61 = arith.subf %53, %60 : vector<2x512xf32>
    %62 = arith.mulf %61, %61 : vector<2x512xf32>
    %cst_25 = arith.constant dense<0.000000e+00> : vector<2xf32>
    %63 = vector.multi_reduction <add>, %62, %cst_25 [1] : vector<2x512xf32> to vector<2xf32>
    %64 = vector.shape_cast %63 : vector<2xf32> to vector<2x1xf32>
    %cst_26 = arith.constant 5.110000e+02 : f32
    %65 = vector.broadcast %cst_26 : f32 to vector<2x1xf32>
    %66 = arith.divf %64, %65 : vector<2x1xf32>
    %67 = math.sqrt %66 : vector<2x1xf32>
    %cst_27 = arith.constant 9.99999997E-7 : f32
    %68 = vector.broadcast %cst_27 : f32 to vector<2x1xf32>
    %69 = arith.addf %67, %68 : vector<2x1xf32>
    %70 = tpu.reciprocal %69 {approx = true} : vector<2x1xf32> -> vector<2x1xf32>
    %71 = vector.broadcast %70 : vector<2x1xf32> to vector<2x512xf32>
    %72 = arith.mulf %61, %71 : vector<2x512xf32>
    %73 = vector.broadcast %54 : vector<1x512xf32> to vector<2x512xf32>
    %74 = arith.mulf %73, %72 : vector<2x512xf32>
    %75 = vector.broadcast %55 : vector<1x512xf32> to vector<2x512xf32>
    %76 = arith.addf %74, %75 : vector<2x512xf32>
    %cst_28 = arith.constant 0.00999999977 : f32
    %77 = vector.broadcast %cst_28 : f32 to vector<2x512xf32>
    %78 = arith.mulf %77, %76 : vector<2x512xf32>
    %79 = arith.maximumf %76, %78 : vector<2x512xf32>
    %c0_29 = arith.constant 0 : index
    %c0_30 = arith.constant 0 : index
    %c0_31 = arith.constant 0 : index
    %80 = vector.load %arg6[%c0_29, %c0_30, %c0_31] : memref<2x512x512xi8, #tpu.memory_space<vmem>>, vector<1x512x512xi8>
    %81 = vector.shape_cast %80 : vector<1x512x512xi8> to vector<512x512xi8>
    %82 = vector.extract_strided_slice %5 {offsets = [12, 0], sizes = [1, 512], strides = [1, 1]} : vector<16x512xf32> to vector<1x512xf32>
    %83 = arith.sitofp %81 : vector<512x512xi8> to vector<512x512xbf16>
    %84 = arith.truncf %82 : vector<1x512xf32> to vector<1x512xbf16>
    %85 = vector.broadcast %84 : vector<1x512xbf16> to vector<512x512xbf16>
    %86 = arith.mulf %83, %85 : vector<512x512xbf16>
    %87 = arith.truncf %79 : vector<2x512xf32> to vector<2x512xbf16>
    %cst_32 = arith.constant dense<0.000000e+00> : vector<2x512xf32>
    %88 = tpu.matmul %87, %86, %cst_32 {dimension_numbers = #tpu.dot_dimension_numbers<[1], [0], [0], [1], [0, 0, 1, 1], [], []>} : vector<2x512xbf16>, vector<512x512xbf16>, vector<2x512xf32> -> vector<2x512xf32>
    %89 = vector.extract_strided_slice %5 {offsets = [6, 0], sizes = [1, 512], strides = [1, 1]} : vector<16x512xf32> to vector<1x512xf32>
    %90 = vector.broadcast %89 : vector<1x512xf32> to vector<2x512xf32>
    %91 = arith.addf %88, %90 : vector<2x512xf32>
    %92 = vector.extract_strided_slice %5 {offsets = [7, 0], sizes = [1, 512], strides = [1, 1]} : vector<16x512xf32> to vector<1x512xf32>
    %93 = vector.extract_strided_slice %5 {offsets = [8, 0], sizes = [1, 512], strides = [1, 1]} : vector<16x512xf32> to vector<1x512xf32>
    %cst_33 = arith.constant dense<0.000000e+00> : vector<2xf32>
    %94 = vector.multi_reduction <add>, %91, %cst_33 [1] : vector<2x512xf32> to vector<2xf32>
    %95 = vector.shape_cast %94 : vector<2xf32> to vector<2x1xf32>
    %cst_34 = arith.constant 5.120000e+02 : f32
    %96 = vector.broadcast %cst_34 : f32 to vector<2x1xf32>
    %97 = arith.divf %95, %96 : vector<2x1xf32>
    %98 = vector.broadcast %97 : vector<2x1xf32> to vector<2x512xf32>
    %99 = arith.subf %91, %98 : vector<2x512xf32>
    %100 = arith.mulf %99, %99 : vector<2x512xf32>
    %cst_35 = arith.constant dense<0.000000e+00> : vector<2xf32>
    %101 = vector.multi_reduction <add>, %100, %cst_35 [1] : vector<2x512xf32> to vector<2xf32>
    %102 = vector.shape_cast %101 : vector<2xf32> to vector<2x1xf32>
    %cst_36 = arith.constant 5.110000e+02 : f32
    %103 = vector.broadcast %cst_36 : f32 to vector<2x1xf32>
    %104 = arith.divf %102, %103 : vector<2x1xf32>
    %105 = math.sqrt %104 : vector<2x1xf32>
    %cst_37 = arith.constant 9.99999997E-7 : f32
    %106 = vector.broadcast %cst_37 : f32 to vector<2x1xf32>
    %107 = arith.addf %105, %106 : vector<2x1xf32>
    %108 = tpu.reciprocal %107 {approx = true} : vector<2x1xf32> -> vector<2x1xf32>
    %109 = vector.broadcast %108 : vector<2x1xf32> to vector<2x512xf32>
    %110 = arith.mulf %99, %109 : vector<2x512xf32>
    %111 = vector.broadcast %92 : vector<1x512xf32> to vector<2x512xf32>
    %112 = arith.mulf %111, %110 : vector<2x512xf32>
    %113 = vector.broadcast %93 : vector<1x512xf32> to vector<2x512xf32>
    %114 = arith.addf %112, %113 : vector<2x512xf32>
    %cst_38 = arith.constant 0.00999999977 : f32
    %115 = vector.broadcast %cst_38 : f32 to vector<2x512xf32>
    %116 = arith.mulf %115, %114 : vector<2x512xf32>
    %117 = arith.maximumf %114, %116 : vector<2x512xf32>
    %118 = vector.extract_strided_slice %5 {offsets = [9, 0], sizes = [1, 512], strides = [1, 1]} : vector<16x512xf32> to vector<1x512xf32>
    %119 = vector.extract_strided_slice %5 {offsets = [10, 0], sizes = [1, 1], strides = [1, 1]} : vector<16x512xf32> to vector<1x1xf32>
    %120 = vector.broadcast %118 : vector<1x512xf32> to vector<2x512xf32>
    %121 = arith.mulf %117, %120 : vector<2x512xf32>
    %cst_39 = arith.constant dense<0.000000e+00> : vector<2xf32>
    %122 = vector.multi_reduction <add>, %121, %cst_39 [1] : vector<2x512xf32> to vector<2xf32>
    %123 = vector.shape_cast %122 : vector<2xf32> to vector<2x1xf32>
    %124 = vector.broadcast %119 : vector<1x1xf32> to vector<2x1xf32>
    %125 = arith.addf %123, %124 : vector<2x1xf32>
    %c0_40 = arith.constant 0 : index
    %c0_41 = arith.constant 0 : index
    %c0_42 = arith.constant 0 : index
    %126 = vector.load %arg8[%c0_40, %c0_41, %c0_42] : memref<2x2x1xf32, #tpu.memory_space<vmem>>, vector<1x2x1xf32>
    %127 = vector.shape_cast %126 : vector<1x2x1xf32> to vector<2x1xf32>
    %128 = vector.shape_cast %125 : vector<2x1xf32> to vector<1x2x1xf32>
    tpu.vector_store %arg8[%c0_40, %c0_41, %c0_42], %128 {strides = array<i32>} : memref<2x2x1xf32, #tpu.memory_space<vmem>>, vector<1x2x1xf32>,
    %c1 = arith.constant 1 : index
    %c0_43 = arith.constant 0 : index
    %c0_44 = arith.constant 0 : index
    %129 = vector.load %arg7[%c1, %c0_43, %c0_44] : memref<2x16x512xf32, #tpu.memory_space<vmem>>, vector<1x16x512xf32>
    %130 = vector.shape_cast %129 : vector<1x16x512xf32> to vector<16x512xf32>
    %c1_45 = arith.constant 1 : index
    %c0_46 = arith.constant 0 : index
    %c0_47 = arith.constant 0 : index
    %131 = vector.load %arg3[%c1_45, %c0_46, %c0_47] : memref<2x12x512xbf16, #tpu.memory_space<vmem>>, vector<1x12x512xbf16>
    %132 = vector.shape_cast %131 : vector<1x12x512xbf16> to vector<12x512xbf16>
    %cst_48 = arith.constant dense<0.000000e+00> : vector<2x512xf32>
    %133 = tpu.matmul %1, %132, %cst_48 {dimension_numbers = #tpu.dot_dimension_numbers<[1], [0], [0], [1], [0, 0, 1, 1], [], []>} : vector<2x12xbf16>, vector<12x512xbf16>, vector<2x512xf32> -> vector<2x512xf32>
    %c1_49 = arith.constant 1 : index
    %c0_50 = arith.constant 0 : index
    %c0_51 = arith.constant 0 : index
    %134 = vector.load %arg4[%c1_49, %c0_50, %c0_51] : memref<2x4x512xbf16, #tpu.memory_space<vmem>>, vector<1x4x512xbf16>
    %135 = vector.shape_cast %134 : vector<1x4x512xbf16> to vector<4x512xbf16>
    %cst_52 = arith.constant dense<0.000000e+00> : vector<2x512xf32>
    %136 = tpu.matmul %3, %135, %cst_52 {dimension_numbers = #tpu.dot_dimension_numbers<[1], [0], [0], [1], [0, 0, 1, 1], [], []>} : vector<2x4xbf16>, vector<4x512xbf16>, vector<2x512xf32> -> vector<2x512xf32>
    %137 = arith.addf %133, %136 : vector<2x512xf32>
    %138 = vector.extract_strided_slice %130 {offsets = [0, 0], sizes = [1, 512], strides = [1, 1]} : vector<16x512xf32> to vector<1x512xf32>
    %139 = vector.broadcast %138 : vector<1x512xf32> to vector<2x512xf32>
    %140 = arith.addf %137, %139 : vector<2x512xf32>
    %141 = vector.extract_strided_slice %130 {offsets = [1, 0], sizes = [1, 512], strides = [1, 1]} : vector<16x512xf32> to vector<1x512xf32>
    %142 = vector.extract_strided_slice %130 {offsets = [2, 0], sizes = [1, 512], strides = [1, 1]} : vector<16x512xf32> to vector<1x512xf32>
    %cst_53 = arith.constant dense<0.000000e+00> : vector<2xf32>
    %143 = vector.multi_reduction <add>, %140, %cst_53 [1] : vector<2x512xf32> to vector<2xf32>
    %144 = vector.shape_cast %143 : vector<2xf32> to vector<2x1xf32>
    %cst_54 = arith.constant 5.120000e+02 : f32
    %145 = vector.broadcast %cst_54 : f32 to vector<2x1xf32>
    %146 = arith.divf %144, %145 : vector<2x1xf32>
    %147 = vector.broadcast %146 : vector<2x1xf32> to vector<2x512xf32>
    %148 = arith.subf %140, %147 : vector<2x512xf32>
    %149 = arith.mulf %148, %148 : vector<2x512xf32>
    %cst_55 = arith.constant dense<0.000000e+00> : vector<2xf32>
    %150 = vector.multi_reduction <add>, %149, %cst_55 [1] : vector<2x512xf32> to vector<2xf32>
    %151 = vector.shape_cast %150 : vector<2xf32> to vector<2x1xf32>
    %cst_56 = arith.constant 5.110000e+02 : f32
    %152 = vector.broadcast %cst_56 : f32 to vector<2x1xf32>
    %153 = arith.divf %151, %152 : vector<2x1xf32>
    %154 = math.sqrt %153 : vector<2x1xf32>
    %cst_57 = arith.constant 9.99999997E-7 : f32
    %155 = vector.broadcast %cst_57 : f32 to vector<2x1xf32>
    %156 = arith.addf %154, %155 : vector<2x1xf32>
    %157 = tpu.reciprocal %156 {approx = true} : vector<2x1xf32> -> vector<2x1xf32>
    %158 = vector.broadcast %157 : vector<2x1xf32> to vector<2x512xf32>
    %159 = arith.mulf %148, %158 : vector<2x512xf32>
    %160 = vector.broadcast %141 : vector<1x512xf32> to vector<2x512xf32>
    %161 = arith.mulf %160, %159 : vector<2x512xf32>
    %162 = vector.broadcast %142 : vector<1x512xf32> to vector<2x512xf32>
    %163 = arith.addf %161, %162 : vector<2x512xf32>
    %cst_58 = arith.constant 0.00999999977 : f32
    %164 = vector.broadcast %cst_58 : f32 to vector<2x512xf32>
    %165 = arith.mulf %164, %163 : vector<2x512xf32>
    %166 = arith.maximumf %163, %165 : vector<2x512xf32>
    %c1_59 = arith.constant 1 : index
    %c0_60 = arith.constant 0 : index
    %c0_61 = arith.constant 0 : index
    %167 = vector.load %arg5[%c1_59, %c0_60, %c0_61] : memref<2x512x512xi8, #tpu.memory_space<vmem>>, vector<1x512x512xi8>
    %168 = vector.shape_cast %167 : vector<1x512x512xi8> to vector<512x512xi8>
    %169 = vector.extract_strided_slice %130 {offsets = [11, 0], sizes = [1, 512], strides = [1, 1]} : vector<16x512xf32> to vector<1x512xf32>
    %170 = arith.sitofp %168 : vector<512x512xi8> to vector<512x512xbf16>
    %171 = arith.truncf %169 : vector<1x512xf32> to vector<1x512xbf16>
    %172 = vector.broadcast %171 : vector<1x512xbf16> to vector<512x512xbf16>
    %173 = arith.mulf %170, %172 : vector<512x512xbf16>
    %174 = arith.truncf %166 : vector<2x512xf32> to vector<2x512xbf16>
    %cst_62 = arith.constant dense<0.000000e+00> : vector<2x512xf32>
    %175 = tpu.matmul %174, %173, %cst_62 {dimension_numbers = #tpu.dot_dimension_numbers<[1], [0], [0], [1], [0, 0, 1, 1], [], []>} : vector<2x512xbf16>, vector<512x512xbf16>, vector<2x512xf32> -> vector<2x512xf32>
    %176 = vector.extract_strided_slice %130 {offsets = [3, 0], sizes = [1, 512], strides = [1, 1]} : vector<16x512xf32> to vector<1x512xf32>
    %177 = vector.broadcast %176 : vector<1x512xf32> to vector<2x512xf32>
    %178 = arith.addf %175, %177 : vector<2x512xf32>
    %179 = vector.extract_strided_slice %130 {offsets = [4, 0], sizes = [1, 512], strides = [1, 1]} : vector<16x512xf32> to vector<1x512xf32>
    %180 = vector.extract_strided_slice %130 {offsets = [5, 0], sizes = [1, 512], strides = [1, 1]} : vector<16x512xf32> to vector<1x512xf32>
    %cst_63 = arith.constant dense<0.000000e+00> : vector<2xf32>
    %181 = vector.multi_reduction <add>, %178, %cst_63 [1] : vector<2x512xf32> to vector<2xf32>
    %182 = vector.shape_cast %181 : vector<2xf32> to vector<2x1xf32>
    %cst_64 = arith.constant 5.120000e+02 : f32
    %183 = vector.broadcast %cst_64 : f32 to vector<2x1xf32>
    %184 = arith.divf %182, %183 : vector<2x1xf32>
    %185 = vector.broadcast %184 : vector<2x1xf32> to vector<2x512xf32>
    %186 = arith.subf %178, %185 : vector<2x512xf32>
    %187 = arith.mulf %186, %186 : vector<2x512xf32>
    %cst_65 = arith.constant dense<0.000000e+00> : vector<2xf32>
    %188 = vector.multi_reduction <add>, %187, %cst_65 [1] : vector<2x512xf32> to vector<2xf32>
    %189 = vector.shape_cast %188 : vector<2xf32> to vector<2x1xf32>
    %cst_66 = arith.constant 5.110000e+02 : f32
    %190 = vector.broadcast %cst_66 : f32 to vector<2x1xf32>
    %191 = arith.divf %189, %190 : vector<2x1xf32>
    %192 = math.sqrt %191 : vector<2x1xf32>
    %cst_67 = arith.constant 9.99999997E-7 : f32
    %193 = vector.broadcast %cst_67 : f32 to vector<2x1xf32>
    %194 = arith.addf %192, %193 : vector<2x1xf32>
    %195 = tpu.reciprocal %194 {approx = true} : vector<2x1xf32> -> vector<2x1xf32>
    %196 = vector.broadcast %195 : vector<2x1xf32> to vector<2x512xf32>
    %197 = arith.mulf %186, %196 : vector<2x512xf32>
    %198 = vector.broadcast %179 : vector<1x512xf32> to vector<2x512xf32>
    %199 = arith.mulf %198, %197 : vector<2x512xf32>
    %200 = vector.broadcast %180 : vector<1x512xf32> to vector<2x512xf32>
    %201 = arith.addf %199, %200 : vector<2x512xf32>
    %cst_68 = arith.constant 0.00999999977 : f32
    %202 = vector.broadcast %cst_68 : f32 to vector<2x512xf32>
    %203 = arith.mulf %202, %201 : vector<2x512xf32>
    %204 = arith.maximumf %201, %203 : vector<2x512xf32>
    %c1_69 = arith.constant 1 : index
    %c0_70 = arith.constant 0 : index
    %c0_71 = arith.constant 0 : index
    %205 = vector.load %arg6[%c1_69, %c0_70, %c0_71] : memref<2x512x512xi8, #tpu.memory_space<vmem>>, vector<1x512x512xi8>
    %206 = vector.shape_cast %205 : vector<1x512x512xi8> to vector<512x512xi8>
    %207 = vector.extract_strided_slice %130 {offsets = [12, 0], sizes = [1, 512], strides = [1, 1]} : vector<16x512xf32> to vector<1x512xf32>
    %208 = arith.sitofp %206 : vector<512x512xi8> to vector<512x512xbf16>
    %209 = arith.truncf %207 : vector<1x512xf32> to vector<1x512xbf16>
    %210 = vector.broadcast %209 : vector<1x512xbf16> to vector<512x512xbf16>
    %211 = arith.mulf %208, %210 : vector<512x512xbf16>
    %212 = arith.truncf %204 : vector<2x512xf32> to vector<2x512xbf16>
    %cst_72 = arith.constant dense<0.000000e+00> : vector<2x512xf32>
    %213 = tpu.matmul %212, %211, %cst_72 {dimension_numbers = #tpu.dot_dimension_numbers<[1], [0], [0], [1], [0, 0, 1, 1], [], []>} : vector<2x512xbf16>, vector<512x512xbf16>, vector<2x512xf32> -> vector<2x512xf32>
    %214 = vector.extract_strided_slice %130 {offsets = [6, 0], sizes = [1, 512], strides = [1, 1]} : vector<16x512xf32> to vector<1x512xf32>
    %215 = vector.broadcast %214 : vector<1x512xf32> to vector<2x512xf32>
    %216 = arith.addf %213, %215 : vector<2x512xf32>
    %217 = vector.extract_strided_slice %130 {offsets = [7, 0], sizes = [1, 512], strides = [1, 1]} : vector<16x512xf32> to vector<1x512xf32>
    %218 = vector.extract_strided_slice %130 {offsets = [8, 0], sizes = [1, 512], strides = [1, 1]} : vector<16x512xf32> to vector<1x512xf32>
    %cst_73 = arith.constant dense<0.000000e+00> : vector<2xf32>
    %219 = vector.multi_reduction <add>, %216, %cst_73 [1] : vector<2x512xf32> to vector<2xf32>
    %220 = vector.shape_cast %219 : vector<2xf32> to vector<2x1xf32>
    %cst_74 = arith.constant 5.120000e+02 : f32
    %221 = vector.broadcast %cst_74 : f32 to vector<2x1xf32>
    %222 = arith.divf %220, %221 : vector<2x1xf32>
    %223 = vector.broadcast %222 : vector<2x1xf32> to vector<2x512xf32>
    %224 = arith.subf %216, %223 : vector<2x512xf32>
    %225 = arith.mulf %224, %224 : vector<2x512xf32>
    %cst_75 = arith.constant dense<0.000000e+00> : vector<2xf32>
    %226 = vector.multi_reduction <add>, %225, %cst_75 [1] : vector<2x512xf32> to vector<2xf32>
    %227 = vector.shape_cast %226 : vector<2xf32> to vector<2x1xf32>
    %cst_76 = arith.constant 5.110000e+02 : f32
    %228 = vector.broadcast %cst_76 : f32 to vector<2x1xf32>
    %229 = arith.divf %227, %228 : vector<2x1xf32>
    %230 = math.sqrt %229 : vector<2x1xf32>
    %cst_77 = arith.constant 9.99999997E-7 : f32
    %231 = vector.broadcast %cst_77 : f32 to vector<2x1xf32>
    %232 = arith.addf %230, %231 : vector<2x1xf32>
    %233 = tpu.reciprocal %232 {approx = true} : vector<2x1xf32> -> vector<2x1xf32>
    %234 = vector.broadcast %233 : vector<2x1xf32> to vector<2x512xf32>
    %235 = arith.mulf %224, %234 : vector<2x512xf32>
    %236 = vector.broadcast %217 : vector<1x512xf32> to vector<2x512xf32>
    %237 = arith.mulf %236, %235 : vector<2x512xf32>
    %238 = vector.broadcast %218 : vector<1x512xf32> to vector<2x512xf32>
    %239 = arith.addf %237, %238 : vector<2x512xf32>
    %cst_78 = arith.constant 0.00999999977 : f32
    %240 = vector.broadcast %cst_78 : f32 to vector<2x512xf32>
    %241 = arith.mulf %240, %239 : vector<2x512xf32>
    %242 = arith.maximumf %239, %241 : vector<2x512xf32>
    %243 = vector.extract_strided_slice %130 {offsets = [9, 0], sizes = [1, 512], strides = [1, 1]} : vector<16x512xf32> to vector<1x512xf32>
    %244 = vector.extract_strided_slice %130 {offsets = [10, 0], sizes = [1, 1], strides = [1, 1]} : vector<16x512xf32> to vector<1x1xf32>
    %245 = vector.broadcast %243 : vector<1x512xf32> to vector<2x512xf32>
    %246 = arith.mulf %242, %245 : vector<2x512xf32>
    %cst_79 = arith.constant dense<0.000000e+00> : vector<2xf32>
    %247 = vector.multi_reduction <add>, %246, %cst_79 [1] : vector<2x512xf32> to vector<2xf32>
    %248 = vector.shape_cast %247 : vector<2xf32> to vector<2x1xf32>
    %249 = vector.broadcast %244 : vector<1x1xf32> to vector<2x1xf32>
    %250 = arith.addf %248, %249 : vector<2x1xf32>
    %c1_80 = arith.constant 1 : index
    %c0_81 = arith.constant 0 : index
    %c0_82 = arith.constant 0 : index
    %251 = vector.load %arg8[%c1_80, %c0_81, %c0_82] : memref<2x2x1xf32, #tpu.memory_space<vmem>>, vector<1x2x1xf32>
    %252 = vector.shape_cast %251 : vector<1x2x1xf32> to vector<2x1xf32>
    %253 = vector.shape_cast %250 : vector<2x1xf32> to vector<1x2x1xf32>
    tpu.vector_store %arg8[%c1_80, %c0_81, %c0_82], %253 {strides = array<i32>} : memref<2x2x1xf32, #tpu.memory_space<vmem>>, vector<1x2x1xf32>,
    return
  }
  func.func @transform_0(%arg0: i32) -> (i32, i32) {
    %c0_i32 = arith.constant 0 : i32
    %c0_i32_0 = arith.constant 0 : i32
    %c0_i32_1 = arith.constant 0 : i32
    return %c0_i32, %c0_i32_0 : i32, i32
  }
  func.func @transform_1(%arg0: i32) -> (i32, i32) {
    %c0_i32 = arith.constant 0 : i32
    %c0_i32_0 = arith.constant 0 : i32
    %c0_i32_1 = arith.constant 0 : i32
    return %c0_i32, %c0_i32_0 : i32, i32
  }
  func.func @transform_2(%arg0: i32) -> (i32, i32, i32) {
    %c0_i32 = arith.constant 0 : i32
    %c0_i32_0 = arith.constant 0 : i32
    %c0_i32_1 = arith.constant 0 : i32
    return %arg0, %c0_i32, %c0_i32_0 : i32, i32, i32
  }
  func.func @transform_3(%arg0: i32) -> (i32, i32, i32) {
    %c0_i32 = arith.constant 0 : i32
    %c0_i32_0 = arith.constant 0 : i32
    %c0_i32_1 = arith.constant 0 : i32
    return %arg0, %c0_i32, %c0_i32_0 : i32, i32, i32
  }
  func.func @transform_4(%arg0: i32) -> (i32, i32, i32) {
    %c0_i32 = arith.constant 0 : i32
    %c0_i32_0 = arith.constant 0 : i32
    %c0_i32_1 = arith.constant 0 : i32
    return %arg0, %c0_i32, %c0_i32_0 : i32, i32, i32
  }
  func.func @transform_5(%arg0: i32) -> (i32, i32, i32) {
    %c0_i32 = arith.constant 0 : i32
    %c0_i32_0 = arith.constant 0 : i32
    %c0_i32_1 = arith.constant 0 : i32
    return %arg0, %c0_i32, %c0_i32_0 : i32, i32, i32
  }
  func.func @transform_6(%arg0: i32) -> (i32, i32, i32) {
    %c0_i32 = arith.constant 0 : i32
    %c0_i32_0 = arith.constant 0 : i32
    %c0_i32_1 = arith.constant 0 : i32
    return %arg0, %c0_i32, %c0_i32_0 : i32, i32, i32
  }
  func.func @transform_7(%arg0: i32) -> (i32, i32, i32) {
    %c0_i32 = arith.constant 0 : i32
    %c0_i32_0 = arith.constant 0 : i32
    %c0_i32_1 = arith.constant 0 : i32
    return %arg0, %c0_i32, %c0_i32_0 : i32, i32, i32
  }
}

</mosaic_0001>

<llo_original>
// kernel: critic_forward.1
$region0: #{critic_forward.1}
  #allocation0 [shape = 'u32[]', space=smem, size = 0x4, offset = 0x4, fixed_abs, tag = 'smem constant byte address 0x4 - core index']
  #allocation1 [shape = 'u32[144,128]{1,0:T(1,128)}', space=vmem, size = 0x12000, scoped, tag = 'internal scratch']
  %s0 = inlined_call_operand.vmem [shape: f32[2,12], index: 0, kind: input, shape index: {}]
  %s1 = inlined_call_operand.vmem [shape: f32[2,4], index: 1, kind: input, shape index: {}]
  %s2 = inlined_call_operand.vmem [shape: bf16[4,12,512], index: 2, kind: input, shape index: {}]
  %s3 = inlined_call_operand.vmem [shape: bf16[4,4,512], index: 3, kind: input, shape index: {}]
  %s4 = inlined_call_operand.hbm [shape: s8[4,512,512], index: 4, kind: input, shape index: {}]
  %s5 = inlined_call_operand.hbm [shape: s8[4,512,512], index: 5, kind: input, shape index: {}]
  %s6 = inlined_call_operand.hbm [shape: f32[4,16,512], index: 6, kind: input, shape index: {}]
  %s7 = inlined_call_operand.vmem [shape: f32[4,2,1], index: 7, kind: output, shape index: {}]
  %s8 = sld [smem:[#allocation0]]
  $region73: #{critic_forward.1} parent=0
    _
  %s10 = ssub.s32 1, %s8
  %s11 = scalar_select 0, %s10, %s8
  $region1: #{critic_forward.1} parent=0
    #allocation2 [shape = 'u8[1048576]{0}', space=vmem, size = 0x100000, scoped, tag = 'input window, operand 4']
    #allocation3 [shape = 's32[2]{0}', space=sflag, size = 0x8, scoped, tag = 'scoped memory for critic_forward.1']
    #allocation4 [shape = 'u8[1048576]{0}', space=vmem, size = 0x100000, scoped, tag = 'input window, operand 5']
    #allocation5 [shape = 's32[2]{0}', space=sflag, size = 0x8, scoped, tag = 'scoped memory for critic_forward.1']
    #allocation6 [shape = 'u8[131072]{0}', space=vmem, size = 0x20000, scoped, tag = 'input window, operand 6']
    %12 = vsyncpa [#allocation3], 0
    %s13 = scalar_lea.sflag [#allocation3], 1
    %14 = vsyncpa %s13, 0
    %15 = vsyncpa [#allocation5], 0
    %s16 = scalar_lea.sflag [#allocation5], 1
    %17 = vsyncpa %s16, 0
    loop: start=0, step=1, limit=4
    $region2: #{critic_forward.1} parent=1 // loop_pre_header
      _
    $region3: #{critic_forward.1} parent=1 // loop_header
      %s19 = sphi 0, %s23
      %p20 = scmp.ge.s32.totalorder %s19, 4
      %s27 = sphi 0, %s27
      %s29 = sphi 0, %s27
      %s30 = sphi 0, %s29
      %s44 = sphi 0, %s30
      %s48 = sphi 0, %s48
      %s50 = sphi 0, %s48
      %s51 = sphi 0, %s50
      %s65 = sphi 0, %s51
      %s71 = sphi 0, %s73
      %s74 = sphi 0, %s71
      %s75 = sphi 0, %s74
      %s91 = sphi 0, %s75
      %s97 = sphi 0, %s99
      %s100 = sphi 0, %s97
      %s101 = sphi 0, %s100
      %s117 = sphi 0, %s101
      %s123 = sphi 0, %s125
      %s126 = sphi 0, %s123
      %s127 = sphi 0, %s126
      %s143 = sphi 0, %s127
      %s149 = sphi 0, %s151
      %s152 = sphi 0, %s149
      %s153 = sphi 0, %s152
      %s169 = sphi 0, %s153
      %s175 = sphi 0, %s177
      %s178 = sphi 0, %s175
      %s179 = sphi 0, %s178
      %s195 = sphi 0, %s179
      %s201 = sphi 0, %s203
      %s204 = sphi 0, %s201
      %s205 = sphi 0, %s204
      %s221 = sphi 0, %s205
    $region4: #{critic_forward.1} parent=1 // loop_header_branch
      %22 = sbr.rel (%p20) target = $region8
    $region5: #{critic_forward.1} parent=1 // loop_body
      %s24 = ssub.s32 %s19, 1
      %s25 = ssub.s32 %s19, 2
      %s26 = sadd.s32 %s19, 1
      %s28 = sadd.s32 %s27, 1
      %p31 = scmp.eq.s32.totalorder %s19, 1
      %p32 = scmp.ne.s32.totalorder %s27, %s29
      %p33 = scmp.eq.s32.totalorder %s19, 0
      %p34 = por %p32, %p33
      %p35 = scmp.ne.s32.totalorder %s27, %s29
      %p36 = scmp.eq.s32.totalorder %s24, 1
      %p37 = por %p35, %p36
      %p38 = scmp.ne.s32.totalorder %s29, %s30
      %p39 = scmp.eq.s32.totalorder %s24, 0
      %p40 = por %p38, %p39
      %p41 = scmp.ne.s32.totalorder %s29, %s30
      %p42 = scmp.eq.s32.totalorder %s25, 1
      %p43 = por %p41, %p42
      %p45 = scmp.ne.s32.totalorder %s30, %s44
      %p46 = scmp.eq.s32.totalorder %s25, 0
      %p47 = por %p45, %p46
      %s49 = sadd.s32 %s48, 1
      %p52 = scmp.eq.s32.totalorder %s19, 1
      %p53 = scmp.ne.s32.totalorder %s48, %s50
      %p54 = scmp.eq.s32.totalorder %s19, 0
      %p55 = por %p53, %p54
      %p56 = scmp.ne.s32.totalorder %s48, %s50
      %p57 = scmp.eq.s32.totalorder %s24, 1
      %p58 = por %p56, %p57
      %p59 = scmp.ne.s32.totalorder %s50, %s51
      %p60 = scmp.eq.s32.totalorder %s24, 0
      %p61 = por %p59, %p60
      %p62 = scmp.ne.s32.totalorder %s50, %s51
      %p63 = scmp.eq.s32.totalorder %s25, 1
      %p64 = por %p62, %p63
      %p66 = scmp.ne.s32.totalorder %s51, %s65
      %p67 = scmp.eq.s32.totalorder %s25, 0
      %p68 = por %p66, %p67
      %s69 = ssub.s32 %s19, %s26
      %p70 = scmp.eq.s32.totalorder %s69, 0
      %s72 = sadd.s32 %s71, 1
      %s73 = scalar_select %p70, %s71, %s72
      %p76 = pneg %p70
      %p77 = scmp.eq.s32.totalorder %s19, 1
      %p78 = por %p76, %p77
      %p79 = scmp.ne.s32.totalorder %s71, %s74
      %p80 = scmp.eq.s32.totalorder %s19, 0
      %p81 = por %p79, %p80
      %p82 = scmp.ne.s32.totalorder %s71, %s74
      %p83 = scmp.eq.s32.totalorder %s24, 1
      %p84 = por %p82, %p83
      %p85 = scmp.ne.s32.totalorder %s74, %s75
      %p86 = scmp.eq.s32.totalorder %s24, 0
      %p87 = por %p85, %p86
      %p88 = scmp.ne.s32.totalorder %s74, %s75
      %p89 = scmp.eq.s32.totalorder %s25, 1
      %p90 = por %p88, %p89
      %p92 = scmp.ne.s32.totalorder %s75, %s91
      %p93 = scmp.eq.s32.totalorder %s25, 0
      %p94 = por %p92, %p93
      %s95 = ssub.s32 %s19, %s26
      %p96 = scmp.eq.s32.totalorder %s95, 0
      %s98 = sadd.s32 %s97, 1
      %s99 = scalar_select %p96, %s97, %s98
      %p102 = pneg %p96
      %p103 = scmp.eq.s32.totalorder %s19, 1
      %p104 = por %p102, %p103
      %p105 = scmp.ne.s32.totalorder %s97, %s100
      %p106 = scmp.eq.s32.totalorder %s19, 0
      %p107 = por %p105, %p106
      %p108 = scmp.ne.s32.totalorder %s97, %s100
      %p109 = scmp.eq.s32.totalorder %s24, 1
      %p110 = por %p108, %p109
      %p111 = scmp.ne.s32.totalorder %s100, %s101
      %p112 = scmp.eq.s32.totalorder %s24, 0
      %p113 = por %p111, %p112
      %p114 = scmp.ne.s32.totalorder %s100, %s101
      %p115 = scmp.eq.s32.totalorder %s25, 1
      %p116 = por %p114, %p115
      %p118 = scmp.ne.s32.totalorder %s101, %s117
      %p119 = scmp.eq.s32.totalorder %s25, 0
      %p120 = por %p118, %p119
      %s121 = ssub.s32 %s19, %s26
      %p122 = scmp.eq.s32.totalorder %s121, 0
      %s124 = sadd.s32 %s123, 1
      %s125 = scalar_select %p122, %s123, %s124
      %p128 = pneg %p122
      %p129 = scmp.eq.s32.totalorder %s19, 1
      %p130 = por %p128, %p129
      %p131 = scmp.ne.s32.totalorder %s123, %s126
      %p132 = scmp.eq.s32.totalorder %s19, 0
      %p133 = por %p131, %p132
      %p134 = scmp.ne.s32.totalorder %s123, %s126
      %p135 = scmp.eq.s32.totalorder %s24, 1
      %p136 = por %p134, %p135
      %p137 = scmp.ne.s32.totalorder %s126, %s127
      %p138 = scmp.eq.s32.totalorder %s24, 0
      %p139 = por %p137, %p138
      %p140 = scmp.ne.s32.totalorder %s126, %s127
      %p141 = scmp.eq.s32.totalorder %s25, 1
      %p142 = por %p140, %p141
      %p144 = scmp.ne.s32.totalorder %s127, %s143
      %p145 = scmp.eq.s32.totalorder %s25, 0
      %p146 = por %p144, %p145
      %s147 = ssub.s32 %s19, %s26
      %p148 = scmp.eq.s32.totalorder %s147, 0
      %s150 = sadd.s32 %s149, 1
      %s151 = scalar_select %p148, %s149, %s150
      %p154 = pneg %p148
      %p155 = scmp.eq.s32.totalorder %s19, 1
      %p156 = por %p154, %p155
      %p157 = scmp.ne.s32.totalorder %s149, %s152
      %p158 = scmp.eq.s32.totalorder %s19, 0
      %p159 = por %p157, %p158
      %p160 = scmp.ne.s32.totalorder %s149, %s152
      %p161 = scmp.eq.s32.totalorder %s24, 1
      %p162 = por %p160, %p161
      %p163 = scmp.ne.s32.totalorder %s152, %s153
      %p164 = scmp.eq.s32.totalorder %s24, 0
      %p165 = por %p163, %p164
      %p166 = scmp.ne.s32.totalorder %s152, %s153
      %p167 = scmp.eq.s32.totalorder %s25, 1
      %p168 = por %p166, %p167
      %p170 = scmp.ne.s32.totalorder %s153, %s169
      %p171 = scmp.eq.s32.totalorder %s25, 0
      %p172 = por %p170, %p171
      %s173 = ssub.s32 %s19, %s26
      %p174 = scmp.eq.s32.totalorder %s173, 0
      %s176 = sadd.s32 %s175, 1
      %s177 = scalar_select %p174, %s175, %s176
      %p180 = pneg %p174
      %p181 = scmp.eq.s32.totalorder %s19, 1
      %p182 = por %p180, %p181
      %p183 = scmp.ne.s32.totalorder %s175, %s178
      %p184 = scmp.eq.s32.totalorder %s19, 0
      %p185 = por %p183, %p184
      %p186 = scmp.ne.s32.totalorder %s175, %s178
      %p187 = scmp.eq.s32.totalorder %s24, 1
      %p188 = por %p186, %p187
      %p189 = scmp.ne.s32.totalorder %s178, %s179
      %p190 = scmp.eq.s32.totalorder %s24, 0
      %p191 = por %p189, %p190
      %p192 = scmp.ne.s32.totalorder %s178, %s179
      %p193 = scmp.eq.s32.totalorder %s25, 1
      %p194 = por %p192, %p193
      %p196 = scmp.ne.s32.totalorder %s179, %s195
      %p197 = scmp.eq.s32.totalorder %s25, 0
      %p198 = por %p196, %p197
      %s199 = ssub.s32 %s19, %s26
      %p200 = scmp.eq.s32.totalorder %s199, 0
      %s202 = sadd.s32 %s201, 1
      %s203 = scalar_select %p200, %s201, %s202
      %p206 = pneg %p200
      %p207 = scmp.eq.s32.totalorder %s19, 1
      %p208 = por %p206, %p207
      %p209 = scmp.ne.s32.totalorder %s201, %s204
      %p210 = scmp.eq.s32.totalorder %s19, 0
      %p211 = por %p209, %p210
      %p212 = scmp.ne.s32.totalorder %s201, %s204
      %p213 = scmp.eq.s32.totalorder %s24, 1
      %p214 = por %p212, %p213
      %p215 = scmp.ne.s32.totalorder %s204, %s205
      %p216 = scmp.eq.s32.totalorder %s24, 0
      %p217 = por %p215, %p216
      %p218 = scmp.ne.s32.totalorder %s204, %s205
      %p219 = scmp.eq.s32.totalorder %s25, 1
      %p220 = por %p218, %p219
      %p222 = scmp.ne.s32.totalorder %s205, %s221
      %p223 = scmp.eq.s32.totalorder %s25, 0
      %p224 = por %p222, %p223
      %p225 = scmp.le.s32.totalorder 1, %s19
      %p226 = scmp.lt.s32.totalorder %s19, 3
      %p227 = pnand %p225, %p226
      %p228 = pneg %p227
      // Predicated region
      $region9: #{critic_forward.1} parent=5 // pred_check
        _
      $region10: #{critic_forward.1} parent=5 // pred_check_branch
        %230 = sbr.rel (%p227) target = $region12
      $region11: #{critic_forward.1} parent=5 // pred_region
        %s231 = ssub.s32 %s19, 1
        // Predicated region
        $region13: #{critic_forward.1} parent=11 // pred_check
          %p232 = pneg %p40
        $region14: #{critic_forward.1} parent=11 // pred_check_branch
          %234 = sbr.rel (%p232) target = $region16
        $region15: #{critic_forward.1} parent=11 // pred_region
          _
        $region16: #{critic_forward.1} parent=11 // pred_fallthru
          _
        // Predicated region
        $region17: #{critic_forward.1} parent=11 // pred_check
          %p235 = pneg %p61
        $region18: #{critic_forward.1} parent=11 // pred_check_branch
          %237 = sbr.rel (%p235) target = $region20
        $region19: #{critic_forward.1} parent=11 // pred_region
          _
        $region20: #{critic_forward.1} parent=11 // pred_fallthru
          _
      $region12: #{critic_forward.1} parent=5 // pred_fallthru
        _
      %p238 = scmp.lt.s32.totalorder %s19, 2
      // Predicated region
      $region21: #{critic_forward.1} parent=5 // pred_check
        %p239 = pneg %p238
      $region22: #{critic_forward.1} parent=5 // pred_check_branch
        %241 = sbr.rel (%p239) target = $region24
      $region23: #{critic_forward.1} parent=5 // pred_region
        // Predicated region
        $region25: #{critic_forward.1} parent=23 // pred_check
          %p242 = pneg %p81
        $region26: #{critic_forward.1} parent=23 // pred_check_branch
          %244 = sbr.rel (%p242) target = $region28
        $region27: #{critic_forward.1} parent=23 // pred_region
          %s245 = smul.u32 2, %s19
          %p246 = scmp.lt.s32.totalorder %s245, 3
          %s247 = scalar_select %p246, %s245, 3
          %s248 = smul.addr %s247, 8
          %s249 = smul.addr %s248, 4
          %s250 = scalar_lea.vmem %s2, %s249
          %s251 = smul.u32 2, %s19
        $region28: #{critic_forward.1} parent=23 // pred_fallthru
          _
        // Predicated region
        $region29: #{critic_forward.1} parent=23 // pred_check
          %p252 = pneg %p107
        $region30: #{critic_forward.1} parent=23 // pred_check_branch
          %254 = sbr.rel (%p252) target = $region32
        $region31: #{critic_forward.1} parent=23 // pred_region
          %s255 = smul.u32 2, %s19
          %p256 = scmp.lt.s32.totalorder %s255, 3
          %s257 = scalar_select %p256, %s255, 3
          %s258 = smul.addr %s257, 4
          %s259 = smul.addr %s258, 2
          %s260 = scalar_lea.vmem %s3, %s259
          %s261 = smul.u32 2, %s19
        $region32: #{critic_forward.1} parent=23 // pred_fallthru
          _
        // Predicated region
        $region33: #{critic_forward.1} parent=23 // pred_check
          %p262 = pneg %p133
        $region34: #{critic_forward.1} parent=23 // pred_check_branch
          %264 = sbr.rel (%p262) target = $region36
        $region35: #{critic_forward.1} parent=23 // pred_region
          %s265 = sand.u32 %s123, 1
          %s266 = scalar_lea.sflag [#allocation3], %s265
          %s267 = sand.u32 %s123, 1
          %s268 = smul.addr %s267, 1024
          %s269 = scalar_lea.vmem [#allocation2], %s268
          %s270 = smul.u32 2, %s19
          %s272 = ssub.s32 16384, 16384
          %273 = vsyncadd %s266, %s272
          %s274 = smul.addr %s270, 64
          %s275 = smul.addr %s274, 128
          %s276 = scalar_lea.hbm %s4, %s275
          %s277 = sshll.u32 %s269, 4
          %s278 = int_to_ptr.vmem [resolvable:$true] %s277
          %283 = dma.hbm_to_vmem [thread:$0]  %s276, 16384, %s278, %s266, 512, 512, 32
        $region36: #{critic_forward.1} parent=23 // pred_fallthru
          _
        // Predicated region
        $region37: #{critic_forward.1} parent=23 // pred_check
          %p284 = pneg %p159
        $region38: #{critic_forward.1} parent=23 // pred_check_branch
          %286 = sbr.rel (%p284) target = $region40
        $region39: #{critic_forward.1} parent=23 // pred_region
          %s287 = sand.u32 %s19, 1
          %s288 = scalar_lea.sflag [#allocation5], %s287
          %s289 = sand.u32 %s149, 1
          %s290 = smul.addr %s289, 1024
          %s291 = scalar_lea.vmem [#allocation4], %s290
          %s292 = smul.u32 2, %s19
          %s294 = ssub.s32 16384, 16384
          %295 = vsyncadd %s288, %s294
          %s296 = smul.addr %s292, 64
          %s297 = smul.addr %s296, 128
          %s298 = scalar_lea.hbm %s5, %s297
          %s299 = sshll.u32 %s291, 4
          %s300 = int_to_ptr.vmem [resolvable:$true] %s299
          %305 = dma.hbm_to_vmem [thread:$0]  %s298, 16384, %s300, %s288, 512, 512, 32
        $region40: #{critic_forward.1} parent=23 // pred_fallthru
          _
        // Predicated region
        $region41: #{critic_forward.1} parent=23 // pred_check
          %p306 = pneg %p185
        $region42: #{critic_forward.1} parent=23 // pred_check_branch
          %308 = sbr.rel (%p306) target = $region44
        $region43: #{critic_forward.1} parent=23 // pred_region
          %s309 = sand.u32 %s19, 1
          %s310 = scalar_lea.sflag [#allocation5], %s309
          %s311 = sand.u32 %s175, 1
          %s312 = smul.addr %s311, 128
          %s313 = scalar_lea.vmem [#allocation6], %s312
          %s314 = smul.u32 2, %s19
          %s316 = ssub.s32 2048, 2048
          %317 = vsyncadd %s310, %s316
          %s318 = smul.addr %s314, 8
          %s319 = smul.addr %s318, 128
          %s320 = scalar_lea.hbm %s6, %s319
          %s321 = sshll.u32 %s313, 4
          %s322 = int_to_ptr.vmem [resolvable:$true] %s321
          %327 = dma.hbm_to_vmem [thread:$0]  %s320, 2048, %s322, %s310, 512, 512, 32
        $region44: #{critic_forward.1} parent=23 // pred_fallthru
          _
      $region24: #{critic_forward.1} parent=5 // pred_fallthru
        _
      %p328 = scmp.le.s32.totalorder 1, %s19
      %p329 = scmp.lt.s32.totalorder %s19, 3
      %p330 = pnand %p328, %p329
      %p331 = pneg %p330
      // Predicated region
      $region45: #{critic_forward.1} parent=5 // pred_check
        _
      $region46: #{critic_forward.1} parent=5 // pred_check_branch
        %333 = sbr.rel (%p330) target = $region48
      $region47: #{critic_forward.1} parent=5 // pred_region
        %s334 = ssub.s32 %s19, 1
        %s335 = sand.u32 %s126, 1
        %s336 = scalar_lea.sflag [#allocation3], %s335
        %s337 = sand.u32 %s126, 1
        %s338 = smul.addr %s337, 1024
        %s339 = scalar_lea.vmem [#allocation2], %s338
        // Predicated region
        $region49: #{critic_forward.1} parent=47 // pred_check
          %p340 = pneg %p139
        $region50: #{critic_forward.1} parent=47 // pred_check_branch
          %342 = sbr.rel (%p340) target = $region52
        $region51: #{critic_forward.1} parent=47 // pred_region
          %343 = dma.done %s336, 16384
        $region52: #{critic_forward.1} parent=47 // pred_fallthru
          _
        %s344 = sand.u32 %s24, 1
        %s345 = scalar_lea.sflag [#allocation5], %s344
        %s346 = sand.u32 %s152, 1
        %s347 = smul.addr %s346, 1024
        %s348 = scalar_lea.vmem [#allocation4], %s347
        // Predicated region
        $region53: #{critic_forward.1} parent=47 // pred_check
          %p349 = pneg %p165
        $region54: #{critic_forward.1} parent=47 // pred_check_branch
          %351 = sbr.rel (%p349) target = $region56
        $region55: #{critic_forward.1} parent=47 // pred_region
          %352 = dma.done %s345, 16384
        $region56: #{critic_forward.1} parent=47 // pred_fallthru
          _
        %s353 = sand.u32 %s24, 1
        %s354 = scalar_lea.sflag [#allocation5], %s353
        %s355 = sand.u32 %s178, 1
        %s356 = smul.addr %s355, 128
        %s357 = scalar_lea.vmem [#allocation6], %s356
        // Predicated region
        $region57: #{critic_forward.1} parent=47 // pred_check
          %p358 = pneg %p191
        $region58: #{critic_forward.1} parent=47 // pred_check_branch
          %360 = sbr.rel (%p358) target = $region60
        $region59: #{critic_forward.1} parent=47 // pred_region
          %361 = dma.done %s354, 2048
        $region60: #{critic_forward.1} parent=47 // pred_fallthru
          _
        %p362 = pneg %p40
        %p363 = pneg %p37
        %p364 = pneg %p61
        %p365 = pneg %p58
        %s366 = smul.u32 2, %s24
        %p367 = scmp.lt.s32.totalorder %s366, 3
        %s368 = scalar_select %p367, %s366, 3
        %s369 = smul.addr %s368, 8
        %s370 = smul.addr %s369, 4
        %s371 = scalar_lea.vmem %s2, %s370
        %p372 = pneg %p87
        %p373 = pneg %p84
        %s374 = smul.u32 2, %s24
        %p375 = scmp.lt.s32.totalorder %s374, 3
        %s376 = scalar_select %p375, %s374, 3
        %s377 = smul.addr %s376, 4
        %s378 = smul.addr %s377, 2
        %s379 = scalar_lea.vmem %s3, %s378
        %p380 = pneg %p113
        %p381 = pneg %p110
        %s382 = sand.u32 %s126, 1
        %s383 = scalar_lea.sflag [#allocation3], %s382
        %s384 = sand.u32 %s126, 1
        %s385 = smul.addr %s384, 1024
        %s386 = scalar_lea.vmem [#allocation2], %s385
        %p387 = pneg %p139
        %p388 = pneg %p136
        %s389 = sand.u32 %s24, 1
        %s390 = scalar_lea.sflag [#allocation5], %s389
        %s391 = sand.u32 %s152, 1
        %s392 = smul.addr %s391, 1024
        %s393 = scalar_lea.vmem [#allocation4], %s392
        %p394 = pneg %p165
        %p395 = pneg %p162
        %s396 = sand.u32 %s24, 1
        %s397 = scalar_lea.sflag [#allocation5], %s396
        %s398 = sand.u32 %s178, 1
        %s399 = smul.addr %s398, 128
        %s400 = scalar_lea.vmem [#allocation6], %s399
        %p401 = pneg %p191
        %p402 = pneg %p188
        %p403 = pneg %p217
        %p404 = pneg %p214
        %s405 = smul.u32 2, %s24
        %p406 = scmp.lt.s32.totalorder %s405, 3
        %s407 = scalar_select %p406, %s405, 3
        %s408 = smul.addr %s407, 2
        %s409 = scalar_lea.vmem %s7, %s408
        %s410 = smul.u32 2, %s24
        %p411 = scmp.lt.s32.totalorder %s410, 3
        %s412 = scalar_select %p411, %s410, 3
        %s413 = smul.addr %s412, 8
        %s414 = smul.addr %s413, 4
        %s415 = scalar_lea.vmem %s2, %s414
        %s416 = smul.u32 2, %s24
        %s417 = smul.u32 2, %s24
        %p418 = scmp.lt.s32.totalorder %s417, 3
        %s419 = scalar_select %p418, %s417, 3
        %s420 = smul.addr %s419, 4
        %s421 = smul.addr %s420, 2
        %s422 = scalar_lea.vmem %s3, %s421
        %s423 = smul.u32 2, %s24
        %s424 = smul.u32 2, %s24
        %s425 = smul.u32 2, %s24
        %s426 = smul.u32 2, %s24
        %s427 = smul.u32 2, %s24
        %p428 = scmp.lt.s32.totalorder %s427, 3
        %s429 = scalar_select %p428, %s427, 3
        %s430 = smul.addr %s429, 2
        %s431 = scalar_lea.vmem %s7, %s430
        %s432 = smul.u32 2, %s24
        %v434 = vld [vmem:[%s0] sm:$0x3]
        %v435 = vpack.c.bf16 %v434, %v434
        %v436 = vld [vmem:[%s1] sm:$0x3]
        %v437 = vpack.c.bf16 %v436, %v436
        %v438 = vld [vmem:[%s357] sm:$0xff]
        %v439 = vld [vmem:[%s357 + $0x8] sm:$0xff]
        %v440 = vld [vmem:[%s357 + $0x10] sm:$0xff]
        %v441 = vld [vmem:[%s357 + $0x18] sm:$0xff]
        %v442 = vld [vmem:[%s357 + $0x20] sm:$0xff]
        %v443 = vld [vmem:[%s357 + $0x28] sm:$0xff]
        %v444 = vld [vmem:[%s357 + $0x30] sm:$0xff]
        %v445 = vld [vmem:[%s357 + $0x38] sm:$0xff]
        %v446 = vld [vmem:[%s415] sm:$0xff]
        %v447 = vld [vmem:[%s415 + $0x8] sm:$0xff]
        %v448 = vld [vmem:[%s415 + $0x10] sm:$0x33]
        %v449 = vld [vmem:[%s415 + $0x18] sm:$0x33]
        %v450 = vld [vmem:[%s422] sm:$0xff]
        %v452 = vcombine.high %v450, %v450
        %v454 = vunpack.c.l.s4 1983009808
        %v455 = vunpack.c.0.s8 %v454
        %v456 = vlaneseq
        %v457 = vshrl.u32 %v456, 7
        %v458 = vsub.s32 %v455, %v457
        %v459 = vrot.slane %v450, %v458
        %v461 = vunpack.c.l.s4 1983009808
        %v462 = vunpack.c.0.s8 %v461
        %v463 = vlaneseq
        %v464 = vshrl.u32 %v463, 7
        %v465 = vsub.s32 %v462, %v464
        %v466 = vrot.slane %v452, %v465
        %v467 = vcombine.high %v459, %v459
        %v468 = vcombine.high %v466, %v466
        %vm469 = vcmask 31744
        %v471 = vsel %vm469, %v437, 0
        %vm473 = vcmask 1041408
        %v475 = vsel %vm473, %v459, 0
        %v478 = vsel %vm473, %v467, 0
        %v481 = vsel %vm473, %v466, 0
        %v484 = vsel %vm473, %v468, 0
        %486 = vmatprep.subr.bf16.mxu0 %v478
        %487 = vmatpush1.bf16.msra.mxu0 %v475
        %488 = vmatprep.subr.bf16.mxu0 0
        %489 = vmatpush1.bf16.msra.mxu0 0
        %490 = vmatprep.subr.bf16.mxu0 0
        %491 = vmatpush1.bf16.msra.mxu0 0
        %492 = vmatprep.subr.bf16.mxu0 0
        %493 = vmatpush1.bf16.msra.mxu0 0
        %494 = vmatprep.subr.bf16.mxu0 0
        %495 = vmatpush1.bf16.msra.mxu0 0
        %496 = vmatprep.subr.bf16.mxu0 0
        %497 = vmatpush1.bf16.msra.mxu0 0
        %498 = vmatprep.subr.bf16.mxu0 0
        %499 = vmatpush1.bf16.msra.mxu0 0
        %500 = vmatprep.subr.bf16.mxu0 0
        %501 = vmatpush1.bf16.msra.mxu0 0
        %502 = vmatprep.subr.bf16.mxu0 0
        %503 = vmatpush1.bf16.msra.mxu0 0
        %504 = vmatprep.subr.bf16.mxu0 0
        %505 = vmatpush1.bf16.msra.mxu0 0
        %506 = vmatprep.subr.bf16.mxu0 0
        %507 = vmatpush1.bf16.msra.mxu0 0
        %508 = vmatprep.subr.bf16.mxu0 0
        %509 = vmatpush1.bf16.msra.mxu0 0
        %510 = vmatprep.subr.bf16.mxu0 0
        %511 = vmatpush1.bf16.msra.mxu0 0
        %512 = vmatprep.subr.bf16.mxu0 0
        %513 = vmatpush1.bf16.msra.mxu0 0
        %514 = vmatprep.subr.bf16.mxu0 0
        %515 = vmatpush1.bf16.msra.mxu0 0
        %516 = vmatprep.subr.bf16.mxu0 0
        %517 = vmatpush1.bf16.msra.mxu0 0
        %518 = vmatprep.mubr.bf16.mxu0 0
        %519 = vmatmul.mubr.bf16.gmra.mrb[0].mxu0 %v471
        %v520 = vpop.f32.mrb[0].mxu0
        %v521 = vadd.f32 0.0, %v520
        %v522 = vpop.f32.mrb[0].mxu0
        %v523 = vadd.f32 0.0, %v522
        %v524 = vpop.f32.mrb[0].mxu0
        %v525 = vpop.f32.mrb[0].mxu0
        %526 = vdwg.mxu0
        %527 = vmatprep.subr.bf16.mxu0 %v484
        %528 = vmatpush1.bf16.msra.mxu0 %v481
        %529 = vmatprep.subr.bf16.mxu0 0
        %530 = vmatpush1.bf16.msra.mxu0 0
        %531 = vmatprep.subr.bf16.mxu0 0
        %532 = vmatpush1.bf16.msra.mxu0 0
        %533 = vmatprep.subr.bf16.mxu0 0
        %534 = vmatpush1.bf16.msra.mxu0 0
        %535 = vmatprep.subr.bf16.mxu0 0
        %536 = vmatpush1.bf16.msra.mxu0 0
        %537 = vmatprep.subr.bf16.mxu0 0
        %538 = vmatpush1.bf16.msra.mxu0 0
        %539 = vmatprep.subr.bf16.mxu0 0
        %540 = vmatpush1.bf16.msra.mxu0 0
        %541 = vmatprep.subr.bf16.mxu0 0
        %542 = vmatpush1.bf16.msra.mxu0 0
        %543 = vmatprep.subr.bf16.mxu0 0
        %544 = vmatpush1.bf16.msra.mxu0 0
        %545 = vmatprep.subr.bf16.mxu0 0
        %546 = vmatpush1.bf16.msra.mxu0 0
        %547 = vmatprep.subr.bf16.mxu0 0
        %548 = vmatpush1.bf16.msra.mxu0 0
        %549 = vmatprep.subr.bf16.mxu0 0
        %550 = vmatpush1.bf16.msra.mxu0 0
        %551 = vmatprep.subr.bf16.mxu0 0
        %552 = vmatpush1.bf16.msra.mxu0 0
        %553 = vmatprep.subr.bf16.mxu0 0
        %554 = vmatpush1.bf16.msra.mxu0 0
        %555 = vmatprep.subr.bf16.mxu0 0
        %556 = vmatpush1.bf16.msra.mxu0 0
        %557 = vmatprep.subr.bf16.mxu0 0
        %558 = vmatpush1.bf16.msra.mxu0 0
        %559 = vmatprep.mubr.bf16.mxu0 0
        %560 = vmatmul.mubr.bf16.gmra.mrb[0].mxu0 %v471
        %v561 = vpop.f32.mrb[0].mxu0
        %v562 = vadd.f32 0.0, %v561
        %v563 = vpop.f32.mrb[0].mxu0
        %v564 = vadd.f32 0.0, %v563
        %v565 = vpop.f32.mrb[0].mxu0
        %v566 = vpop.f32.mrb[0].mxu0
        %567 = vdwg.mxu0
        %v572 = vunpack.c.l.b16 %v446
        %v573 = vunpack.c.h.b16 %v446
        %v574 = vunpack.c.l.b16 %v447
        %v575 = vunpack.c.h.b16 %v447
        %v576 = vunpack.c.l.b16 %v448
        %v577 = vunpack.c.h.b16 %v448
        %v578 = vunpack.c.l.b16 %v449
        %v579 = vunpack.c.h.b16 %v449
        %v580 = vpack.c.b16 %v576, %v572
        %v581 = vpack.c.b16 %v577, %v573
        %v582 = vpack.c.b16 %v578, %v574
        %v583 = vpack.c.b16 %v579, %v575
        %vm584 = vcmask 97280
        %v586 = vsel %vm584, %v435, 0
        %vm588 = vcmask 1045504
        %v590 = vsel %vm588, %v580, 0
        %v593 = vsel %vm588, %v581, 0
        %v596 = vsel %vm588, %v582, 0
        %v599 = vsel %vm588, %v583, 0
        %601 = vmatprep.subr.bf16.mxu0 %v593
        %602 = vmatpush1.bf16.msra.mxu0 %v590
        %603 = vmatprep.subr.bf16.mxu0 0
        %604 = vmatpush1.bf16.msra.mxu0 0
        %605 = vmatprep.subr.bf16.mxu0 0
        %606 = vmatpush1.bf16.msra.mxu0 0
        %607 = vmatprep.subr.bf16.mxu0 0
        %608 = vmatpush1.bf16.msra.mxu0 0
        %609 = vmatprep.subr.bf16.mxu0 0
        %610 = vmatpush1.bf16.msra.mxu0 0
        %611 = vmatprep.subr.bf16.mxu0 0
        %612 = vmatpush1.bf16.msra.mxu0 0
        %613 = vmatprep.subr.bf16.mxu0 0
        %614 = vmatpush1.bf16.msra.mxu0 0
        %615 = vmatprep.subr.bf16.mxu0 0
        %616 = vmatpush1.bf16.msra.mxu0 0
        %617 = vmatprep.subr.bf16.mxu0 0
        %618 = vmatpush1.bf16.msra.mxu0 0
        %619 = vmatprep.subr.bf16.mxu0 0
        %620 = vmatpush1.bf16.msra.mxu0 0
        %621 = vmatprep.subr.bf16.mxu0 0
        %622 = vmatpush1.bf16.msra.mxu0 0
        %623 = vmatprep.subr.bf16.mxu0 0
        %624 = vmatpush1.bf16.msra.mxu0 0
        %625 = vmatprep.subr.bf16.mxu0 0
        %626 = vmatpush1.bf16.msra.mxu0 0
        %627 = vmatprep.subr.bf16.mxu0 0
        %628 = vmatpush1.bf16.msra.mxu0 0
        %629 = vmatprep.subr.bf16.mxu0 0
        %630 = vmatpush1.bf16.msra.mxu0 0
        %631 = vmatprep.subr.bf16.mxu0 0
        %632 = vmatpush1.bf16.msra.mxu0 0
        %633 = vmatprep.mubr.bf16.mxu0 0
        %634 = vmatmul.mubr.bf16.gmra.mrb[0].mxu0 %v586
        %v635 = vpop.f32.mrb[0].mxu0
        %v636 = vadd.f32 %v521, %v635
        %v637 = vpop.f32.mrb[0].mxu0
        %v638 = vadd.f32 %v523, %v637
        %v639 = vpop.f32.mrb[0].mxu0
        %v640 = vpop.f32.mrb[0].mxu0
        %641 = vdwg.mxu0
        %642 = vmatprep.subr.bf16.mxu0 %v599
        %643 = vmatpush1.bf16.msra.mxu0 %v596
        %644 = vmatprep.subr.bf16.mxu0 0
        %645 = vmatpush1.bf16.msra.mxu0 0
        %646 = vmatprep.subr.bf16.mxu0 0
        %647 = vmatpush1.bf16.msra.mxu0 0
        %648 = vmatprep.subr.bf16.mxu0 0
        %649 = vmatpush1.bf16.msra.mxu0 0
        %650 = vmatprep.subr.bf16.mxu0 0
        %651 = vmatpush1.bf16.msra.mxu0 0
        %652 = vmatprep.subr.bf16.mxu0 0
        %653 = vmatpush1.bf16.msra.mxu0 0
        %654 = vmatprep.subr.bf16.mxu0 0
        %655 = vmatpush1.bf16.msra.mxu0 0
        %656 = vmatprep.subr.bf16.mxu0 0
        %657 = vmatpush1.bf16.msra.mxu0 0
        %658 = vmatprep.subr.bf16.mxu0 0
        %659 = vmatpush1.bf16.msra.mxu0 0
        %660 = vmatprep.subr.bf16.mxu0 0
        %661 = vmatpush1.bf16.msra.mxu0 0
        %662 = vmatprep.subr.bf16.mxu0 0
        %663 = vmatpush1.bf16.msra.mxu0 0
        %664 = vmatprep.subr.bf16.mxu0 0
        %665 = vmatpush1.bf16.msra.mxu0 0
        %666 = vmatprep.subr.bf16.mxu0 0
        %667 = vmatpush1.bf16.msra.mxu0 0
        %668 = vmatprep.subr.bf16.mxu0 0
        %669 = vmatpush1.bf16.msra.mxu0 0
        %670 = vmatprep.subr.bf16.mxu0 0
        %671 = vmatpush1.bf16.msra.mxu0 0
        %672 = vmatprep.subr.bf16.mxu0 0
        %673 = vmatpush1.bf16.msra.mxu0 0
        %674 = vmatprep.mubr.bf16.mxu0 0
        %675 = vmatmul.mubr.bf16.gmra.mrb[0].mxu0 %v586
        %v676 = vpop.f32.mrb[0].mxu0
        %v677 = vadd.f32 %v562, %v676
        %v678 = vpop.f32.mrb[0].mxu0
        %v679 = vadd.f32 %v564, %v678
        %v680 = vpop.f32.mrb[0].mxu0
        %v681 = vpop.f32.mrb[0].mxu0
        %682 = vdwg.mxu0
        %v683 = vlaneseq
        %v684 = vshrl.u32 %v683, 7
        %v685 = vsub.s32 0, %v684
        %v686 = vrot.slane %v438, %v685
        %v687 = vlaneseq
        %v688 = vshrl.u32 %v687, 7
        %v689 = vsub.s32 0, %v688
        %v690 = vrot.slane %v439, %v689
        %v691 = vlaneseq
        %v692 = vshrl.u32 %v691, 7
        %v693 = vsub.s32 0, %v692
        %v694 = vrot.slane %v440, %v693
        %v695 = vlaneseq
        %v696 = vshrl.u32 %v695, 7
        %v697 = vsub.s32 0, %v696
        %v698 = vrot.slane %v441, %v697
        %v699 = vadd.f32 %v636, %v686
        %v700 = vadd.f32 %v638, %v690
        %v701 = vadd.f32 %v677, %v694
        %v702 = vadd.f32 %v679, %v698
        %v703 = vsel %vm473, %v699, 0.0
        %v704 = vsel %vm473, %v700, 0.0
        %v705 = vadd.f32 %v703, %v704
        %v706 = vsel %vm473, %v701, 0.0
        %v707 = vadd.f32 %v705, %v706
        %v708 = vsel %vm473, %v702, 0.0
        %v709 = vadd.f32 %v707, %v708
        %710 = vadd.xlane.f32.xlu0 %v709
        %v711 = vpop.xlane.xlu0 %710
        %v712 = vrcp.pop 512.0
        %v713 = vmul.f32 %v711, %v712
        %v714 = vsub.f32 %v699, %v713
        %v715 = vsub.f32 %v700, %v713
        %v716 = vsub.f32 %v701, %v713
        %v717 = vsub.f32 %v702, %v713
        %v718 = vmul.f32 %v714, %v714
        %v719 = vmul.f32 %v715, %v715
        %v720 = vmul.f32 %v716, %v716
        %v721 = vmul.f32 %v717, %v717
        %v722 = vsel %vm473, %v718, 0.0
        %v723 = vsel %vm473, %v719, 0.0
        %v724 = vadd.f32 %v722, %v723
        %v725 = vsel %vm473, %v720, 0.0
        %v726 = vadd.f32 %v724, %v725
        %v727 = vsel %vm473, %v721, 0.0
        %v728 = vadd.f32 %v726, %v727
        %729 = vadd.xlane.f32.xlu0 %v728
        %v730 = vpop.xlane.xlu0 %729
        %v731 = vrcp.pop 511.0
        %v732 = vmul.f32 %v730, %v731
        %v733 = vrsqrt.pop %v732
        %v734 = vmul.f32 %v732, %v733
        %vm735 = vcmp.eq.f32.partialorder %v732, inf
        %v736 = vsel %vm735, %v732, %v734
        %vm737 = vcmp.eq.f32.partialorder %v732, 0.0
        %v738 = vand.u32 %v732, 2147483648
        %v739 = vsel %vm737, %v738, %v736
        %v740 = vadd.f32 %v739, 1e-06
        %v741 = vrcp.pop %v740
        %v742 = vmul.f32 %v714, %v741
        %v743 = vmul.f32 %v715, %v741
        %v744 = vmul.f32 %v716, %v741
        %v745 = vmul.f32 %v717, %v741
        %v746 = vlaneseq
        %v747 = vshrl.u32 %v746, 7
        %v748 = vsub.s32 1, %v747
        %v749 = vrot.slane %v438, %v748
        %v750 = vlaneseq
        %v751 = vshrl.u32 %v750, 7
        %v752 = vsub.s32 1, %v751
        %v753 = vrot.slane %v439, %v752
        %v754 = vlaneseq
        %v755 = vshrl.u32 %v754, 7
        %v756 = vsub.s32 1, %v755
        %v757 = vrot.slane %v440, %v756
        %v758 = vlaneseq
        %v759 = vshrl.u32 %v758, 7
        %v760 = vsub.s32 1, %v759
        %v761 = vrot.slane %v441, %v760
        %v762 = vmul.f32 %v749, %v742
        %v763 = vmul.f32 %v753, %v743
        %v764 = vmul.f32 %v757, %v744
        %v765 = vmul.f32 %v761, %v745
        %v766 = vlaneseq
        %v767 = vshrl.u32 %v766, 7
        %v768 = vsub.s32 2, %v767
        %v769 = vrot.slane %v438, %v768
        %v770 = vlaneseq
        %v771 = vshrl.u32 %v770, 7
        %v772 = vsub.s32 2, %v771
        %v773 = vrot.slane %v439, %v772
        %v774 = vlaneseq
        %v775 = vshrl.u32 %v774, 7
        %v776 = vsub.s32 2, %v775
        %v777 = vrot.slane %v440, %v776
        %v778 = vlaneseq
        %v779 = vshrl.u32 %v778, 7
        %v780 = vsub.s32 2, %v779
        %v781 = vrot.slane %v441, %v780
        %v782 = vadd.f32 %v762, %v769
        %v783 = vadd.f32 %v763, %v773
        %v784 = vadd.f32 %v764, %v777
        %v785 = vadd.f32 %v765, %v781
        %v786 = vmul.f32 %v782, 0.01
        %v787 = vmul.f32 %v783, 0.01
        %v788 = vmul.f32 %v784, 0.01
        %v789 = vmul.f32 %v785, 0.01
        %v790 = vmax.f32 %v782, %v786
        %v791 = vmax.f32 %v783, %v787
        %v792 = vmax.f32 %v784, %v788
        %v793 = vmax.f32 %v785, %v789
        %v794 = vld [vmem:[%s339] sm:$0xff]
        %v795 = vld [vmem:[%s339 + $0x8] sm:$0xff]
        %v796 = vld [vmem:[%s339 + $0x10] sm:$0xff]
        %v797 = vld [vmem:[%s339 + $0x18] sm:$0xff]
        %v798 = vld [vmem:[%s339 + $0x20] sm:$0xff]
        %v799 = vld [vmem:[%s339 + $0x28] sm:$0xff]
        %v800 = vld [vmem:[%s339 + $0x30] sm:$0xff]
        %v801 = vld [vmem:[%s339 + $0x38] sm:$0xff]
        %v802 = vld [vmem:[%s339 + $0x40] sm:$0xff]
        %v803 = vld [vmem:[%s339 + $0x48] sm:$0xff]
        %v804 = vld [vmem:[%s339 + $0x50] sm:$0xff]
        %v805 = vld [vmem:[%s339 + $0x58] sm:$0xff]
        %v806 = vld [vmem:[%s339 + $0x60] sm:$0xff]
        %v807 = vld [vmem:[%s339 + $0x68] sm:$0xff]
        %v808 = vld [vmem:[%s339 + $0x70] sm:$0xff]
        %v809 = vld [vmem:[%s339 + $0x78] sm:$0xff]
        %v810 = vld [vmem:[%s339 + $0x80] sm:$0xff]
        %v811 = vld [vmem:[%s339 + $0x88] sm:$0xff]
        %v812 = vld [vmem:[%s339 + $0x90] sm:$0xff]
        %v813 = vld [vmem:[%s339 + $0x98] sm:$0xff]
        %v814 = vld [vmem:[%s339 + $0xa0] sm:$0xff]
        %v815 = vld [vmem:[%s339 + $0xa8] sm:$0xff]
        %v816 = vld [vmem:[%s339 + $0xb0] sm:$0xff]
        %v817 = vld [vmem:[%s339 + $0xb8] sm:$0xff]
        %v818 = vld [vmem:[%s339 + $0xc0] sm:$0xff]
        %v819 = vld [vmem:[%s339 + $0xc8] sm:$0xff]
        %v820 = vld [vmem:[%s339 + $0xd0] sm:$0xff]
        %v821 = vld [vmem:[%s339 + $0xd8] sm:$0xff]
        %v822 = vld [vmem:[%s339 + $0xe0] sm:$0xff]
        %v823 = vld [vmem:[%s339 + $0xe8] sm:$0xff]
        %v824 = vld [vmem:[%s339 + $0xf0] sm:$0xff]
        %v825 = vld [vmem:[%s339 + $0xf8] sm:$0xff]
        %v826 = vld [vmem:[%s339 + $0x100] sm:$0xff]
        %v827 = vld [vmem:[%s339 + $0x108] sm:$0xff]
        %v828 = vld [vmem:[%s339 + $0x110] sm:$0xff]
        %v829 = vld [vmem:[%s339 + $0x118] sm:$0xff]
        %v830 = vld [vmem:[%s339 + $0x120] sm:$0xff]
        %v831 = vld [vmem:[%s339 + $0x128] sm:$0xff]
        %v832 = vld [vmem:[%s339 + $0x130] sm:$0xff]
        %v833 = vld [vmem:[%s339 + $0x138] sm:$0xff]
        %v834 = vld [vmem:[%s339 + $0x140] sm:$0xff]
        %v835 = vld [vmem:[%s339 + $0x148] sm:$0xff]
        %v836 = vld [vmem:[%s339 + $0x150] sm:$0xff]
        %v837 = vld [vmem:[%s339 + $0x158] sm:$0xff]
        %v838 = vld [vmem:[%s339 + $0x160] sm:$0xff]
        %v839 = vld [vmem:[%s339 + $0x168] sm:$0xff]
        %v840 = vld [vmem:[%s339 + $0x170] sm:$0xff]
        %v841 = vld [vmem:[%s339 + $0x178] sm:$0xff]
        %v842 = vld [vmem:[%s339 + $0x180] sm:$0xff]
        %v843 = vld [vmem:[%s339 + $0x188] sm:$0xff]
        %v844 = vld [vmem:[%s339 + $0x190] sm:$0xff]
        %v845 = vld [vmem:[%s339 + $0x198] sm:$0xff]
        %v846 = vld [vmem:[%s339 + $0x1a0] sm:$0xff]
        %v847 = vld [vmem:[%s339 + $0x1a8] sm:$0xff]
        %v848 = vld [vmem:[%s339 + $0x1b0] sm:$0xff]
        %v849 = vld [vmem:[%s339 + $0x1b8] sm:$0xff]
        %v850 = vld [vmem:[%s339 + $0x1c0] sm:$0xff]
        %v851 = vld [vmem:[%s339 + $0x1c8] sm:$0xff]
        %v852 = vld [vmem:[%s339 + $0x1d0] sm:$0xff]
        %v853 = vld [vmem:[%s339 + $0x1d8] sm:$0xff]
        %v854 = vld [vmem:[%s339 + $0x1e0] sm:$0xff]
        %v855 = vld [vmem:[%s339 + $0x1e8] sm:$0xff]
        %v856 = vld [vmem:[%s339 + $0x1f0] sm:$0xff]
        %v857 = vld [vmem:[%s339 + $0x1f8] sm:$0xff]
        %v858 = vunpack.c.l.s8.bf16 %v794
        %v859 = vunpack.c.l.s8.bf16 %v795
        %v860 = vunpack.c.l.s8.bf16 %v796
        %v861 = vunpack.c.l.s8.bf16 %v797
        %v862 = vunpack.c.h.s8.bf16 %v794
        %v863 = vunpack.c.h.s8.bf16 %v795
        %v864 = vunpack.c.h.s8.bf16 %v796
        %v865 = vunpack.c.h.s8.bf16 %v797
        %v866 = vunpack.c.l.s8.bf16 %v798
        %v867 = vunpack.c.l.s8.bf16 %v799
        %v868 = vunpack.c.l.s8.bf16 %v800
        %v869 = vunpack.c.l.s8.bf16 %v801
        %v870 = vunpack.c.h.s8.bf16 %v798
        %v871 = vunpack.c.h.s8.bf16 %v799
        %v872 = vunpack.c.h.s8.bf16 %v800
        %v873 = vunpack.c.h.s8.bf16 %v801
        %v874 = vunpack.c.l.s8.bf16 %v802
        %v875 = vunpack.c.l.s8.bf16 %v803
        %v876 = vunpack.c.l.s8.bf16 %v804
        %v877 = vunpack.c.l.s8.bf16 %v805
        %v878 = vunpack.c.h.s8.bf16 %v802
        %v879 = vunpack.c.h.s8.bf16 %v803
        %v880 = vunpack.c.h.s8.bf16 %v804
        %v881 = vunpack.c.h.s8.bf16 %v805
        %v882 = vunpack.c.l.s8.bf16 %v806
        %v883 = vunpack.c.l.s8.bf16 %v807
        %v884 = vunpack.c.l.s8.bf16 %v808
        %v885 = vunpack.c.l.s8.bf16 %v809
        %v886 = vunpack.c.h.s8.bf16 %v806
        %v887 = vunpack.c.h.s8.bf16 %v807
        %v888 = vunpack.c.h.s8.bf16 %v808
        %v889 = vunpack.c.h.s8.bf16 %v809
        %v890 = vunpack.c.l.s8.bf16 %v810
        %v891 = vunpack.c.l.s8.bf16 %v811
        %v892 = vunpack.c.l.s8.bf16 %v812
        %v893 = vunpack.c.l.s8.bf16 %v813
        %v894 = vunpack.c.h.s8.bf16 %v810
        %v895 = vunpack.c.h.s8.bf16 %v811
        %v896 = vunpack.c.h.s8.bf16 %v812
        %v897 = vunpack.c.h.s8.bf16 %v813
        %v898 = vunpack.c.l.s8.bf16 %v814
        %v899 = vunpack.c.l.s8.bf16 %v815
        %v900 = vunpack.c.l.s8.bf16 %v816
        %v901 = vunpack.c.l.s8.bf16 %v817
        %v902 = vunpack.c.h.s8.bf16 %v814
        %v903 = vunpack.c.h.s8.bf16 %v815
        %v904 = vunpack.c.h.s8.bf16 %v816
        %v905 = vunpack.c.h.s8.bf16 %v817
        %v906 = vunpack.c.l.s8.bf16 %v818
        %v907 = vunpack.c.l.s8.bf16 %v819
        %v908 = vunpack.c.l.s8.bf16 %v820
        %v909 = vunpack.c.l.s8.bf16 %v821
        %v910 = vunpack.c.h.s8.bf16 %v818
        %v911 = vunpack.c.h.s8.bf16 %v819
        %v912 = vunpack.c.h.s8.bf16 %v820
        %v913 = vunpack.c.h.s8.bf16 %v821
        %v914 = vunpack.c.l.s8.bf16 %v822
        %v915 = vunpack.c.l.s8.bf16 %v823
        %v916 = vunpack.c.l.s8.bf16 %v824
        %v917 = vunpack.c.l.s8.bf16 %v825
        %v918 = vunpack.c.h.s8.bf16 %v822
        %v919 = vunpack.c.h.s8.bf16 %v823
        %v920 = vunpack.c.h.s8.bf16 %v824
        %v921 = vunpack.c.h.s8.bf16 %v825
        %v922 = vunpack.c.l.s8.bf16 %v826
        %v923 = vunpack.c.l.s8.bf16 %v827
        %v924 = vunpack.c.l.s8.bf16 %v828
        %v925 = vunpack.c.l.s8.bf16 %v829
        %v926 = vunpack.c.h.s8.bf16 %v826
        %v927 = vunpack.c.h.s8.bf16 %v827
        %v928 = vunpack.c.h.s8.bf16 %v828
        %v929 = vunpack.c.h.s8.bf16 %v829
        %v930 = vunpack.c.l.s8.bf16 %v830
        %v931 = vunpack.c.l.s8.bf16 %v831
        %v932 = vunpack.c.l.s8.bf16 %v832
        %v933 = vunpack.c.l.s8.bf16 %v833
        %v934 = vunpack.c.h.s8.bf16 %v830
        %v935 = vunpack.c.h.s8.bf16 %v831
        %v936 = vunpack.c.h.s8.bf16 %v832
        %v937 = vunpack.c.h.s8.bf16 %v833
        %v938 = vunpack.c.l.s8.bf16 %v834
        %v939 = vunpack.c.l.s8.bf16 %v835
        %v940 = vunpack.c.l.s8.bf16 %v836
        %v941 = vunpack.c.l.s8.bf16 %v837
        %v942 = vunpack.c.h.s8.bf16 %v834
        %v943 = vunpack.c.h.s8.bf16 %v835
        %v944 = vunpack.c.h.s8.bf16 %v836
        %v945 = vunpack.c.h.s8.bf16 %v837
        %v946 = vunpack.c.l.s8.bf16 %v838
        %v947 = vunpack.c.l.s8.bf16 %v839
        %v948 = vunpack.c.l.s8.bf16 %v840
        %v949 = vunpack.c.l.s8.bf16 %v841
        %v950 = vunpack.c.h.s8.bf16 %v838
        %v951 = vunpack.c.h.s8.bf16 %v839
        %v952 = vunpack.c.h.s8.bf16 %v840
        %v953 = vunpack.c.h.s8.bf16 %v841
        %v954 = vunpack.c.l.s8.bf16 %v842
        %v955 = vunpack.c.l.s8.bf16 %v843
        %v956 = vunpack.c.l.s8.bf16 %v844
        %v957 = vunpack.c.l.s8.bf16 %v845
        %v958 = vunpack.c.h.s8.bf16 %v842
        %v959 = vunpack.c.h.s8.bf16 %v843
        %v960 = vunpack.c.h.s8.bf16 %v844
        %v961 = vunpack.c.h.s8.bf16 %v845
        %v962 = vunpack.c.l.s8.bf16 %v846
        %v963 = vunpack.c.l.s8.bf16 %v847
        %v964 = vunpack.c.l.s8.bf16 %v848
        %v965 = vunpack.c.l.s8.bf16 %v849
        %v966 = vunpack.c.h.s8.bf16 %v846
        %v967 = vunpack.c.h.s8.bf16 %v847
        %v968 = vunpack.c.h.s8.bf16 %v848
        %v969 = vunpack.c.h.s8.bf16 %v849
        %v970 = vunpack.c.l.s8.bf16 %v850
        %v971 = vunpack.c.l.s8.bf16 %v851
        %v972 = vunpack.c.l.s8.bf16 %v852
        %v973 = vunpack.c.l.s8.bf16 %v853
        %v974 = vunpack.c.h.s8.bf16 %v850
        %v975 = vunpack.c.h.s8.bf16 %v851
        %v976 = vunpack.c.h.s8.bf16 %v852
        %v977 = vunpack.c.h.s8.bf16 %v853
        %v978 = vunpack.c.l.s8.bf16 %v854
        %v979 = vunpack.c.l.s8.bf16 %v855
        %v980 = vunpack.c.l.s8.bf16 %v856
        %v981 = vunpack.c.l.s8.bf16 %v857
        %v982 = vunpack.c.h.s8.bf16 %v854
        %v983 = vunpack.c.h.s8.bf16 %v855
        %v984 = vunpack.c.h.s8.bf16 %v856
        %v985 = vunpack.c.h.s8.bf16 %v857
        %v986 = vpack.c.bf16 %v442, %v442
        %v987 = vpack.c.bf16 %v443, %v443
        %v988 = vpack.c.bf16 %v444, %v444
        %v989 = vpack.c.bf16 %v445, %v445
        %v991 = vshrl.u32 %v986, 16
        %v992 = vpack.i.b16 %v991, %v991
        %v994 = vlaneseq
        %v995 = vshrl.u32 %v994, 7
        %v996 = vsub.s32 1, %v995
        %v997 = vrot.slane %v992, %v996
        %v999 = vshrl.u32 %v987, 16
        %v1000 = vpack.i.b16 %v999, %v999
        %v1002 = vlaneseq
        %v1003 = vshrl.u32 %v1002, 7
        %v1004 = vsub.s32 1, %v1003
        %v1005 = vrot.slane %v1000, %v1004
        %v1007 = vshrl.u32 %v988, 16
        %v1008 = vpack.i.b16 %v1007, %v1007
        %v1010 = vlaneseq
        %v1011 = vshrl.u32 %v1010, 7
        %v1012 = vsub.s32 1, %v1011
        %v1013 = vrot.slane %v1008, %v1012
        %v1015 = vshrl.u32 %v989, 16
        %v1016 = vpack.i.b16 %v1015, %v1015
        %v1018 = vlaneseq
        %v1019 = vshrl.u32 %v1018, 7
        %v1020 = vsub.s32 1, %v1019
        %v1021 = vrot.slane %v1016, %v1020
        %v1022 = vmul.bf16 %v858, %v997
        %v1023 = vmul.bf16 %v859, %v1005
        %v1024 = vmul.bf16 %v860, %v1013
        %v1025 = vmul.bf16 %v861, %v1021
        %v1026 = vmul.bf16 %v862, %v997
        %v1027 = vmul.bf16 %v863, %v1005
        %v1028 = vmul.bf16 %v864, %v1013
        %v1029 = vmul.bf16 %v865, %v1021
        %v1030 = vmul.bf16 %v866, %v997
        %v1031 = vmul.bf16 %v867, %v1005
        %v1032 = vmul.bf16 %v868, %v1013
        %v1033 = vmul.bf16 %v869, %v1021
        %v1034 = vmul.bf16 %v870, %v997
        %v1035 = vmul.bf16 %v871, %v1005
        %v1036 = vmul.bf16 %v872, %v1013
        %v1037 = vmul.bf16 %v873, %v1021
        %v1038 = vmul.bf16 %v874, %v997
        %v1039 = vmul.bf16 %v875, %v1005
        %v1040 = vmul.bf16 %v876, %v1013
        %v1041 = vmul.bf16 %v877, %v1021
        %v1042 = vmul.bf16 %v878, %v997
        %v1043 = vmul.bf16 %v879, %v1005
        %v1044 = vmul.bf16 %v880, %v1013
        %v1045 = vmul.bf16 %v881, %v1021
        %v1046 = vmul.bf16 %v882, %v997
        %v1047 = vmul.bf16 %v883, %v1005
        %v1048 = vmul.bf16 %v884, %v1013
        %v1049 = vmul.bf16 %v885, %v1021
        %v1050 = vmul.bf16 %v886, %v997
        %v1051 = vmul.bf16 %v887, %v1005
        %v1052 = vmul.bf16 %v888, %v1013
        %v1053 = vmul.bf16 %v889, %v1021
        %v1054 = vmul.bf16 %v890, %v997
        %v1055 = vmul.bf16 %v891, %v1005
        %v1056 = vmul.bf16 %v892, %v1013
        %v1057 = vmul.bf16 %v893, %v1021
        %v1058 = vmul.bf16 %v894, %v997
        %v1059 = vmul.bf16 %v895, %v1005
        %v1060 = vmul.bf16 %v896, %v1013
        %v1061 = vmul.bf16 %v897, %v1021
        %v1062 = vmul.bf16 %v898, %v997
        %v1063 = vmul.bf16 %v899, %v1005
        %v1064 = vmul.bf16 %v900, %v1013
        %v1065 = vmul.bf16 %v901, %v1021
        %v1066 = vmul.bf16 %v902, %v997
        %v1067 = vmul.bf16 %v903, %v1005
        %v1068 = vmul.bf16 %v904, %v1013
        %v1069 = vmul.bf16 %v905, %v1021
        %v1070 = vmul.bf16 %v906, %v997
        %v1071 = vmul.bf16 %v907, %v1005
        %v1072 = vmul.bf16 %v908, %v1013
        %v1073 = vmul.bf16 %v909, %v1021
        %v1074 = vmul.bf16 %v910, %v997
        %v1075 = vmul.bf16 %v911, %v1005
        %v1076 = vmul.bf16 %v912, %v1013
        %v1077 = vmul.bf16 %v913, %v1021
        %v1078 = vmul.bf16 %v914, %v997
        %v1079 = vmul.bf16 %v915, %v1005
        %v1080 = vmul.bf16 %v916, %v1013
        %v1081 = vmul.bf16 %v917, %v1021
        %v1082 = vmul.bf16 %v918, %v997
        %v1083 = vmul.bf16 %v919, %v1005
        %v1084 = vmul.bf16 %v920, %v1013
        %v1085 = vmul.bf16 %v921, %v1021
        %v1086 = vmul.bf16 %v922, %v997
        %v1087 = vmul.bf16 %v923, %v1005
        %v1088 = vmul.bf16 %v924, %v1013
        %v1089 = vmul.bf16 %v925, %v1021
        %v1090 = vmul.bf16 %v926, %v997
        %v1091 = vmul.bf16 %v927, %v1005
        %v1092 = vmul.bf16 %v928, %v1013
        %v1093 = vmul.bf16 %v929, %v1021
        %v1094 = vmul.bf16 %v930, %v997
        %v1095 = vmul.bf16 %v931, %v1005
        %v1096 = vmul.bf16 %v932, %v1013
        %v1097 = vmul.bf16 %v933, %v1021
        %v1098 = vmul.bf16 %v934, %v997
        %v1099 = vmul.bf16 %v935, %v1005
        %v1100 = vmul.bf16 %v936, %v1013
        %v1101 = vmul.bf16 %v937, %v1021
        %v1102 = vmul.bf16 %v938, %v997
        %v1103 = vmul.bf16 %v939, %v1005
        %v1104 = vmul.bf16 %v940, %v1013
        %v1105 = vmul.bf16 %v941, %v1021
        %v1106 = vmul.bf16 %v942, %v997
        %v1107 = vmul.bf16 %v943, %v1005
        %v1108 = vmul.bf16 %v944, %v1013
        %v1109 = vmul.bf16 %v945, %v1021
        %v1110 = vmul.bf16 %v946, %v997
        %v1111 = vmul.bf16 %v947, %v1005
        %v1112 = vmul.bf16 %v948, %v1013
        %v1113 = vmul.bf16 %v949, %v1021
        %v1114 = vmul.bf16 %v950, %v997
        %v1115 = vmul.bf16 %v951, %v1005
        %v1116 = vmul.bf16 %v952, %v1013
        %v1117 = vmul.bf16 %v953, %v1021
        %v1118 = vmul.bf16 %v954, %v997
        %v1119 = vmul.bf16 %v955, %v1005
        %v1120 = vmul.bf16 %v956, %v1013
        %v1121 = vmul.bf16 %v957, %v1021
        %v1122 = vmul.bf16 %v958, %v997
        %v1123 = vmul.bf16 %v959, %v1005
        %v1124 = vmul.bf16 %v960, %v1013
        %v1125 = vmul.bf16 %v961, %v1021
        %v1126 = vmul.bf16 %v962, %v997
        %v1127 = vmul.bf16 %v963, %v1005
        %v1128 = vmul.bf16 %v964, %v1013
        %v1129 = vmul.bf16 %v965, %v1021
        %v1130 = vmul.bf16 %v966, %v997
        %v1131 = vmul.bf16 %v967, %v1005
        %v1132 = vmul.bf16 %v968, %v1013
        %v1133 = vmul.bf16 %v969, %v1021
        %v1134 = vmul.bf16 %v970, %v997
        %v1135 = vmul.bf16 %v971, %v1005
        %v1136 = vmul.bf16 %v972, %v1013
        %v1137 = vmul.bf16 %v973, %v1021
        %v1138 = vmul.bf16 %v974, %v997
        %v1139 = vmul.bf16 %v975, %v1005
        %v1140 = vmul.bf16 %v976, %v1013
        %v1141 = vmul.bf16 %v977, %v1021
        %v1142 = vmul.bf16 %v978, %v997
        %v1143 = vmul.bf16 %v979, %v1005
        %v1144 = vmul.bf16 %v980, %v1013
        %v1145 = vmul.bf16 %v981, %v1021
        %v1146 = vmul.bf16 %v982, %v997
        %v1147 = vmul.bf16 %v983, %v1005
        %v1148 = vmul.bf16 %v984, %v1013
        %v1149 = vmul.bf16 %v985, %v1021
        %v1150 = vpack.c.bf16 %v790, %v790
        %v1151 = vpack.c.bf16 %v791, %v791
        %v1152 = vpack.c.bf16 %v792, %v792
        %v1153 = vpack.c.bf16 %v793, %v793
        %v1154 = vlaneseq
        %v1155 = vshrl.u32 %v1154, 7
        %v1156 = vsub.s32 3, %v1155
        %v1157 = vrot.slane %v438, %v1156
        %v1158 = vlaneseq
        %v1159 = vshrl.u32 %v1158, 7
        %v1160 = vsub.s32 3, %v1159
        %v1161 = vrot.slane %v439, %v1160
        %v1162 = vlaneseq
        %v1163 = vshrl.u32 %v1162, 7
        %v1164 = vsub.s32 3, %v1163
        %v1165 = vrot.slane %v440, %v1164
        %v1166 = vlaneseq
        %v1167 = vshrl.u32 %v1166, 7
        %v1168 = vsub.s32 3, %v1167
        %v1169 = vrot.slane %v441, %v1168
        %1170 = vmatprep.subr.bf16.mxu0 %v1023
        %1171 = vmatpush1.bf16.msra.mxu0 %v1022
        %1172 = vmatprep.subr.bf16.mxu0 %v1027
        %1173 = vmatpush1.bf16.msra.mxu0 %v1026
        %1174 = vmatprep.subr.bf16.mxu0 %v1031
        %1175 = vmatpush1.bf16.msra.mxu0 %v1030
        %1176 = vmatprep.subr.bf16.mxu0 %v1035
        %1177 = vmatpush1.bf16.msra.mxu0 %v1034
        %1178 = vmatprep.subr.bf16.mxu0 %v1039
        %1179 = vmatpush1.bf16.msra.mxu0 %v1038
        %1180 = vmatprep.subr.bf16.mxu0 %v1043
        %1181 = vmatpush1.bf16.msra.mxu0 %v1042
        %1182 = vmatprep.subr.bf16.mxu0 %v1047
        %1183 = vmatpush1.bf16.msra.mxu0 %v1046
        %1184 = vmatprep.subr.bf16.mxu0 %v1051
        %1185 = vmatpush1.bf16.msra.mxu0 %v1050
        %1186 = vmatprep.subr.bf16.mxu0 %v1055
        %1187 = vmatpush1.bf16.msra.mxu0 %v1054
        %1188 = vmatprep.subr.bf16.mxu0 %v1059
        %1189 = vmatpush1.bf16.msra.mxu0 %v1058
        %1190 = vmatprep.subr.bf16.mxu0 %v1063
        %1191 = vmatpush1.bf16.msra.mxu0 %v1062
        %1192 = vmatprep.subr.bf16.mxu0 %v1067
        %1193 = vmatpush1.bf16.msra.mxu0 %v1066
        %1194 = vmatprep.subr.bf16.mxu0 %v1071
        %1195 = vmatpush1.bf16.msra.mxu0 %v1070
        %1196 = vmatprep.subr.bf16.mxu0 %v1075
        %1197 = vmatpush1.bf16.msra.mxu0 %v1074
        %1198 = vmatprep.subr.bf16.mxu0 %v1079
        %1199 = vmatpush1.bf16.msra.mxu0 %v1078
        %1200 = vmatprep.subr.bf16.mxu0 %v1083
        %1201 = vmatpush1.bf16.msra.mxu0 %v1082
        %1202 = vmatprep.mubr.bf16.mxu0 %v1151
        %1203 = vmatmul.mubr.bf16.gmra.mrb[0].mxu0 %v1150
        %v1204 = vpop.f32.mrb[0].mxu0
        %v1205 = vadd.f32 %v1157, %v1204
        %v1206 = vpop.f32.mrb[0].mxu0
        %v1207 = vadd.f32 %v1161, %v1206
        %v1208 = vpop.f32.mrb[0].mxu0
        %v1209 = vpop.f32.mrb[0].mxu0
        %1210 = vdwg.mxu0
        %1211 = vmatprep.subr.bf16.mxu0 %v1087
        %1212 = vmatpush1.bf16.msra.mxu0 %v1086
        %1213 = vmatprep.subr.bf16.mxu0 %v1091
        %1214 = vmatpush1.bf16.msra.mxu0 %v1090
        %1215 = vmatprep.subr.bf16.mxu0 %v1095
        %1216 = vmatpush1.bf16.msra.mxu0 %v1094
        %1217 = vmatprep.subr.bf16.mxu0 %v1099
        %1218 = vmatpush1.bf16.msra.mxu0 %v1098
        %1219 = vmatprep.subr.bf16.mxu0 %v1103
        %1220 = vmatpush1.bf16.msra.mxu0 %v1102
        %1221 = vmatprep.subr.bf16.mxu0 %v1107
        %1222 = vmatpush1.bf16.msra.mxu0 %v1106
        %1223 = vmatprep.subr.bf16.mxu0 %v1111
        %1224 = vmatpush1.bf16.msra.mxu0 %v1110
        %1225 = vmatprep.subr.bf16.mxu0 %v1115
        %1226 = vmatpush1.bf16.msra.mxu0 %v1114
        %1227 = vmatprep.subr.bf16.mxu0 %v1119
        %1228 = vmatpush1.bf16.msra.mxu0 %v1118
        %1229 = vmatprep.subr.bf16.mxu0 %v1123
        %1230 = vmatpush1.bf16.msra.mxu0 %v1122
        %1231 = vmatprep.subr.bf16.mxu0 %v1127
        %1232 = vmatpush1.bf16.msra.mxu0 %v1126
        %1233 = vmatprep.subr.bf16.mxu0 %v1131
        %1234 = vmatpush1.bf16.msra.mxu0 %v1130
        %1235 = vmatprep.subr.bf16.mxu0 %v1135
        %1236 = vmatpush1.bf16.msra.mxu0 %v1134
        %1237 = vmatprep.subr.bf16.mxu0 %v1139
        %1238 = vmatpush1.bf16.msra.mxu0 %v1138
        %1239 = vmatprep.subr.bf16.mxu0 %v1143
        %1240 = vmatpush1.bf16.msra.mxu0 %v1142
        %1241 = vmatprep.subr.bf16.mxu0 %v1147
        %1242 = vmatpush1.bf16.msra.mxu0 %v1146
        %1243 = vmatprep.mubr.bf16.mxu0 %v1153
        %1244 = vmatmul.mubr.bf16.gmra.mrb[0].mxu0 %v1152
        %v1245 = vpop.f32.mrb[0].mxu0
        %v1246 = vadd.f32 %v1205, %v1245
        %v1247 = vpop.f32.mrb[0].mxu0
        %v1248 = vadd.f32 %v1207, %v1247
        %v1249 = vpop.f32.mrb[0].mxu0
        %v1250 = vpop.f32.mrb[0].mxu0
        %1251 = vdwg.mxu0
        %1252 = vmatprep.subr.bf16.mxu0 %v1025
        %1253 = vmatpush1.bf16.msra.mxu0 %v1024
        %1254 = vmatprep.subr.bf16.mxu0 %v1029
        %1255 = vmatpush1.bf16.msra.mxu0 %v1028
        %1256 = vmatprep.subr.bf16.mxu0 %v1033
        %1257 = vmatpush1.bf16.msra.mxu0 %v1032
        %1258 = vmatprep.subr.bf16.mxu0 %v1037
        %1259 = vmatpush1.bf16.msra.mxu0 %v1036
        %1260 = vmatprep.subr.bf16.mxu0 %v1041
        %1261 = vmatpush1.bf16.msra.mxu0 %v1040
        %1262 = vmatprep.subr.bf16.mxu0 %v1045
        %1263 = vmatpush1.bf16.msra.mxu0 %v1044
        %1264 = vmatprep.subr.bf16.mxu0 %v1049
        %1265 = vmatpush1.bf16.msra.mxu0 %v1048
        %1266 = vmatprep.subr.bf16.mxu0 %v1053
        %1267 = vmatpush1.bf16.msra.mxu0 %v1052
        %1268 = vmatprep.subr.bf16.mxu0 %v1057
        %1269 = vmatpush1.bf16.msra.mxu0 %v1056
        %1270 = vmatprep.subr.bf16.mxu0 %v1061
        %1271 = vmatpush1.bf16.msra.mxu0 %v1060
        %1272 = vmatprep.subr.bf16.mxu0 %v1065
        %1273 = vmatpush1.bf16.msra.mxu0 %v1064
        %1274 = vmatprep.subr.bf16.mxu0 %v1069
        %1275 = vmatpush1.bf16.msra.mxu0 %v1068
        %1276 = vmatprep.subr.bf16.mxu0 %v1073
        %1277 = vmatpush1.bf16.msra.mxu0 %v1072
        %1278 = vmatprep.subr.bf16.mxu0 %v1077
        %1279 = vmatpush1.bf16.msra.mxu0 %v1076
        %1280 = vmatprep.subr.bf16.mxu0 %v1081
        %1281 = vmatpush1.bf16.msra.mxu0 %v1080
        %1282 = vmatprep.subr.bf16.mxu0 %v1085
        %1283 = vmatpush1.bf16.msra.mxu0 %v1084
        %1284 = vmatprep.mubr.bf16.mxu0 %v1151
        %1285 = vmatmul.mubr.bf16.gmra.mrb[0].mxu0 %v1150
        %v1286 = vpop.f32.mrb[0].mxu0
        %v1287 = vadd.f32 %v1165, %v1286
        %v1288 = vpop.f32.mrb[0].mxu0
        %v1289 = vadd.f32 %v1169, %v1288
        %v1290 = vpop.f32.mrb[0].mxu0
        %v1291 = vpop.f32.mrb[0].mxu0
        %1292 = vdwg.mxu0
        %1293 = vmatprep.subr.bf16.mxu0 %v1089
        %1294 = vmatpush1.bf16.msra.mxu0 %v1088
        %1295 = vmatprep.subr.bf16.mxu0 %v1093
        %1296 = vmatpush1.bf16.msra.mxu0 %v1092
        %1297 = vmatprep.subr.bf16.mxu0 %v1097
        %1298 = vmatpush1.bf16.msra.mxu0 %v1096
        %1299 = vmatprep.subr.bf16.mxu0 %v1101
        %1300 = vmatpush1.bf16.msra.mxu0 %v1100
        %1301 = vmatprep.subr.bf16.mxu0 %v1105
        %1302 = vmatpush1.bf16.msra.mxu0 %v1104
        %1303 = vmatprep.subr.bf16.mxu0 %v1109
        %1304 = vmatpush1.bf16.msra.mxu0 %v1108
        %1305 = vmatprep.subr.bf16.mxu0 %v1113
        %1306 = vmatpush1.bf16.msra.mxu0 %v1112
        %1307 = vmatprep.subr.bf16.mxu0 %v1117
        %1308 = vmatpush1.bf16.msra.mxu0 %v1116
        %1309 = vmatprep.subr.bf16.mxu0 %v1121
        %1310 = vmatpush1.bf16.msra.mxu0 %v1120
        %1311 = vmatprep.subr.bf16.mxu0 %v1125
        %1312 = vmatpush1.bf16.msra.mxu0 %v1124
        %1313 = vmatprep.subr.bf16.mxu0 %v1129
        %1314 = vmatpush1.bf16.msra.mxu0 %v1128
        %1315 = vmatprep.subr.bf16.mxu0 %v1133
        %1316 = vmatpush1.bf16.msra.mxu0 %v1132
        %1317 = vmatprep.subr.bf16.mxu0 %v1137
        %1318 = vmatpush1.bf16.msra.mxu0 %v1136
        %1319 = vmatprep.subr.bf16.mxu0 %v1141
        %1320 = vmatpush1.bf16.msra.mxu0 %v1140
        %1321 = vmatprep.subr.bf16.mxu0 %v1145
        %1322 = vmatpush1.bf16.msra.mxu0 %v1144
        %1323 = vmatprep.subr.bf16.mxu0 %v1149
        %1324 = vmatpush1.bf16.msra.mxu0 %v1148
        %1325 = vmatprep.mubr.bf16.mxu0 %v1153
        %1326 = vmatmul.mubr.bf16.gmra.mrb[0].mxu0 %v1152
        %v1327 = vpop.f32.mrb[0].mxu0
        %v1328 = vadd.f32 %v1287, %v1327
        %v1329 = vpop.f32.mrb[0].mxu0
        %v1330 = vadd.f32 %v1289, %v1329
        %v1331 = vpop.f32.mrb[0].mxu0
        %v1332 = vpop.f32.mrb[0].mxu0
        %1333 = vdwg.mxu0
        %v1334 = vsel %vm473, %v1246, 0.0
        %v1335 = vsel %vm473, %v1248, 0.0
        %v1336 = vadd.f32 %v1334, %v1335
        %v1337 = vsel %vm473, %v1328, 0.0
        %v1338 = vadd.f32 %v1336, %v1337
        %v1339 = vsel %vm473, %v1330, 0.0
        %v1340 = vadd.f32 %v1338, %v1339
        %1341 = vadd.xlane.f32.xlu0 %v1340
        %v1342 = vpop.xlane.xlu0 %1341
        %v1343 = vmul.f32 %v1342, %v712
        %v1344 = vsub.f32 %v1246, %v1343
        %v1345 = vsub.f32 %v1248, %v1343
        %v1346 = vsub.f32 %v1328, %v1343
        %v1347 = vsub.f32 %v1330, %v1343
        %v1348 = vmul.f32 %v1344, %v1344
        %v1349 = vmul.f32 %v1345, %v1345
        %v1350 = vmul.f32 %v1346, %v1346
        %v1351 = vmul.f32 %v1347, %v1347
        %v1352 = vsel %vm473, %v1348, 0.0
        %v1353 = vsel %vm473, %v1349, 0.0
        %v1354 = vadd.f32 %v1352, %v1353
        %v1355 = vsel %vm473, %v1350, 0.0
        %v1356 = vadd.f32 %v1354, %v1355
        %v1357 = vsel %vm473, %v1351, 0.0
        %v1358 = vadd.f32 %v1356, %v1357
        %1359 = vadd.xlane.f32.xlu0 %v1358
        %v1360 = vpop.xlane.xlu0 %1359
        %v1361 = vmul.f32 %v1360, %v731
        %v1362 = vrsqrt.pop %v1361
        %v1363 = vmul.f32 %v1361, %v1362
        %vm1364 = vcmp.eq.f32.partialorder %v1361, inf
        %v1365 = vsel %vm1364, %v1361, %v1363
        %vm1366 = vcmp.eq.f32.partialorder %v1361, 0.0
        %v1367 = vand.u32 %v1361, 2147483648
        %v1368 = vsel %vm1366, %v1367, %v1365
        %v1369 = vadd.f32 %v1368, 1e-06
        %v1370 = vrcp.pop %v1369
        %v1371 = vmul.f32 %v1344, %v1370
        %v1372 = vmul.f32 %v1345, %v1370
        %v1373 = vmul.f32 %v1346, %v1370
        %v1374 = vmul.f32 %v1347, %v1370
        %v1375 = vlaneseq
        %v1376 = vshrl.u32 %v1375, 7
        %v1377 = vsub.s32 4, %v1376
        %v1378 = vrot.slane %v438, %v1377
        %v1379 = vlaneseq
        %v1380 = vshrl.u32 %v1379, 7
        %v1381 = vsub.s32 4, %v1380
        %v1382 = vrot.slane %v439, %v1381
        %v1383 = vlaneseq
        %v1384 = vshrl.u32 %v1383, 7
        %v1385 = vsub.s32 4, %v1384
        %v1386 = vrot.slane %v440, %v1385
        %v1387 = vlaneseq
        %v1388 = vshrl.u32 %v1387, 7
        %v1389 = vsub.s32 4, %v1388
        %v1390 = vrot.slane %v441, %v1389
        %v1391 = vmul.f32 %v1378, %v1371
        %v1392 = vmul.f32 %v1382, %v1372
        %v1393 = vmul.f32 %v1386, %v1373
        %v1394 = vmul.f32 %v1390, %v1374
        %v1395 = vlaneseq
        %v1396 = vshrl.u32 %v1395, 7
        %v1397 = vsub.s32 5, %v1396
        %v1398 = vrot.slane %v438, %v1397
        %v1399 = vlaneseq
        %v1400 = vshrl.u32 %v1399, 7
        %v1401 = vsub.s32 5, %v1400
        %v1402 = vrot.slane %v439, %v1401
        %v1403 = vlaneseq
        %v1404 = vshrl.u32 %v1403, 7
        %v1405 = vsub.s32 5, %v1404
        %v1406 = vrot.slane %v440, %v1405
        %v1407 = vlaneseq
        %v1408 = vshrl.u32 %v1407, 7
        %v1409 = vsub.s32 5, %v1408
        %v1410 = vrot.slane %v441, %v1409
        %v1411 = vadd.f32 %v1391, %v1398
        %v1412 = vadd.f32 %v1392, %v1402
        %v1413 = vadd.f32 %v1393, %v1406
        %v1414 = vadd.f32 %v1394, %v1410
        %v1415 = vmul.f32 %v1411, 0.01
        %v1416 = vmul.f32 %v1412, 0.01
        %v1417 = vmul.f32 %v1413, 0.01
        %v1418 = vmul.f32 %v1414, 0.01
        %v1419 = vmax.f32 %v1411, %v1415
        %v1420 = vmax.f32 %v1412, %v1416
        %v1421 = vmax.f32 %v1413, %v1417
        %v1422 = vmax.f32 %v1414, %v1418
        %v1423 = vld [vmem:[%s348] sm:$0xff]
        %v1424 = vld [vmem:[%s348 + $0x8] sm:$0xff]
        %v1425 = vld [vmem:[%s348 + $0x10] sm:$0xff]
        %v1426 = vld [vmem:[%s348 + $0x18] sm:$0xff]
        %v1427 = vld [vmem:[%s348 + $0x20] sm:$0xff]
        %v1428 = vld [vmem:[%s348 + $0x28] sm:$0xff]
        %v1429 = vld [vmem:[%s348 + $0x30] sm:$0xff]
        %v1430 = vld [vmem:[%s348 + $0x38] sm:$0xff]
        %v1431 = vld [vmem:[%s348 + $0x40] sm:$0xff]
        %v1432 = vld [vmem:[%s348 + $0x48] sm:$0xff]
        %v1433 = vld [vmem:[%s348 + $0x50] sm:$0xff]
        %v1434 = vld [vmem:[%s348 + $0x58] sm:$0xff]
        %v1435 = vld [vmem:[%s348 + $0x60] sm:$0xff]
        %v1436 = vld [vmem:[%s348 + $0x68] sm:$0xff]
        %v1437 = vld [vmem:[%s348 + $0x70] sm:$0xff]
        %v1438 = vld [vmem:[%s348 + $0x78] sm:$0xff]
        %v1439 = vld [vmem:[%s348 + $0x80] sm:$0xff]
        %v1440 = vld [vmem:[%s348 + $0x88] sm:$0xff]
        %v1441 = vld [vmem:[%s348 + $0x90] sm:$0xff]
        %v1442 = vld [vmem:[%s348 + $0x98] sm:$0xff]
        %v1443 = vld [vmem:[%s348 + $0xa0] sm:$0xff]
        %v1444 = vld [vmem:[%s348 + $0xa8] sm:$0xff]
        %v1445 = vld [vmem:[%s348 + $0xb0] sm:$0xff]
        %v1446 = vld [vmem:[%s348 + $0xb8] sm:$0xff]
        %v1447 = vld [vmem:[%s348 + $0xc0] sm:$0xff]
        %v1448 = vld [vmem:[%s348 + $0xc8] sm:$0xff]
        %v1449 = vld [vmem:[%s348 + $0xd0] sm:$0xff]
        %v1450 = vld [vmem:[%s348 + $0xd8] sm:$0xff]
        %v1451 = vld [vmem:[%s348 + $0xe0] sm:$0xff]
        %v1452 = vld [vmem:[%s348 + $0xe8] sm:$0xff]
        %v1453 = vld [vmem:[%s348 + $0xf0] sm:$0xff]
        %v1454 = vld [vmem:[%s348 + $0xf8] sm:$0xff]
        %v1455 = vld [vmem:[%s348 + $0x100] sm:$0xff]
        %v1456 = vld [vmem:[%s348 + $0x108] sm:$0xff]
        %v1457 = vld [vmem:[%s348 + $0x110] sm:$0xff]
        %v1458 = vld [vmem:[%s348 + $0x118] sm:$0xff]
        %v1459 = vld [vmem:[%s348 + $0x120] sm:$0xff]
        %v1460 = vld [vmem:[%s348 + $0x128] sm:$0xff]
        %v1461 = vld [vmem:[%s348 + $0x130] sm:$0xff]
        %v1462 = vld [vmem:[%s348 + $0x138] sm:$0xff]
        %v1463 = vld [vmem:[%s348 + $0x140] sm:$0xff]
        %v1464 = vld [vmem:[%s348 + $0x148] sm:$0xff]
        %v1465 = vld [vmem:[%s348 + $0x150] sm:$0xff]
        %v1466 = vld [vmem:[%s348 + $0x158] sm:$0xff]
        %v1467 = vld [vmem:[%s348 + $0x160] sm:$0xff]
        %v1468 = vld [vmem:[%s348 + $0x168] sm:$0xff]
        %v1469 = vld [vmem:[%s348 + $0x170] sm:$0xff]
        %v1470 = vld [vmem:[%s348 + $0x178] sm:$0xff]
        %v1471 = vld [vmem:[%s348 + $0x180] sm:$0xff]
        %v1472 = vld [vmem:[%s348 + $0x188] sm:$0xff]
        %v1473 = vld [vmem:[%s348 + $0x190] sm:$0xff]
        %v1474 = vld [vmem:[%s348 + $0x198] sm:$0xff]
        %v1475 = vld [vmem:[%s348 + $0x1a0] sm:$0xff]
        %v1476 = vld [vmem:[%s348 + $0x1a8] sm:$0xff]
        %v1477 = vld [vmem:[%s348 + $0x1b0] sm:$0xff]
        %v1478 = vld [vmem:[%s348 + $0x1b8] sm:$0xff]
        %v1479 = vld [vmem:[%s348 + $0x1c0] sm:$0xff]
        %v1480 = vld [vmem:[%s348 + $0x1c8] sm:$0xff]
        %v1481 = vld [vmem:[%s348 + $0x1d0] sm:$0xff]
        %v1482 = vld [vmem:[%s348 + $0x1d8] sm:$0xff]
        %v1483 = vld [vmem:[%s348 + $0x1e0] sm:$0xff]
        %v1484 = vld [vmem:[%s348 + $0x1e8] sm:$0xff]
        %v1485 = vld [vmem:[%s348 + $0x1f0] sm:$0xff]
        %v1486 = vld [vmem:[%s348 + $0x1f8] sm:$0xff]
        %v1487 = vunpack.c.l.s8.bf16 %v1423
        %v1488 = vunpack.c.l.s8.bf16 %v1424
        %v1489 = vunpack.c.l.s8.bf16 %v1425
        %v1490 = vunpack.c.l.s8.bf16 %v1426
        %v1491 = vunpack.c.h.s8.bf16 %v1423
        %v1492 = vunpack.c.h.s8.bf16 %v1424
        %v1493 = vunpack.c.h.s8.bf16 %v1425
        %v1494 = vunpack.c.h.s8.bf16 %v1426
        %v1495 = vunpack.c.l.s8.bf16 %v1427
        %v1496 = vunpack.c.l.s8.bf16 %v1428
        %v1497 = vunpack.c.l.s8.bf16 %v1429
        %v1498 = vunpack.c.l.s8.bf16 %v1430
        %v1499 = vunpack.c.h.s8.bf16 %v1427
        %v1500 = vunpack.c.h.s8.bf16 %v1428
        %v1501 = vunpack.c.h.s8.bf16 %v1429
        %v1502 = vunpack.c.h.s8.bf16 %v1430
        %v1503 = vunpack.c.l.s8.bf16 %v1431
        %v1504 = vunpack.c.l.s8.bf16 %v1432
        %v1505 = vunpack.c.l.s8.bf16 %v1433
        %v1506 = vunpack.c.l.s8.bf16 %v1434
        %v1507 = vunpack.c.h.s8.bf16 %v1431
        %v1508 = vunpack.c.h.s8.bf16 %v1432
        %v1509 = vunpack.c.h.s8.bf16 %v1433
        %v1510 = vunpack.c.h.s8.bf16 %v1434
        %v1511 = vunpack.c.l.s8.bf16 %v1435
        %v1512 = vunpack.c.l.s8.bf16 %v1436
        %v1513 = vunpack.c.l.s8.bf16 %v1437
        %v1514 = vunpack.c.l.s8.bf16 %v1438
        %v1515 = vunpack.c.h.s8.bf16 %v1435
        %v1516 = vunpack.c.h.s8.bf16 %v1436
        %v1517 = vunpack.c.h.s8.bf16 %v1437
        %v1518 = vunpack.c.h.s8.bf16 %v1438
        %v1519 = vunpack.c.l.s8.bf16 %v1439
        %v1520 = vunpack.c.l.s8.bf16 %v1440
        %v1521 = vunpack.c.l.s8.bf16 %v1441
        %v1522 = vunpack.c.l.s8.bf16 %v1442
        %v1523 = vunpack.c.h.s8.bf16 %v1439
        %v1524 = vunpack.c.h.s8.bf16 %v1440
        %v1525 = vunpack.c.h.s8.bf16 %v1441
        %v1526 = vunpack.c.h.s8.bf16 %v1442
        %v1527 = vunpack.c.l.s8.bf16 %v1443
        %v1528 = vunpack.c.l.s8.bf16 %v1444
        %v1529 = vunpack.c.l.s8.bf16 %v1445
        %v1530 = vunpack.c.l.s8.bf16 %v1446
        %v1531 = vunpack.c.h.s8.bf16 %v1443
        %v1532 = vunpack.c.h.s8.bf16 %v1444
        %v1533 = vunpack.c.h.s8.bf16 %v1445
        %v1534 = vunpack.c.h.s8.bf16 %v1446
        %v1535 = vunpack.c.l.s8.bf16 %v1447
        %v1536 = vunpack.c.l.s8.bf16 %v1448
        %v1537 = vunpack.c.l.s8.bf16 %v1449
        %v1538 = vunpack.c.l.s8.bf16 %v1450
        %v1539 = vunpack.c.h.s8.bf16 %v1447
        %v1540 = vunpack.c.h.s8.bf16 %v1448
        %v1541 = vunpack.c.h.s8.bf16 %v1449
        %v1542 = vunpack.c.h.s8.bf16 %v1450
        %v1543 = vunpack.c.l.s8.bf16 %v1451
        %v1544 = vunpack.c.l.s8.bf16 %v1452
        %v1545 = vunpack.c.l.s8.bf16 %v1453
        %v1546 = vunpack.c.l.s8.bf16 %v1454
        %v1547 = vunpack.c.h.s8.bf16 %v1451
        %v1548 = vunpack.c.h.s8.bf16 %v1452
        %v1549 = vunpack.c.h.s8.bf16 %v1453
        %v1550 = vunpack.c.h.s8.bf16 %v1454
        %v1551 = vunpack.c.l.s8.bf16 %v1455
        %v1552 = vunpack.c.l.s8.bf16 %v1456
        %v1553 = vunpack.c.l.s8.bf16 %v1457
        %v1554 = vunpack.c.l.s8.bf16 %v1458
        %v1555 = vunpack.c.h.s8.bf16 %v1455
        %v1556 = vunpack.c.h.s8.bf16 %v1456
        %v1557 = vunpack.c.h.s8.bf16 %v1457
        %v1558 = vunpack.c.h.s8.bf16 %v1458
        %v1559 = vunpack.c.l.s8.bf16 %v1459
        %v1560 = vunpack.c.l.s8.bf16 %v1460
        %v1561 = vunpack.c.l.s8.bf16 %v1461
        %v1562 = vunpack.c.l.s8.bf16 %v1462
        %v1563 = vunpack.c.h.s8.bf16 %v1459
        %v1564 = vunpack.c.h.s8.bf16 %v1460
        %v1565 = vunpack.c.h.s8.bf16 %v1461
        %v1566 = vunpack.c.h.s8.bf16 %v1462
        %v1567 = vunpack.c.l.s8.bf16 %v1463
        %v1568 = vunpack.c.l.s8.bf16 %v1464
        %v1569 = vunpack.c.l.s8.bf16 %v1465
        %v1570 = vunpack.c.l.s8.bf16 %v1466
        %v1571 = vunpack.c.h.s8.bf16 %v1463
        %v1572 = vunpack.c.h.s8.bf16 %v1464
        %v1573 = vunpack.c.h.s8.bf16 %v1465
        %v1574 = vunpack.c.h.s8.bf16 %v1466
        %v1575 = vunpack.c.l.s8.bf16 %v1467
        %v1576 = vunpack.c.l.s8.bf16 %v1468
        %v1577 = vunpack.c.l.s8.bf16 %v1469
        %v1578 = vunpack.c.l.s8.bf16 %v1470
        %v1579 = vunpack.c.h.s8.bf16 %v1467
        %v1580 = vunpack.c.h.s8.bf16 %v1468
        %v1581 = vunpack.c.h.s8.bf16 %v1469
        %v1582 = vunpack.c.h.s8.bf16 %v1470
        %v1583 = vunpack.c.l.s8.bf16 %v1471
        %v1584 = vunpack.c.l.s8.bf16 %v1472
        %v1585 = vunpack.c.l.s8.bf16 %v1473
        %v1586 = vunpack.c.l.s8.bf16 %v1474
        %v1587 = vunpack.c.h.s8.bf16 %v1471
        %v1588 = vunpack.c.h.s8.bf16 %v1472
        %v1589 = vunpack.c.h.s8.bf16 %v1473
        %v1590 = vunpack.c.h.s8.bf16 %v1474
        %v1591 = vunpack.c.l.s8.bf16 %v1475
        %v1592 = vunpack.c.l.s8.bf16 %v1476
        %v1593 = vunpack.c.l.s8.bf16 %v1477
        %v1594 = vunpack.c.l.s8.bf16 %v1478
        %v1595 = vunpack.c.h.s8.bf16 %v1475
        %v1596 = vunpack.c.h.s8.bf16 %v1476
        %v1597 = vunpack.c.h.s8.bf16 %v1477
        %v1598 = vunpack.c.h.s8.bf16 %v1478
        %v1599 = vunpack.c.l.s8.bf16 %v1479
        %v1600 = vunpack.c.l.s8.bf16 %v1480
        %v1601 = vunpack.c.l.s8.bf16 %v1481
        %v1602 = vunpack.c.l.s8.bf16 %v1482
        %v1603 = vunpack.c.h.s8.bf16 %v1479
        %v1604 = vunpack.c.h.s8.bf16 %v1480
        %v1605 = vunpack.c.h.s8.bf16 %v1481
        %v1606 = vunpack.c.h.s8.bf16 %v1482
        %v1607 = vunpack.c.l.s8.bf16 %v1483
        %v1608 = vunpack.c.l.s8.bf16 %v1484
        %v1609 = vunpack.c.l.s8.bf16 %v1485
        %v1610 = vunpack.c.l.s8.bf16 %v1486
        %v1611 = vunpack.c.h.s8.bf16 %v1483
        %v1612 = vunpack.c.h.s8.bf16 %v1484
        %v1613 = vunpack.c.h.s8.bf16 %v1485
        %v1614 = vunpack.c.h.s8.bf16 %v1486
        %v1615 = vpack.i.b16 %v986, %v986
        %v1617 = vlaneseq
        %v1618 = vshrl.u32 %v1617, 7
        %v1619 = vsub.s32 2, %v1618
        %v1620 = vrot.slane %v1615, %v1619
        %v1621 = vpack.i.b16 %v987, %v987
        %v1623 = vlaneseq
        %v1624 = vshrl.u32 %v1623, 7
        %v1625 = vsub.s32 2, %v1624
        %v1626 = vrot.slane %v1621, %v1625
        %v1627 = vpack.i.b16 %v988, %v988
        %v1629 = vlaneseq
        %v1630 = vshrl.u32 %v1629, 7
        %v1631 = vsub.s32 2, %v1630
        %v1632 = vrot.slane %v1627, %v1631
        %v1633 = vpack.i.b16 %v989, %v989
        %v1635 = vlaneseq
        %v1636 = vshrl.u32 %v1635, 7
        %v1637 = vsub.s32 2, %v1636
        %v1638 = vrot.slane %v1633, %v1637
        %v1639 = vmul.bf16 %v1487, %v1620
        %v1640 = vmul.bf16 %v1488, %v1626
        %v1641 = vmul.bf16 %v1489, %v1632
        %v1642 = vmul.bf16 %v1490, %v1638
        %v1643 = vmul.bf16 %v1491, %v1620
        %v1644 = vmul.bf16 %v1492, %v1626
        %v1645 = vmul.bf16 %v1493, %v1632
        %v1646 = vmul.bf16 %v1494, %v1638
        %v1647 = vmul.bf16 %v1495, %v1620
        %v1648 = vmul.bf16 %v1496, %v1626
        %v1649 = vmul.bf16 %v1497, %v1632
        %v1650 = vmul.bf16 %v1498, %v1638
        %v1651 = vmul.bf16 %v1499, %v1620
        %v1652 = vmul.bf16 %v1500, %v1626
        %v1653 = vmul.bf16 %v1501, %v1632
        %v1654 = vmul.bf16 %v1502, %v1638
        %v1655 = vmul.bf16 %v1503, %v1620
        %v1656 = vmul.bf16 %v1504, %v1626
        %v1657 = vmul.bf16 %v1505, %v1632
        %v1658 = vmul.bf16 %v1506, %v1638
        %v1659 = vmul.bf16 %v1507, %v1620
        %v1660 = vmul.bf16 %v1508, %v1626
        %v1661 = vmul.bf16 %v1509, %v1632
        %v1662 = vmul.bf16 %v1510, %v1638
        %v1663 = vmul.bf16 %v1511, %v1620
        %v1664 = vmul.bf16 %v1512, %v1626
        %v1665 = vmul.bf16 %v1513, %v1632
        %v1666 = vmul.bf16 %v1514, %v1638
        %v1667 = vmul.bf16 %v1515, %v1620
        %v1668 = vmul.bf16 %v1516, %v1626
        %v1669 = vmul.bf16 %v1517, %v1632
        %v1670 = vmul.bf16 %v1518, %v1638
        %v1671 = vmul.bf16 %v1519, %v1620
        %v1672 = vmul.bf16 %v1520, %v1626
        %v1673 = vmul.bf16 %v1521, %v1632
        %v1674 = vmul.bf16 %v1522, %v1638
        %v1675 = vmul.bf16 %v1523, %v1620
        %v1676 = vmul.bf16 %v1524, %v1626
        %v1677 = vmul.bf16 %v1525, %v1632
        %v1678 = vmul.bf16 %v1526, %v1638
        %v1679 = vmul.bf16 %v1527, %v1620
        %v1680 = vmul.bf16 %v1528, %v1626
        %v1681 = vmul.bf16 %v1529, %v1632
        %v1682 = vmul.bf16 %v1530, %v1638
        %v1683 = vmul.bf16 %v1531, %v1620
        %v1684 = vmul.bf16 %v1532, %v1626
        %v1685 = vmul.bf16 %v1533, %v1632
        %v1686 = vmul.bf16 %v1534, %v1638
        %v1687 = vmul.bf16 %v1535, %v1620
        %v1688 = vmul.bf16 %v1536, %v1626
        %v1689 = vmul.bf16 %v1537, %v1632
        %v1690 = vmul.bf16 %v1538, %v1638
        %v1691 = vmul.bf16 %v1539, %v1620
        %v1692 = vmul.bf16 %v1540, %v1626
        %v1693 = vmul.bf16 %v1541, %v1632
        %v1694 = vmul.bf16 %v1542, %v1638
        %v1695 = vmul.bf16 %v1543, %v1620
        %v1696 = vmul.bf16 %v1544, %v1626
        %v1697 = vmul.bf16 %v1545, %v1632
        %v1698 = vmul.bf16 %v1546, %v1638
        %v1699 = vmul.bf16 %v1547, %v1620
        %v1700 = vmul.bf16 %v1548, %v1626
        %v1701 = vmul.bf16 %v1549, %v1632
        %v1702 = vmul.bf16 %v1550, %v1638
        %v1703 = vmul.bf16 %v1551, %v1620
        %v1704 = vmul.bf16 %v1552, %v1626
        %v1705 = vmul.bf16 %v1553, %v1632
        %v1706 = vmul.bf16 %v1554, %v1638
        %v1707 = vmul.bf16 %v1555, %v1620
        %v1708 = vmul.bf16 %v1556, %v1626
        %v1709 = vmul.bf16 %v1557, %v1632
        %v1710 = vmul.bf16 %v1558, %v1638
        %v1711 = vmul.bf16 %v1559, %v1620
        %v1712 = vmul.bf16 %v1560, %v1626
        %v1713 = vmul.bf16 %v1561, %v1632
        %v1714 = vmul.bf16 %v1562, %v1638
        %v1715 = vmul.bf16 %v1563, %v1620
        %v1716 = vmul.bf16 %v1564, %v1626
        %v1717 = vmul.bf16 %v1565, %v1632
        %v1718 = vmul.bf16 %v1566, %v1638
        %v1719 = vmul.bf16 %v1567, %v1620
        %v1720 = vmul.bf16 %v1568, %v1626
        %v1721 = vmul.bf16 %v1569, %v1632
        %v1722 = vmul.bf16 %v1570, %v1638
        %v1723 = vmul.bf16 %v1571, %v1620
        %v1724 = vmul.bf16 %v1572, %v1626
        %v1725 = vmul.bf16 %v1573, %v1632
        %v1726 = vmul.bf16 %v1574, %v1638
        %v1727 = vmul.bf16 %v1575, %v1620
        %v1728 = vmul.bf16 %v1576, %v1626
        %v1729 = vmul.bf16 %v1577, %v1632
        %v1730 = vmul.bf16 %v1578, %v1638
        %v1731 = vmul.bf16 %v1579, %v1620
        %v1732 = vmul.bf16 %v1580, %v1626
        %v1733 = vmul.bf16 %v1581, %v1632
        %v1734 = vmul.bf16 %v1582, %v1638
        %v1735 = vmul.bf16 %v1583, %v1620
        %v1736 = vmul.bf16 %v1584, %v1626
        %v1737 = vmul.bf16 %v1585, %v1632
        %v1738 = vmul.bf16 %v1586, %v1638
        %v1739 = vmul.bf16 %v1587, %v1620
        %v1740 = vmul.bf16 %v1588, %v1626
        %v1741 = vmul.bf16 %v1589, %v1632
        %v1742 = vmul.bf16 %v1590, %v1638
        %v1743 = vmul.bf16 %v1591, %v1620
        %v1744 = vmul.bf16 %v1592, %v1626
        %v1745 = vmul.bf16 %v1593, %v1632
        %v1746 = vmul.bf16 %v1594, %v1638
        %v1747 = vmul.bf16 %v1595, %v1620
        %v1748 = vmul.bf16 %v1596, %v1626
        %v1749 = vmul.bf16 %v1597, %v1632
        %v1750 = vmul.bf16 %v1598, %v1638
        %v1751 = vmul.bf16 %v1599, %v1620
        %v1752 = vmul.bf16 %v1600, %v1626
        %v1753 = vmul.bf16 %v1601, %v1632
        %v1754 = vmul.bf16 %v1602, %v1638
        %v1755 = vmul.bf16 %v1603, %v1620
        %v1756 = vmul.bf16 %v1604, %v1626
        %v1757 = vmul.bf16 %v1605, %v1632
        %v1758 = vmul.bf16 %v1606, %v1638
        %v1759 = vmul.bf16 %v1607, %v1620
        %v1760 = vmul.bf16 %v1608, %v1626
        %v1761 = vmul.bf16 %v1609, %v1632
        %v1762 = vmul.bf16 %v1610, %v1638
        %v1763 = vmul.bf16 %v1611, %v1620
        %v1764 = vmul.bf16 %v1612, %v1626
        %v1765 = vmul.bf16 %v1613, %v1632
        %v1766 = vmul.bf16 %v1614, %v1638
        %v1767 = vpack.c.bf16 %v1419, %v1419
        %v1768 = vpack.c.bf16 %v1420, %v1420
        %v1769 = vpack.c.bf16 %v1421, %v1421
        %v1770 = vpack.c.bf16 %v1422, %v1422
        %v1771 = vlaneseq
        %v1772 = vshrl.u32 %v1771, 7
        %v1773 = vsub.s32 6, %v1772
        %v1774 = vrot.slane %v438, %v1773
        %v1775 = vlaneseq
        %v1776 = vshrl.u32 %v1775, 7
        %v1777 = vsub.s32 6, %v1776
        %v1778 = vrot.slane %v439, %v1777
        %v1779 = vlaneseq
        %v1780 = vshrl.u32 %v1779, 7
        %v1781 = vsub.s32 6, %v1780
        %v1782 = vrot.slane %v440, %v1781
        %v1783 = vlaneseq
        %v1784 = vshrl.u32 %v1783, 7
        %v1785 = vsub.s32 6, %v1784
        %v1786 = vrot.slane %v441, %v1785
        %1787 = vmatprep.subr.bf16.mxu0 %v1640
        %1788 = vmatpush1.bf16.msra.mxu0 %v1639
        %1789 = vmatprep.subr.bf16.mxu0 %v1644
        %1790 = vmatpush1.bf16.msra.mxu0 %v1643
        %1791 = vmatprep.subr.bf16.mxu0 %v1648
        %1792 = vmatpush1.bf16.msra.mxu0 %v1647
        %1793 = vmatprep.subr.bf16.mxu0 %v1652
        %1794 = vmatpush1.bf16.msra.mxu0 %v1651
        %1795 = vmatprep.subr.bf16.mxu0 %v1656
        %1796 = vmatpush1.bf16.msra.mxu0 %v1655
        %1797 = vmatprep.subr.bf16.mxu0 %v1660
        %1798 = vmatpush1.bf16.msra.mxu0 %v1659
        %1799 = vmatprep.subr.bf16.mxu0 %v1664
        %1800 = vmatpush1.bf16.msra.mxu0 %v1663
        %1801 = vmatprep.subr.bf16.mxu0 %v1668
        %1802 = vmatpush1.bf16.msra.mxu0 %v1667
        %1803 = vmatprep.subr.bf16.mxu0 %v1672
        %1804 = vmatpush1.bf16.msra.mxu0 %v1671
        %1805 = vmatprep.subr.bf16.mxu0 %v1676
        %1806 = vmatpush1.bf16.msra.mxu0 %v1675
        %1807 = vmatprep.subr.bf16.mxu0 %v1680
        %1808 = vmatpush1.bf16.msra.mxu0 %v1679
        %1809 = vmatprep.subr.bf16.mxu0 %v1684
        %1810 = vmatpush1.bf16.msra.mxu0 %v1683
        %1811 = vmatprep.subr.bf16.mxu0 %v1688
        %1812 = vmatpush1.bf16.msra.mxu0 %v1687
        %1813 = vmatprep.subr.bf16.mxu0 %v1692
        %1814 = vmatpush1.bf16.msra.mxu0 %v1691
        %1815 = vmatprep.subr.bf16.mxu0 %v1696
        %1816 = vmatpush1.bf16.msra.mxu0 %v1695
        %1817 = vmatprep.subr.bf16.mxu0 %v1700
        %1818 = vmatpush1.bf16.msra.mxu0 %v1699
        %1819 = vmatprep.mubr.bf16.mxu0 %v1768
        %1820 = vmatmul.mubr.bf16.gmra.mrb[0].mxu0 %v1767
        %v1821 = vpop.f32.mrb[0].mxu0
        %v1822 = vadd.f32 %v1774, %v1821
        %v1823 = vpop.f32.mrb[0].mxu0
        %v1824 = vadd.f32 %v1778, %v1823
        %v1825 = vpop.f32.mrb[0].mxu0
        %v1826 = vpop.f32.mrb[0].mxu0
        %1827 = vdwg.mxu0
        %1828 = vmatprep.subr.bf16.mxu0 %v1704
        %1829 = vmatpush1.bf16.msra.mxu0 %v1703
        %1830 = vmatprep.subr.bf16.mxu0 %v1708
        %1831 = vmatpush1.bf16.msra.mxu0 %v1707
        %1832 = vmatprep.subr.bf16.mxu0 %v1712
        %1833 = vmatpush1.bf16.msra.mxu0 %v1711
        %1834 = vmatprep.subr.bf16.mxu0 %v1716
        %1835 = vmatpush1.bf16.msra.mxu0 %v1715
        %1836 = vmatprep.subr.bf16.mxu0 %v1720
        %1837 = vmatpush1.bf16.msra.mxu0 %v1719
        %1838 = vmatprep.subr.bf16.mxu0 %v1724
        %1839 = vmatpush1.bf16.msra.mxu0 %v1723
        %1840 = vmatprep.subr.bf16.mxu0 %v1728
        %1841 = vmatpush1.bf16.msra.mxu0 %v1727
        %1842 = vmatprep.subr.bf16.mxu0 %v1732
        %1843 = vmatpush1.bf16.msra.mxu0 %v1731
        %1844 = vmatprep.subr.bf16.mxu0 %v1736
        %1845 = vmatpush1.bf16.msra.mxu0 %v1735
        %1846 = vmatprep.subr.bf16.mxu0 %v1740
        %1847 = vmatpush1.bf16.msra.mxu0 %v1739
        %1848 = vmatprep.subr.bf16.mxu0 %v1744
        %1849 = vmatpush1.bf16.msra.mxu0 %v1743
        %1850 = vmatprep.subr.bf16.mxu0 %v1748
        %1851 = vmatpush1.bf16.msra.mxu0 %v1747
        %1852 = vmatprep.subr.bf16.mxu0 %v1752
        %1853 = vmatpush1.bf16.msra.mxu0 %v1751
        %1854 = vmatprep.subr.bf16.mxu0 %v1756
        %1855 = vmatpush1.bf16.msra.mxu0 %v1755
        %1856 = vmatprep.subr.bf16.mxu0 %v1760
        %1857 = vmatpush1.bf16.msra.mxu0 %v1759
        %1858 = vmatprep.subr.bf16.mxu0 %v1764
        %1859 = vmatpush1.bf16.msra.mxu0 %v1763
        %1860 = vmatprep.mubr.bf16.mxu0 %v1770
        %1861 = vmatmul.mubr.bf16.gmra.mrb[0].mxu0 %v1769
        %v1862 = vpop.f32.mrb[0].mxu0
        %v1863 = vadd.f32 %v1822, %v1862
        %v1864 = vpop.f32.mrb[0].mxu0
        %v1865 = vadd.f32 %v1824, %v1864
        %v1866 = vpop.f32.mrb[0].mxu0
        %v1867 = vpop.f32.mrb[0].mxu0
        %1868 = vdwg.mxu0
        %1869 = vmatprep.subr.bf16.mxu0 %v1642
        %1870 = vmatpush1.bf16.msra.mxu0 %v1641
        %1871 = vmatprep.subr.bf16.mxu0 %v1646
        %1872 = vmatpush1.bf16.msra.mxu0 %v1645
        %1873 = vmatprep.subr.bf16.mxu0 %v1650
        %1874 = vmatpush1.bf16.msra.mxu0 %v1649
        %1875 = vmatprep.subr.bf16.mxu0 %v1654
        %1876 = vmatpush1.bf16.msra.mxu0 %v1653
        %1877 = vmatprep.subr.bf16.mxu0 %v1658
        %1878 = vmatpush1.bf16.msra.mxu0 %v1657
        %1879 = vmatprep.subr.bf16.mxu0 %v1662
        %1880 = vmatpush1.bf16.msra.mxu0 %v1661
        %1881 = vmatprep.subr.bf16.mxu0 %v1666
        %1882 = vmatpush1.bf16.msra.mxu0 %v1665
        %1883 = vmatprep.subr.bf16.mxu0 %v1670
        %1884 = vmatpush1.bf16.msra.mxu0 %v1669
        %1885 = vmatprep.subr.bf16.mxu0 %v1674
        %1886 = vmatpush1.bf16.msra.mxu0 %v1673
        %1887 = vmatprep.subr.bf16.mxu0 %v1678
        %1888 = vmatpush1.bf16.msra.mxu0 %v1677
        %1889 = vmatprep.subr.bf16.mxu0 %v1682
        %1890 = vmatpush1.bf16.msra.mxu0 %v1681
        %1891 = vmatprep.subr.bf16.mxu0 %v1686
        %1892 = vmatpush1.bf16.msra.mxu0 %v1685
        %1893 = vmatprep.subr.bf16.mxu0 %v1690
        %1894 = vmatpush1.bf16.msra.mxu0 %v1689
        %1895 = vmatprep.subr.bf16.mxu0 %v1694
        %1896 = vmatpush1.bf16.msra.mxu0 %v1693
        %1897 = vmatprep.subr.bf16.mxu0 %v1698
        %1898 = vmatpush1.bf16.msra.mxu0 %v1697
        %1899 = vmatprep.subr.bf16.mxu0 %v1702
        %1900 = vmatpush1.bf16.msra.mxu0 %v1701
        %1901 = vmatprep.mubr.bf16.mxu0 %v1768
        %1902 = vmatmul.mubr.bf16.gmra.mrb[0].mxu0 %v1767
        %v1903 = vpop.f32.mrb[0].mxu0
        %v1904 = vadd.f32 %v1782, %v1903
        %v1905 = vpop.f32.mrb[0].mxu0
        %v1906 = vadd.f32 %v1786, %v1905
        %v1907 = vpop.f32.mrb[0].mxu0
        %v1908 = vpop.f32.mrb[0].mxu0
        %1909 = vdwg.mxu0
        %1910 = vmatprep.subr.bf16.mxu0 %v1706
        %1911 = vmatpush1.bf16.msra.mxu0 %v1705
        %1912 = vmatprep.subr.bf16.mxu0 %v1710
        %1913 = vmatpush1.bf16.msra.mxu0 %v1709
        %1914 = vmatprep.subr.bf16.mxu0 %v1714
        %1915 = vmatpush1.bf16.msra.mxu0 %v1713
        %1916 = vmatprep.subr.bf16.mxu0 %v1718
        %1917 = vmatpush1.bf16.msra.mxu0 %v1717
        %1918 = vmatprep.subr.bf16.mxu0 %v1722
        %1919 = vmatpush1.bf16.msra.mxu0 %v1721
        %1920 = vmatprep.subr.bf16.mxu0 %v1726
        %1921 = vmatpush1.bf16.msra.mxu0 %v1725
        %1922 = vmatprep.subr.bf16.mxu0 %v1730
        %1923 = vmatpush1.bf16.msra.mxu0 %v1729
        %1924 = vmatprep.subr.bf16.mxu0 %v1734
        %1925 = vmatpush1.bf16.msra.mxu0 %v1733
        %1926 = vmatprep.subr.bf16.mxu0 %v1738
        %1927 = vmatpush1.bf16.msra.mxu0 %v1737
        %1928 = vmatprep.subr.bf16.mxu0 %v1742
        %1929 = vmatpush1.bf16.msra.mxu0 %v1741
        %1930 = vmatprep.subr.bf16.mxu0 %v1746
        %1931 = vmatpush1.bf16.msra.mxu0 %v1745
        %1932 = vmatprep.subr.bf16.mxu0 %v1750
        %1933 = vmatpush1.bf16.msra.mxu0 %v1749
        %1934 = vmatprep.subr.bf16.mxu0 %v1754
        %1935 = vmatpush1.bf16.msra.mxu0 %v1753
        %1936 = vmatprep.subr.bf16.mxu0 %v1758
        %1937 = vmatpush1.bf16.msra.mxu0 %v1757
        %1938 = vmatprep.subr.bf16.mxu0 %v1762
        %1939 = vmatpush1.bf16.msra.mxu0 %v1761
        %1940 = vmatprep.subr.bf16.mxu0 %v1766
        %1941 = vmatpush1.bf16.msra.mxu0 %v1765
        %1942 = vmatprep.mubr.bf16.mxu0 %v1770
        %1943 = vmatmul.mubr.bf16.gmra.mrb[0].mxu0 %v1769
        %v1944 = vpop.f32.mrb[0].mxu0
        %v1945 = vadd.f32 %v1904, %v1944
        %v1946 = vpop.f32.mrb[0].mxu0
        %v1947 = vadd.f32 %v1906, %v1946
        %v1948 = vpop.f32.mrb[0].mxu0
        %v1949 = vpop.f32.mrb[0].mxu0
        %1950 = vdwg.mxu0
        %v1951 = vsel %vm473, %v1863, 0.0
        %v1952 = vsel %vm473, %v1865, 0.0
        %v1953 = vadd.f32 %v1951, %v1952
        %v1954 = vsel %vm473, %v1945, 0.0
        %v1955 = vadd.f32 %v1953, %v1954
        %v1956 = vsel %vm473, %v1947, 0.0
        %v1957 = vadd.f32 %v1955, %v1956
        %1958 = vadd.xlane.f32.xlu0 %v1957
        %v1959 = vpop.xlane.xlu0 %1958
        %v1960 = vmul.f32 %v1959, %v712
        %v1961 = vsub.f32 %v1863, %v1960
        %v1962 = vsub.f32 %v1865, %v1960
        %v1963 = vsub.f32 %v1945, %v1960
        %v1964 = vsub.f32 %v1947, %v1960
        %v1965 = vmul.f32 %v1961, %v1961
        %v1966 = vmul.f32 %v1962, %v1962
        %v1967 = vmul.f32 %v1963, %v1963
        %v1968 = vmul.f32 %v1964, %v1964
        %v1969 = vsel %vm473, %v1965, 0.0
        %v1970 = vsel %vm473, %v1966, 0.0
        %v1971 = vadd.f32 %v1969, %v1970
        %v1972 = vsel %vm473, %v1967, 0.0
        %v1973 = vadd.f32 %v1971, %v1972
        %v1974 = vsel %vm473, %v1968, 0.0
        %v1975 = vadd.f32 %v1973, %v1974
        %1976 = vadd.xlane.f32.xlu0 %v1975
        %v1977 = vpop.xlane.xlu0 %1976
        %v1978 = vmul.f32 %v1977, %v731
        %v1979 = vrsqrt.pop %v1978
        %v1980 = vmul.f32 %v1978, %v1979
        %vm1981 = vcmp.eq.f32.partialorder %v1978, inf
        %v1982 = vsel %vm1981, %v1978, %v1980
        %vm1983 = vcmp.eq.f32.partialorder %v1978, 0.0
        %v1984 = vand.u32 %v1978, 2147483648
        %v1985 = vsel %vm1983, %v1984, %v1982
        %v1986 = vadd.f32 %v1985, 1e-06
        %v1987 = vrcp.pop %v1986
        %v1988 = vmul.f32 %v1961, %v1987
        %v1989 = vmul.f32 %v1962, %v1987
        %v1990 = vmul.f32 %v1963, %v1987
        %v1991 = vmul.f32 %v1964, %v1987
        %v1992 = vlaneseq
        %v1993 = vshrl.u32 %v1992, 7
        %v1994 = vsub.s32 7, %v1993
        %v1995 = vrot.slane %v438, %v1994
        %v1996 = vlaneseq
        %v1997 = vshrl.u32 %v1996, 7
        %v1998 = vsub.s32 7, %v1997
        %v1999 = vrot.slane %v439, %v1998
        %v2000 = vlaneseq
        %v2001 = vshrl.u32 %v2000, 7
        %v2002 = vsub.s32 7, %v2001
        %v2003 = vrot.slane %v440, %v2002
        %v2004 = vlaneseq
        %v2005 = vshrl.u32 %v2004, 7
        %v2006 = vsub.s32 7, %v2005
        %v2007 = vrot.slane %v441, %v2006
        %v2008 = vmul.f32 %v1995, %v1988
        %v2009 = vmul.f32 %v1999, %v1989
        %v2010 = vmul.f32 %v2003, %v1990
        %v2011 = vmul.f32 %v2007, %v1991
        %v2012 = vlaneseq
        %v2013 = vshrl.u32 %v2012, 7
        %v2014 = vsub.s32 0, %v2013
        %v2015 = vrot.slane %v442, %v2014
        %v2016 = vlaneseq
        %v2017 = vshrl.u32 %v2016, 7
        %v2018 = vsub.s32 0, %v2017
        %v2019 = vrot.slane %v443, %v2018
        %v2020 = vlaneseq
        %v2021 = vshrl.u32 %v2020, 7
        %v2022 = vsub.s32 0, %v2021
        %v2023 = vrot.slane %v444, %v2022
        %v2024 = vlaneseq
        %v2025 = vshrl.u32 %v2024, 7
        %v2026 = vsub.s32 0, %v2025
        %v2027 = vrot.slane %v445, %v2026
        %v2028 = vadd.f32 %v2008, %v2015
        %v2029 = vadd.f32 %v2009, %v2019
        %v2030 = vadd.f32 %v2010, %v2023
        %v2031 = vadd.f32 %v2011, %v2027
        %v2032 = vmul.f32 %v2028, 0.01
        %v2033 = vmul.f32 %v2029, 0.01
        %v2034 = vmul.f32 %v2030, 0.01
        %v2035 = vmul.f32 %v2031, 0.01
        %v2036 = vmax.f32 %v2028, %v2032
        %v2037 = vmax.f32 %v2029, %v2033
        %v2038 = vmax.f32 %v2030, %v2034
        %v2039 = vmax.f32 %v2031, %v2035
        %v2040 = vlaneseq
        %v2041 = vshrl.u32 %v2040, 7
        %v2042 = vsub.s32 1, %v2041
        %v2043 = vrot.slane %v442, %v2042
        %v2044 = vlaneseq
        %v2045 = vshrl.u32 %v2044, 7
        %v2046 = vsub.s32 1, %v2045
        %v2047 = vrot.slane %v443, %v2046
        %v2048 = vlaneseq
        %v2049 = vshrl.u32 %v2048, 7
        %v2050 = vsub.s32 1, %v2049
        %v2051 = vrot.slane %v444, %v2050
        %v2052 = vlaneseq
        %v2053 = vshrl.u32 %v2052, 7
        %v2054 = vsub.s32 1, %v2053
        %v2055 = vrot.slane %v445, %v2054
        %v2056 = vmul.f32 %v2036, %v2043
        %v2057 = vmul.f32 %v2037, %v2047
        %v2058 = vmul.f32 %v2038, %v2051
        %v2059 = vmul.f32 %v2039, %v2055
        %v2060 = vsel %vm473, %v2056, 0.0
        %v2061 = vsel %vm473, %v2057, 0.0
        %v2062 = vadd.f32 %v2060, %v2061
        %v2063 = vsel %vm473, %v2058, 0.0
        %v2064 = vadd.f32 %v2062, %v2063
        %v2065 = vsel %vm473, %v2059, 0.0
        %v2066 = vadd.f32 %v2064, %v2065
        %2067 = vadd.xlane.f32.xlu0 %v2066
        %v2068 = vpop.xlane.xlu0 %2067
        %v2069 = vlaneseq
        %v2070 = vshrl.u32 %v2069, 7
        %v2071 = vsub.s32 2, %v2070
        %v2072 = vrot.slane %v442, %v2071
        %v2073 = vadd.f32 %v2068, %v2072
        %vm2074 = vcmask 1024
        %2075 = vst.msk [vmem:[%s431] sm:$0x3] %vm2074, %v2073
        %s2076 = scalar_lea.vmem %s357, 64 [#allocation6]
        %v2077 = vld [vmem:[%s2076] sm:$0xff]
        %v2078 = vld [vmem:[%s2076 + $0x8] sm:$0xff]
        %v2079 = vld [vmem:[%s2076 + $0x10] sm:$0xff]
        %v2080 = vld [vmem:[%s2076 + $0x18] sm:$0xff]
        %v2081 = vld [vmem:[%s2076 + $0x20] sm:$0xff]
        %v2082 = vld [vmem:[%s2076 + $0x28] sm:$0xff]
        %v2083 = vld [vmem:[%s2076 + $0x30] sm:$0xff]
        %v2084 = vld [vmem:[%s2076 + $0x38] sm:$0xff]
        %s2085 = scalar_lea.vmem %s415, 32
        %v2086 = vld [vmem:[%s2085] sm:$0xff]
        %v2087 = vld [vmem:[%s2085 + $0x8] sm:$0xff]
        %v2088 = vld [vmem:[%s2085 + $0x10] sm:$0x33]
        %v2089 = vld [vmem:[%s2085 + $0x18] sm:$0x33]
        %s2090 = scalar_lea.vmem %s422, 8
        %v2091 = vld [vmem:[%s2090] sm:$0xff]
        %v2093 = vcombine.high %v2091, %v2091
        %v2095 = vunpack.c.l.s4 1983009808
        %v2096 = vunpack.c.0.s8 %v2095
        %v2097 = vlaneseq
        %v2098 = vshrl.u32 %v2097, 7
        %v2099 = vsub.s32 %v2096, %v2098
        %v2100 = vrot.slane %v2091, %v2099
        %v2102 = vunpack.c.l.s4 1983009808
        %v2103 = vunpack.c.0.s8 %v2102
        %v2104 = vlaneseq
        %v2105 = vshrl.u32 %v2104, 7
        %v2106 = vsub.s32 %v2103, %v2105
        %v2107 = vrot.slane %v2093, %v2106
        %v2108 = vcombine.high %v2100, %v2100
        %v2109 = vcombine.high %v2107, %v2107
        %v2111 = vsel %vm473, %v2100, 0
        %v2114 = vsel %vm473, %v2108, 0
        %v2117 = vsel %vm473, %v2107, 0
        %v2120 = vsel %vm473, %v2109, 0
        %2122 = vmatprep.subr.bf16.mxu0 %v2114
        %2123 = vmatpush1.bf16.msra.mxu0 %v2111
        %2124 = vmatprep.subr.bf16.mxu0 0
        %2125 = vmatpush1.bf16.msra.mxu0 0
        %2126 = vmatprep.subr.bf16.mxu0 0
        %2127 = vmatpush1.bf16.msra.mxu0 0
        %2128 = vmatprep.subr.bf16.mxu0 0
        %2129 = vmatpush1.bf16.msra.mxu0 0
        %2130 = vmatprep.subr.bf16.mxu0 0
        %2131 = vmatpush1.bf16.msra.mxu0 0
        %2132 = vmatprep.subr.bf16.mxu0 0
        %2133 = vmatpush1.bf16.msra.mxu0 0
        %2134 = vmatprep.subr.bf16.mxu0 0
        %2135 = vmatpush1.bf16.msra.mxu0 0
        %2136 = vmatprep.subr.bf16.mxu0 0
        %2137 = vmatpush1.bf16.msra.mxu0 0
        %2138 = vmatprep.subr.bf16.mxu0 0
        %2139 = vmatpush1.bf16.msra.mxu0 0
        %2140 = vmatprep.subr.bf16.mxu0 0
        %2141 = vmatpush1.bf16.msra.mxu0 0
        %2142 = vmatprep.subr.bf16.mxu0 0
        %2143 = vmatpush1.bf16.msra.mxu0 0
        %2144 = vmatprep.subr.bf16.mxu0 0
        %2145 = vmatpush1.bf16.msra.mxu0 0
        %2146 = vmatprep.subr.bf16.mxu0 0
        %2147 = vmatpush1.bf16.msra.mxu0 0
        %2148 = vmatprep.subr.bf16.mxu0 0
        %2149 = vmatpush1.bf16.msra.mxu0 0
        %2150 = vmatprep.subr.bf16.mxu0 0
        %2151 = vmatpush1.bf16.msra.mxu0 0
        %2152 = vmatprep.subr.bf16.mxu0 0
        %2153 = vmatpush1.bf16.msra.mxu0 0
        %2154 = vmatprep.mubr.bf16.mxu0 0
        %2155 = vmatmul.mubr.bf16.gmra.mrb[0].mxu0 %v471
        %v2156 = vpop.f32.mrb[0].mxu0
        %v2157 = vadd.f32 0.0, %v2156
        %v2158 = vpop.f32.mrb[0].mxu0
        %v2159 = vadd.f32 0.0, %v2158
        %v2160 = vpop.f32.mrb[0].mxu0
        %v2161 = vpop.f32.mrb[0].mxu0
        %2162 = vdwg.mxu0
        %2163 = vmatprep.subr.bf16.mxu0 %v2120
        %2164 = vmatpush1.bf16.msra.mxu0 %v2117
        %2165 = vmatprep.subr.bf16.mxu0 0
        %2166 = vmatpush1.bf16.msra.mxu0 0
        %2167 = vmatprep.subr.bf16.mxu0 0
        %2168 = vmatpush1.bf16.msra.mxu0 0
        %2169 = vmatprep.subr.bf16.mxu0 0
        %2170 = vmatpush1.bf16.msra.mxu0 0
        %2171 = vmatprep.subr.bf16.mxu0 0
        %2172 = vmatpush1.bf16.msra.mxu0 0
        %2173 = vmatprep.subr.bf16.mxu0 0
        %2174 = vmatpush1.bf16.msra.mxu0 0
        %2175 = vmatprep.subr.bf16.mxu0 0
        %2176 = vmatpush1.bf16.msra.mxu0 0
        %2177 = vmatprep.subr.bf16.mxu0 0
        %2178 = vmatpush1.bf16.msra.mxu0 0
        %2179 = vmatprep.subr.bf16.mxu0 0
        %2180 = vmatpush1.bf16.msra.mxu0 0
        %2181 = vmatprep.subr.bf16.mxu0 0
        %2182 = vmatpush1.bf16.msra.mxu0 0
        %2183 = vmatprep.subr.bf16.mxu0 0
        %2184 = vmatpush1.bf16.msra.mxu0 0
        %2185 = vmatprep.subr.bf16.mxu0 0
        %2186 = vmatpush1.bf16.msra.mxu0 0
        %2187 = vmatprep.subr.bf16.mxu0 0
        %2188 = vmatpush1.bf16.msra.mxu0 0
        %2189 = vmatprep.subr.bf16.mxu0 0
        %2190 = vmatpush1.bf16.msra.mxu0 0
        %2191 = vmatprep.subr.bf16.mxu0 0
        %2192 = vmatpush1.bf16.msra.mxu0 0
        %2193 = vmatprep.subr.bf16.mxu0 0
        %2194 = vmatpush1.bf16.msra.mxu0 0
        %2195 = vmatprep.mubr.bf16.mxu0 0
        %2196 = vmatmul.mubr.bf16.gmra.mrb[0].mxu0 %v471
        %v2197 = vpop.f32.mrb[0].mxu0
        %v2198 = vadd.f32 0.0, %v2197
        %v2199 = vpop.f32.mrb[0].mxu0
        %v2200 = vadd.f32 0.0, %v2199
        %v2201 = vpop.f32.mrb[0].mxu0
        %v2202 = vpop.f32.mrb[0].mxu0
        %2203 = vdwg.mxu0
        %v2208 = vunpack.c.l.b16 %v2086
        %v2209 = vunpack.c.h.b16 %v2086
        %v2210 = vunpack.c.l.b16 %v2087
        %v2211 = vunpack.c.h.b16 %v2087
        %v2212 = vunpack.c.l.b16 %v2088
        %v2213 = vunpack.c.h.b16 %v2088
        %v2214 = vunpack.c.l.b16 %v2089
        %v2215 = vunpack.c.h.b16 %v2089
        %v2216 = vpack.c.b16 %v2212, %v2208
        %v2217 = vpack.c.b16 %v2213, %v2209
        %v2218 = vpack.c.b16 %v2214, %v2210
        %v2219 = vpack.c.b16 %v2215, %v2211
        %v2221 = vsel %vm588, %v2216, 0
        %v2224 = vsel %vm588, %v2217, 0
        %v2227 = vsel %vm588, %v2218, 0
        %v2230 = vsel %vm588, %v2219, 0
        %2232 = vmatprep.subr.bf16.mxu0 %v2224
        %2233 = vmatpush1.bf16.msra.mxu0 %v2221
        %2234 = vmatprep.subr.bf16.mxu0 0
        %2235 = vmatpush1.bf16.msra.mxu0 0
        %2236 = vmatprep.subr.bf16.mxu0 0
        %2237 = vmatpush1.bf16.msra.mxu0 0
        %2238 = vmatprep.subr.bf16.mxu0 0
        %2239 = vmatpush1.bf16.msra.mxu0 0
        %2240 = vmatprep.subr.bf16.mxu0 0
        %2241 = vmatpush1.bf16.msra.mxu0 0
        %2242 = vmatprep.subr.bf16.mxu0 0
        %2243 = vmatpush1.bf16.msra.mxu0 0
        %2244 = vmatprep.subr.bf16.mxu0 0
        %2245 = vmatpush1.bf16.msra.mxu0 0
        %2246 = vmatprep.subr.bf16.mxu0 0
        %2247 = vmatpush1.bf16.msra.mxu0 0
        %2248 = vmatprep.subr.bf16.mxu0 0
        %2249 = vmatpush1.bf16.msra.mxu0 0
        %2250 = vmatprep.subr.bf16.mxu0 0
        %2251 = vmatpush1.bf16.msra.mxu0 0
        %2252 = vmatprep.subr.bf16.mxu0 0
        %2253 = vmatpush1.bf16.msra.mxu0 0
        %2254 = vmatprep.subr.bf16.mxu0 0
        %2255 = vmatpush1.bf16.msra.mxu0 0
        %2256 = vmatprep.subr.bf16.mxu0 0
        %2257 = vmatpush1.bf16.msra.mxu0 0
        %2258 = vmatprep.subr.bf16.mxu0 0
        %2259 = vmatpush1.bf16.msra.mxu0 0
        %2260 = vmatprep.subr.bf16.mxu0 0
        %2261 = vmatpush1.bf16.msra.mxu0 0
        %2262 = vmatprep.subr.bf16.mxu0 0
        %2263 = vmatpush1.bf16.msra.mxu0 0
        %2264 = vmatprep.mubr.bf16.mxu0 0
        %2265 = vmatmul.mubr.bf16.gmra.mrb[0].mxu0 %v586
        %v2266 = vpop.f32.mrb[0].mxu0
        %v2267 = vadd.f32 %v2157, %v2266
        %v2268 = vpop.f32.mrb[0].mxu0
        %v2269 = vadd.f32 %v2159, %v2268
        %v2270 = vpop.f32.mrb[0].mxu0
        %v2271 = vpop.f32.mrb[0].mxu0
        %2272 = vdwg.mxu0
        %2273 = vmatprep.subr.bf16.mxu0 %v2230
        %2274 = vmatpush1.bf16.msra.mxu0 %v2227
        %2275 = vmatprep.subr.bf16.mxu0 0
        %2276 = vmatpush1.bf16.msra.mxu0 0
        %2277 = vmatprep.subr.bf16.mxu0 0
        %2278 = vmatpush1.bf16.msra.mxu0 0
        %2279 = vmatprep.subr.bf16.mxu0 0
        %2280 = vmatpush1.bf16.msra.mxu0 0
        %2281 = vmatprep.subr.bf16.mxu0 0
        %2282 = vmatpush1.bf16.msra.mxu0 0
        %2283 = vmatprep.subr.bf16.mxu0 0
        %2284 = vmatpush1.bf16.msra.mxu0 0
        %2285 = vmatprep.subr.bf16.mxu0 0
        %2286 = vmatpush1.bf16.msra.mxu0 0
        %2287 = vmatprep.subr.bf16.mxu0 0
        %2288 = vmatpush1.bf16.msra.mxu0 0
        %2289 = vmatprep.subr.bf16.mxu0 0
        %2290 = vmatpush1.bf16.msra.mxu0 0
        %2291 = vmatprep.subr.bf16.mxu0 0
        %2292 = vmatpush1.bf16.msra.mxu0 0
        %2293 = vmatprep.subr.bf16.mxu0 0
        %2294 = vmatpush1.bf16.msra.mxu0 0
        %2295 = vmatprep.subr.bf16.mxu0 0
        %2296 = vmatpush1.bf16.msra.mxu0 0
        %2297 = vmatprep.subr.bf16.mxu0 0
        %2298 = vmatpush1.bf16.msra.mxu0 0
        %2299 = vmatprep.subr.bf16.mxu0 0
        %2300 = vmatpush1.bf16.msra.mxu0 0
        %2301 = vmatprep.subr.bf16.mxu0 0
        %2302 = vmatpush1.bf16.msra.mxu0 0
        %2303 = vmatprep.subr.bf16.mxu0 0
        %2304 = vmatpush1.bf16.msra.mxu0 0
        %2305 = vmatprep.mubr.bf16.mxu0 0
        %2306 = vmatmul.mubr.bf16.gmra.mrb[0].mxu0 %v586
        %v2307 = vpop.f32.mrb[0].mxu0
        %v2308 = vadd.f32 %v2198, %v2307
        %v2309 = vpop.f32.mrb[0].mxu0
        %v2310 = vadd.f32 %v2200, %v2309
        %v2311 = vpop.f32.mrb[0].mxu0
        %v2312 = vpop.f32.mrb[0].mxu0
        %2313 = vdwg.mxu0
        %v2314 = vlaneseq
        %v2315 = vshrl.u32 %v2314, 7
        %v2316 = vsub.s32 0, %v2315
        %v2317 = vrot.slane %v2077, %v2316
        %v2318 = vlaneseq
        %v2319 = vshrl.u32 %v2318, 7
        %v2320 = vsub.s32 0, %v2319
        %v2321 = vrot.slane %v2078, %v2320
        %v2322 = vlaneseq
        %v2323 = vshrl.u32 %v2322, 7
        %v2324 = vsub.s32 0, %v2323
        %v2325 = vrot.slane %v2079, %v2324
        %v2326 = vlaneseq
        %v2327 = vshrl.u32 %v2326, 7
        %v2328 = vsub.s32 0, %v2327
        %v2329 = vrot.slane %v2080, %v2328
        %v2330 = vadd.f32 %v2267, %v2317
        %v2331 = vadd.f32 %v2269, %v2321
        %v2332 = vadd.f32 %v2308, %v2325
        %v2333 = vadd.f32 %v2310, %v2329
        %v2334 = vsel %vm473, %v2330, 0.0
        %v2335 = vsel %vm473, %v2331, 0.0
        %v2336 = vadd.f32 %v2334, %v2335
        %v2337 = vsel %vm473, %v2332, 0.0
        %v2338 = vadd.f32 %v2336, %v2337
        %v2339 = vsel %vm473, %v2333, 0.0
        %v2340 = vadd.f32 %v2338, %v2339
        %2341 = vadd.xlane.f32.xlu0 %v2340
        %v2342 = vpop.xlane.xlu0 %2341
        %v2343 = vmul.f32 %v2342, %v712
        %v2344 = vsub.f32 %v2330, %v2343
        %v2345 = vsub.f32 %v2331, %v2343
        %v2346 = vsub.f32 %v2332, %v2343
        %v2347 = vsub.f32 %v2333, %v2343
        %v2348 = vmul.f32 %v2344, %v2344
        %v2349 = vmul.f32 %v2345, %v2345
        %v2350 = vmul.f32 %v2346, %v2346
        %v2351 = vmul.f32 %v2347, %v2347
        %v2352 = vsel %vm473, %v2348, 0.0
        %v2353 = vsel %vm473, %v2349, 0.0
        %v2354 = vadd.f32 %v2352, %v2353
        %v2355 = vsel %vm473, %v2350, 0.0
        %v2356 = vadd.f32 %v2354, %v2355
        %v2357 = vsel %vm473, %v2351, 0.0
        %v2358 = vadd.f32 %v2356, %v2357
        %2359 = vadd.xlane.f32.xlu0 %v2358
        %v2360 = vpop.xlane.xlu0 %2359
        %v2361 = vmul.f32 %v2360, %v731
        %v2362 = vrsqrt.pop %v2361
        %v2363 = vmul.f32 %v2361, %v2362
        %vm2364 = vcmp.eq.f32.partialorder %v2361, inf
        %v2365 = vsel %vm2364, %v2361, %v2363
        %vm2366 = vcmp.eq.f32.partialorder %v2361, 0.0
        %v2367 = vand.u32 %v2361, 2147483648
        %v2368 = vsel %vm2366, %v2367, %v2365
        %v2369 = vadd.f32 %v2368, 1e-06
        %v2370 = vrcp.pop %v2369
        %v2371 = vmul.f32 %v2344, %v2370
        %v2372 = vmul.f32 %v2345, %v2370
        %v2373 = vmul.f32 %v2346, %v2370
        %v2374 = vmul.f32 %v2347, %v2370
        %v2375 = vlaneseq
        %v2376 = vshrl.u32 %v2375, 7
        %v2377 = vsub.s32 1, %v2376
        %v2378 = vrot.slane %v2077, %v2377
        %v2379 = vlaneseq
        %v2380 = vshrl.u32 %v2379, 7
        %v2381 = vsub.s32 1, %v2380
        %v2382 = vrot.slane %v2078, %v2381
        %v2383 = vlaneseq
        %v2384 = vshrl.u32 %v2383, 7
        %v2385 = vsub.s32 1, %v2384
        %v2386 = vrot.slane %v2079, %v2385
        %v2387 = vlaneseq
        %v2388 = vshrl.u32 %v2387, 7
        %v2389 = vsub.s32 1, %v2388
        %v2390 = vrot.slane %v2080, %v2389
        %v2391 = vmul.f32 %v2378, %v2371
        %v2392 = vmul.f32 %v2382, %v2372
        %v2393 = vmul.f32 %v2386, %v2373
        %v2394 = vmul.f32 %v2390, %v2374
        %v2395 = vlaneseq
        %v2396 = vshrl.u32 %v2395, 7
        %v2397 = vsub.s32 2, %v2396
        %v2398 = vrot.slane %v2077, %v2397
        %v2399 = vlaneseq
        %v2400 = vshrl.u32 %v2399, 7
        %v2401 = vsub.s32 2, %v2400
        %v2402 = vrot.slane %v2078, %v2401
        %v2403 = vlaneseq
        %v2404 = vshrl.u32 %v2403, 7
        %v2405 = vsub.s32 2, %v2404
        %v2406 = vrot.slane %v2079, %v2405
        %v2407 = vlaneseq
        %v2408 = vshrl.u32 %v2407, 7
        %v2409 = vsub.s32 2, %v2408
        %v2410 = vrot.slane %v2080, %v2409
        %v2411 = vadd.f32 %v2391, %v2398
        %v2412 = vadd.f32 %v2392, %v2402
        %v2413 = vadd.f32 %v2393, %v2406
        %v2414 = vadd.f32 %v2394, %v2410
        %v2415 = vmul.f32 %v2411, 0.01
        %v2416 = vmul.f32 %v2412, 0.01
        %v2417 = vmul.f32 %v2413, 0.01
        %v2418 = vmul.f32 %v2414, 0.01
        %v2419 = vmax.f32 %v2411, %v2415
        %v2420 = vmax.f32 %v2412, %v2416
        %v2421 = vmax.f32 %v2413, %v2417
        %v2422 = vmax.f32 %v2414, %v2418
        %s2423 = scalar_lea.vmem %s339, 512 [#allocation2]
        %v2424 = vld [vmem:[%s2423] sm:$0xff]
        %v2425 = vld [vmem:[%s2423 + $0x8] sm:$0xff]
        %v2426 = vld [vmem:[%s2423 + $0x10] sm:$0xff]
        %v2427 = vld [vmem:[%s2423 + $0x18] sm:$0xff]
        %v2428 = vld [vmem:[%s2423 + $0x20] sm:$0xff]
        %v2429 = vld [vmem:[%s2423 + $0x28] sm:$0xff]
        %v2430 = vld [vmem:[%s2423 + $0x30] sm:$0xff]
        %v2431 = vld [vmem:[%s2423 + $0x38] sm:$0xff]
        %v2432 = vld [vmem:[%s2423 + $0x40] sm:$0xff]
        %v2433 = vld [vmem:[%s2423 + $0x48] sm:$0xff]
        %v2434 = vld [vmem:[%s2423 + $0x50] sm:$0xff]
        %v2435 = vld [vmem:[%s2423 + $0x58] sm:$0xff]
        %v2436 = vld [vmem:[%s2423 + $0x60] sm:$0xff]
        %v2437 = vld [vmem:[%s2423 + $0x68] sm:$0xff]
        %v2438 = vld [vmem:[%s2423 + $0x70] sm:$0xff]
        %v2439 = vld [vmem:[%s2423 + $0x78] sm:$0xff]
        %v2440 = vld [vmem:[%s2423 + $0x80] sm:$0xff]
        %v2441 = vld [vmem:[%s2423 + $0x88] sm:$0xff]
        %v2442 = vld [vmem:[%s2423 + $0x90] sm:$0xff]
        %v2443 = vld [vmem:[%s2423 + $0x98] sm:$0xff]
        %v2444 = vld [vmem:[%s2423 + $0xa0] sm:$0xff]
        %v2445 = vld [vmem:[%s2423 + $0xa8] sm:$0xff]
        %v2446 = vld [vmem:[%s2423 + $0xb0] sm:$0xff]
        %v2447 = vld [vmem:[%s2423 + $0xb8] sm:$0xff]
        %v2448 = vld [vmem:[%s2423 + $0xc0] sm:$0xff]
        %v2449 = vld [vmem:[%s2423 + $0xc8] sm:$0xff]
        %v2450 = vld [vmem:[%s2423 + $0xd0] sm:$0xff]
        %v2451 = vld [vmem:[%s2423 + $0xd8] sm:$0xff]
        %v2452 = vld [vmem:[%s2423 + $0xe0] sm:$0xff]
        %v2453 = vld [vmem:[%s2423 + $0xe8] sm:$0xff]
        %v2454 = vld [vmem:[%s2423 + $0xf0] sm:$0xff]
        %v2455 = vld [vmem:[%s2423 + $0xf8] sm:$0xff]
        %v2456 = vld [vmem:[%s2423 + $0x100] sm:$0xff]
        %v2457 = vld [vmem:[%s2423 + $0x108] sm:$0xff]
        %v2458 = vld [vmem:[%s2423 + $0x110] sm:$0xff]
        %v2459 = vld [vmem:[%s2423 + $0x118] sm:$0xff]
        %v2460 = vld [vmem:[%s2423 + $0x120] sm:$0xff]
        %v2461 = vld [vmem:[%s2423 + $0x128] sm:$0xff]
        %v2462 = vld [vmem:[%s2423 + $0x130] sm:$0xff]
        %v2463 = vld [vmem:[%s2423 + $0x138] sm:$0xff]
        %v2464 = vld [vmem:[%s2423 + $0x140] sm:$0xff]
        %v2465 = vld [vmem:[%s2423 + $0x148] sm:$0xff]
        %v2466 = vld [vmem:[%s2423 + $0x150] sm:$0xff]
        %v2467 = vld [vmem:[%s2423 + $0x158] sm:$0xff]
        %v2468 = vld [vmem:[%s2423 + $0x160] sm:$0xff]
        %v2469 = vld [vmem:[%s2423 + $0x168] sm:$0xff]
        %v2470 = vld [vmem:[%s2423 + $0x170] sm:$0xff]
        %v2471 = vld [vmem:[%s2423 + $0x178] sm:$0xff]
        %v2472 = vld [vmem:[%s2423 + $0x180] sm:$0xff]
        %v2473 = vld [vmem:[%s2423 + $0x188] sm:$0xff]
        %v2474 = vld [vmem:[%s2423 + $0x190] sm:$0xff]
        %v2475 = vld [vmem:[%s2423 + $0x198] sm:$0xff]
        %v2476 = vld [vmem:[%s2423 + $0x1a0] sm:$0xff]
        %v2477 = vld [vmem:[%s2423 + $0x1a8] sm:$0xff]
        %v2478 = vld [vmem:[%s2423 + $0x1b0] sm:$0xff]
        %v2479 = vld [vmem:[%s2423 + $0x1b8] sm:$0xff]
        %v2480 = vld [vmem:[%s2423 + $0x1c0] sm:$0xff]
        %v2481 = vld [vmem:[%s2423 + $0x1c8] sm:$0xff]
        %v2482 = vld [vmem:[%s2423 + $0x1d0] sm:$0xff]
        %v2483 = vld [vmem:[%s2423 + $0x1d8] sm:$0xff]
        %v2484 = vld [vmem:[%s2423 + $0x1e0] sm:$0xff]
        %v2485 = vld [vmem:[%s2423 + $0x1e8] sm:$0xff]
        %v2486 = vld [vmem:[%s2423 + $0x1f0] sm:$0xff]
        %v2487 = vld [vmem:[%s2423 + $0x1f8] sm:$0xff]
        %v2488 = vunpack.c.l.s8.bf16 %v2424
        %v2489 = vunpack.c.l.s8.bf16 %v2425
        %v2490 = vunpack.c.l.s8.bf16 %v2426
        %v2491 = vunpack.c.l.s8.bf16 %v2427
        %v2492 = vunpack.c.h.s8.bf16 %v2424
        %v2493 = vunpack.c.h.s8.bf16 %v2425
        %v2494 = vunpack.c.h.s8.bf16 %v2426
        %v2495 = vunpack.c.h.s8.bf16 %v2427
        %v2496 = vunpack.c.l.s8.bf16 %v2428
        %v2497 = vunpack.c.l.s8.bf16 %v2429
        %v2498 = vunpack.c.l.s8.bf16 %v2430
        %v2499 = vunpack.c.l.s8.bf16 %v2431
        %v2500 = vunpack.c.h.s8.bf16 %v2428
        %v2501 = vunpack.c.h.s8.bf16 %v2429
        %v2502 = vunpack.c.h.s8.bf16 %v2430
        %v2503 = vunpack.c.h.s8.bf16 %v2431
        %v2504 = vunpack.c.l.s8.bf16 %v2432
        %v2505 = vunpack.c.l.s8.bf16 %v2433
        %v2506 = vunpack.c.l.s8.bf16 %v2434
        %v2507 = vunpack.c.l.s8.bf16 %v2435
        %v2508 = vunpack.c.h.s8.bf16 %v2432
        %v2509 = vunpack.c.h.s8.bf16 %v2433
        %v2510 = vunpack.c.h.s8.bf16 %v2434
        %v2511 = vunpack.c.h.s8.bf16 %v2435
        %v2512 = vunpack.c.l.s8.bf16 %v2436
        %v2513 = vunpack.c.l.s8.bf16 %v2437
        %v2514 = vunpack.c.l.s8.bf16 %v2438
        %v2515 = vunpack.c.l.s8.bf16 %v2439
        %v2516 = vunpack.c.h.s8.bf16 %v2436
        %v2517 = vunpack.c.h.s8.bf16 %v2437
        %v2518 = vunpack.c.h.s8.bf16 %v2438
        %v2519 = vunpack.c.h.s8.bf16 %v2439
        %v2520 = vunpack.c.l.s8.bf16 %v2440
        %v2521 = vunpack.c.l.s8.bf16 %v2441
        %v2522 = vunpack.c.l.s8.bf16 %v2442
        %v2523 = vunpack.c.l.s8.bf16 %v2443
        %v2524 = vunpack.c.h.s8.bf16 %v2440
        %v2525 = vunpack.c.h.s8.bf16 %v2441
        %v2526 = vunpack.c.h.s8.bf16 %v2442
        %v2527 = vunpack.c.h.s8.bf16 %v2443
        %v2528 = vunpack.c.l.s8.bf16 %v2444
        %v2529 = vunpack.c.l.s8.bf16 %v2445
        %v2530 = vunpack.c.l.s8.bf16 %v2446
        %v2531 = vunpack.c.l.s8.bf16 %v2447
        %v2532 = vunpack.c.h.s8.bf16 %v2444
        %v2533 = vunpack.c.h.s8.bf16 %v2445
        %v2534 = vunpack.c.h.s8.bf16 %v2446
        %v2535 = vunpack.c.h.s8.bf16 %v2447
        %v2536 = vunpack.c.l.s8.bf16 %v2448
        %v2537 = vunpack.c.l.s8.bf16 %v2449
        %v2538 = vunpack.c.l.s8.bf16 %v2450
        %v2539 = vunpack.c.l.s8.bf16 %v2451
        %v2540 = vunpack.c.h.s8.bf16 %v2448
        %v2541 = vunpack.c.h.s8.bf16 %v2449
        %v2542 = vunpack.c.h.s8.bf16 %v2450
        %v2543 = vunpack.c.h.s8.bf16 %v2451
        %v2544 = vunpack.c.l.s8.bf16 %v2452
        %v2545 = vunpack.c.l.s8.bf16 %v2453
        %v2546 = vunpack.c.l.s8.bf16 %v2454
        %v2547 = vunpack.c.l.s8.bf16 %v2455
        %v2548 = vunpack.c.h.s8.bf16 %v2452
        %v2549 = vunpack.c.h.s8.bf16 %v2453
        %v2550 = vunpack.c.h.s8.bf16 %v2454
        %v2551 = vunpack.c.h.s8.bf16 %v2455
        %v2552 = vunpack.c.l.s8.bf16 %v2456
        %v2553 = vunpack.c.l.s8.bf16 %v2457
        %v2554 = vunpack.c.l.s8.bf16 %v2458
        %v2555 = vunpack.c.l.s8.bf16 %v2459
        %v2556 = vunpack.c.h.s8.bf16 %v2456
        %v2557 = vunpack.c.h.s8.bf16 %v2457
        %v2558 = vunpack.c.h.s8.bf16 %v2458
        %v2559 = vunpack.c.h.s8.bf16 %v2459
        %v2560 = vunpack.c.l.s8.bf16 %v2460
        %v2561 = vunpack.c.l.s8.bf16 %v2461
        %v2562 = vunpack.c.l.s8.bf16 %v2462
        %v2563 = vunpack.c.l.s8.bf16 %v2463
        %v2564 = vunpack.c.h.s8.bf16 %v2460
        %v2565 = vunpack.c.h.s8.bf16 %v2461
        %v2566 = vunpack.c.h.s8.bf16 %v2462
        %v2567 = vunpack.c.h.s8.bf16 %v2463
        %v2568 = vunpack.c.l.s8.bf16 %v2464
        %v2569 = vunpack.c.l.s8.bf16 %v2465
        %v2570 = vunpack.c.l.s8.bf16 %v2466
        %v2571 = vunpack.c.l.s8.bf16 %v2467
        %v2572 = vunpack.c.h.s8.bf16 %v2464
        %v2573 = vunpack.c.h.s8.bf16 %v2465
        %v2574 = vunpack.c.h.s8.bf16 %v2466
        %v2575 = vunpack.c.h.s8.bf16 %v2467
        %v2576 = vunpack.c.l.s8.bf16 %v2468
        %v2577 = vunpack.c.l.s8.bf16 %v2469
        %v2578 = vunpack.c.l.s8.bf16 %v2470
        %v2579 = vunpack.c.l.s8.bf16 %v2471
        %v2580 = vunpack.c.h.s8.bf16 %v2468
        %v2581 = vunpack.c.h.s8.bf16 %v2469
        %v2582 = vunpack.c.h.s8.bf16 %v2470
        %v2583 = vunpack.c.h.s8.bf16 %v2471
        %v2584 = vunpack.c.l.s8.bf16 %v2472
        %v2585 = vunpack.c.l.s8.bf16 %v2473
        %v2586 = vunpack.c.l.s8.bf16 %v2474
        %v2587 = vunpack.c.l.s8.bf16 %v2475
        %v2588 = vunpack.c.h.s8.bf16 %v2472
        %v2589 = vunpack.c.h.s8.bf16 %v2473
        %v2590 = vunpack.c.h.s8.bf16 %v2474
        %v2591 = vunpack.c.h.s8.bf16 %v2475
        %v2592 = vunpack.c.l.s8.bf16 %v2476
        %v2593 = vunpack.c.l.s8.bf16 %v2477
        %v2594 = vunpack.c.l.s8.bf16 %v2478
        %v2595 = vunpack.c.l.s8.bf16 %v2479
        %v2596 = vunpack.c.h.s8.bf16 %v2476
        %v2597 = vunpack.c.h.s8.bf16 %v2477
        %v2598 = vunpack.c.h.s8.bf16 %v2478
        %v2599 = vunpack.c.h.s8.bf16 %v2479
        %v2600 = vunpack.c.l.s8.bf16 %v2480
        %v2601 = vunpack.c.l.s8.bf16 %v2481
        %v2602 = vunpack.c.l.s8.bf16 %v2482
        %v2603 = vunpack.c.l.s8.bf16 %v2483
        %v2604 = vunpack.c.h.s8.bf16 %v2480
        %v2605 = vunpack.c.h.s8.bf16 %v2481
        %v2606 = vunpack.c.h.s8.bf16 %v2482
        %v2607 = vunpack.c.h.s8.bf16 %v2483
        %v2608 = vunpack.c.l.s8.bf16 %v2484
        %v2609 = vunpack.c.l.s8.bf16 %v2485
        %v2610 = vunpack.c.l.s8.bf16 %v2486
        %v2611 = vunpack.c.l.s8.bf16 %v2487
        %v2612 = vunpack.c.h.s8.bf16 %v2484
        %v2613 = vunpack.c.h.s8.bf16 %v2485
        %v2614 = vunpack.c.h.s8.bf16 %v2486
        %v2615 = vunpack.c.h.s8.bf16 %v2487
        %v2616 = vpack.c.bf16 %v2081, %v2081
        %v2617 = vpack.c.bf16 %v2082, %v2082
        %v2618 = vpack.c.bf16 %v2083, %v2083
        %v2619 = vpack.c.bf16 %v2084, %v2084
        %v2621 = vshrl.u32 %v2616, 16
        %v2622 = vpack.i.b16 %v2621, %v2621
        %v2624 = vlaneseq
        %v2625 = vshrl.u32 %v2624, 7
        %v2626 = vsub.s32 1, %v2625
        %v2627 = vrot.slane %v2622, %v2626
        %v2629 = vshrl.u32 %v2617, 16
        %v2630 = vpack.i.b16 %v2629, %v2629
        %v2632 = vlaneseq
        %v2633 = vshrl.u32 %v2632, 7
        %v2634 = vsub.s32 1, %v2633
        %v2635 = vrot.slane %v2630, %v2634
        %v2637 = vshrl.u32 %v2618, 16
        %v2638 = vpack.i.b16 %v2637, %v2637
        %v2640 = vlaneseq
        %v2641 = vshrl.u32 %v2640, 7
        %v2642 = vsub.s32 1, %v2641
        %v2643 = vrot.slane %v2638, %v2642
        %v2645 = vshrl.u32 %v2619, 16
        %v2646 = vpack.i.b16 %v2645, %v2645
        %v2648 = vlaneseq
        %v2649 = vshrl.u32 %v2648, 7
        %v2650 = vsub.s32 1, %v2649
        %v2651 = vrot.slane %v2646, %v2650
        %v2652 = vmul.bf16 %v2488, %v2627
        %v2653 = vmul.bf16 %v2489, %v2635
        %v2654 = vmul.bf16 %v2490, %v2643
        %v2655 = vmul.bf16 %v2491, %v2651
        %v2656 = vmul.bf16 %v2492, %v2627
        %v2657 = vmul.bf16 %v2493, %v2635
        %v2658 = vmul.bf16 %v2494, %v2643
        %v2659 = vmul.bf16 %v2495, %v2651
        %v2660 = vmul.bf16 %v2496, %v2627
        %v2661 = vmul.bf16 %v2497, %v2635
        %v2662 = vmul.bf16 %v2498, %v2643
        %v2663 = vmul.bf16 %v2499, %v2651
        %v2664 = vmul.bf16 %v2500, %v2627
        %v2665 = vmul.bf16 %v2501, %v2635
        %v2666 = vmul.bf16 %v2502, %v2643
        %v2667 = vmul.bf16 %v2503, %v2651
        %v2668 = vmul.bf16 %v2504, %v2627
        %v2669 = vmul.bf16 %v2505, %v2635
        %v2670 = vmul.bf16 %v2506, %v2643
        %v2671 = vmul.bf16 %v2507, %v2651
        %v2672 = vmul.bf16 %v2508, %v2627
        %v2673 = vmul.bf16 %v2509, %v2635
        %v2674 = vmul.bf16 %v2510, %v2643
        %v2675 = vmul.bf16 %v2511, %v2651
        %v2676 = vmul.bf16 %v2512, %v2627
        %v2677 = vmul.bf16 %v2513, %v2635
        %v2678 = vmul.bf16 %v2514, %v2643
        %v2679 = vmul.bf16 %v2515, %v2651
        %v2680 = vmul.bf16 %v2516, %v2627
        %v2681 = vmul.bf16 %v2517, %v2635
        %v2682 = vmul.bf16 %v2518, %v2643
        %v2683 = vmul.bf16 %v2519, %v2651
        %v2684 = vmul.bf16 %v2520, %v2627
        %v2685 = vmul.bf16 %v2521, %v2635
        %v2686 = vmul.bf16 %v2522, %v2643
        %v2687 = vmul.bf16 %v2523, %v2651
        %v2688 = vmul.bf16 %v2524, %v2627
        %v2689 = vmul.bf16 %v2525, %v2635
        %v2690 = vmul.bf16 %v2526, %v2643
        %v2691 = vmul.bf16 %v2527, %v2651
        %v2692 = vmul.bf16 %v2528, %v2627
        %v2693 = vmul.bf16 %v2529, %v2635
        %v2694 = vmul.bf16 %v2530, %v2643
        %v2695 = vmul.bf16 %v2531, %v2651
        %v2696 = vmul.bf16 %v2532, %v2627
        %v2697 = vmul.bf16 %v2533, %v2635
        %v2698 = vmul.bf16 %v2534, %v2643
        %v2699 = vmul.bf16 %v2535, %v2651
        %v2700 = vmul.bf16 %v2536, %v2627
        %v2701 = vmul.bf16 %v2537, %v2635
        %v2702 = vmul.bf16 %v2538, %v2643
        %v2703 = vmul.bf16 %v2539, %v2651
        %v2704 = vmul.bf16 %v2540, %v2627
        %v2705 = vmul.bf16 %v2541, %v2635
        %v2706 = vmul.bf16 %v2542, %v2643
        %v2707 = vmul.bf16 %v2543, %v2651
        %v2708 = vmul.bf16 %v2544, %v2627
        %v2709 = vmul.bf16 %v2545, %v2635
        %v2710 = vmul.bf16 %v2546, %v2643
        %v2711 = vmul.bf16 %v2547, %v2651
        %v2712 = vmul.bf16 %v2548, %v2627
        %v2713 = vmul.bf16 %v2549, %v2635
        %v2714 = vmul.bf16 %v2550, %v2643
        %v2715 = vmul.bf16 %v2551, %v2651
        %v2716 = vmul.bf16 %v2552, %v2627
        %v2717 = vmul.bf16 %v2553, %v2635
        %v2718 = vmul.bf16 %v2554, %v2643
        %v2719 = vmul.bf16 %v2555, %v2651
        %v2720 = vmul.bf16 %v2556, %v2627
        %v2721 = vmul.bf16 %v2557, %v2635
        %v2722 = vmul.bf16 %v2558, %v2643
        %v2723 = vmul.bf16 %v2559, %v2651
        %v2724 = vmul.bf16 %v2560, %v2627
        %v2725 = vmul.bf16 %v2561, %v2635
        %v2726 = vmul.bf16 %v2562, %v2643
        %v2727 = vmul.bf16 %v2563, %v2651
        %v2728 = vmul.bf16 %v2564, %v2627
        %v2729 = vmul.bf16 %v2565, %v2635
        %v2730 = vmul.bf16 %v2566, %v2643
        %v2731 = vmul.bf16 %v2567, %v2651
        %v2732 = vmul.bf16 %v2568, %v2627
        %v2733 = vmul.bf16 %v2569, %v2635
        %v2734 = vmul.bf16 %v2570, %v2643
        %v2735 = vmul.bf16 %v2571, %v2651
        %v2736 = vmul.bf16 %v2572, %v2627
        %v2737 = vmul.bf16 %v2573, %v2635
        %v2738 = vmul.bf16 %v2574, %v2643
        %v2739 = vmul.bf16 %v2575, %v2651
        %v2740 = vmul.bf16 %v2576, %v2627
        %v2741 = vmul.bf16 %v2577, %v2635
        %v2742 = vmul.bf16 %v2578, %v2643
        %v2743 = vmul.bf16 %v2579, %v2651
        %v2744 = vmul.bf16 %v2580, %v2627
        %v2745 = vmul.bf16 %v2581, %v2635
        %v2746 = vmul.bf16 %v2582, %v2643
        %v2747 = vmul.bf16 %v2583, %v2651
        %v2748 = vmul.bf16 %v2584, %v2627
        %v2749 = vmul.bf16 %v2585, %v2635
        %v2750 = vmul.bf16 %v2586, %v2643
        %v2751 = vmul.bf16 %v2587, %v2651
        %v2752 = vmul.bf16 %v2588, %v2627
        %v2753 = vmul.bf16 %v2589, %v2635
        %v2754 = vmul.bf16 %v2590, %v2643
        %v2755 = vmul.bf16 %v2591, %v2651
        %v2756 = vmul.bf16 %v2592, %v2627
        %v2757 = vmul.bf16 %v2593, %v2635
        %v2758 = vmul.bf16 %v2594, %v2643
        %v2759 = vmul.bf16 %v2595, %v2651
        %v2760 = vmul.bf16 %v2596, %v2627
        %v2761 = vmul.bf16 %v2597, %v2635
        %v2762 = vmul.bf16 %v2598, %v2643
        %v2763 = vmul.bf16 %v2599, %v2651
        %v2764 = vmul.bf16 %v2600, %v2627
        %v2765 = vmul.bf16 %v2601, %v2635
        %v2766 = vmul.bf16 %v2602, %v2643
        %v2767 = vmul.bf16 %v2603, %v2651
        %v2768 = vmul.bf16 %v2604, %v2627
        %v2769 = vmul.bf16 %v2605, %v2635
        %v2770 = vmul.bf16 %v2606, %v2643
        %v2771 = vmul.bf16 %v2607, %v2651
        %v2772 = vmul.bf16 %v2608, %v2627
        %v2773 = vmul.bf16 %v2609, %v2635
        %v2774 = vmul.bf16 %v2610, %v2643
        %v2775 = vmul.bf16 %v2611, %v2651
        %v2776 = vmul.bf16 %v2612, %v2627
        %v2777 = vmul.bf16 %v2613, %v2635
        %v2778 = vmul.bf16 %v2614, %v2643
        %v2779 = vmul.bf16 %v2615, %v2651
        %v2780 = vpack.c.bf16 %v2419, %v2419
        %v2781 = vpack.c.bf16 %v2420, %v2420
        %v2782 = vpack.c.bf16 %v2421, %v2421
        %v2783 = vpack.c.bf16 %v2422, %v2422
        %v2784 = vlaneseq
        %v2785 = vshrl.u32 %v2784, 7
        %v2786 = vsub.s32 3, %v2785
        %v2787 = vrot.slane %v2077, %v2786
        %v2788 = vlaneseq
        %v2789 = vshrl.u32 %v2788, 7
        %v2790 = vsub.s32 3, %v2789
        %v2791 = vrot.slane %v2078, %v2790
        %v2792 = vlaneseq
        %v2793 = vshrl.u32 %v2792, 7
        %v2794 = vsub.s32 3, %v2793
        %v2795 = vrot.slane %v2079, %v2794
        %v2796 = vlaneseq
        %v2797 = vshrl.u32 %v2796, 7
        %v2798 = vsub.s32 3, %v2797
        %v2799 = vrot.slane %v2080, %v2798
        %2800 = vmatprep.subr.bf16.mxu0 %v2653
        %2801 = vmatpush1.bf16.msra.mxu0 %v2652
        %2802 = vmatprep.subr.bf16.mxu0 %v2657
        %2803 = vmatpush1.bf16.msra.mxu0 %v2656
        %2804 = vmatprep.subr.bf16.mxu0 %v2661
        %2805 = vmatpush1.bf16.msra.mxu0 %v2660
        %2806 = vmatprep.subr.bf16.mxu0 %v2665
        %2807 = vmatpush1.bf16.msra.mxu0 %v2664
        %2808 = vmatprep.subr.bf16.mxu0 %v2669
        %2809 = vmatpush1.bf16.msra.mxu0 %v2668
        %2810 = vmatprep.subr.bf16.mxu0 %v2673
        %2811 = vmatpush1.bf16.msra.mxu0 %v2672
        %2812 = vmatprep.subr.bf16.mxu0 %v2677
        %2813 = vmatpush1.bf16.msra.mxu0 %v2676
        %2814 = vmatprep.subr.bf16.mxu0 %v2681
        %2815 = vmatpush1.bf16.msra.mxu0 %v2680
        %2816 = vmatprep.subr.bf16.mxu0 %v2685
        %2817 = vmatpush1.bf16.msra.mxu0 %v2684
        %2818 = vmatprep.subr.bf16.mxu0 %v2689
        %2819 = vmatpush1.bf16.msra.mxu0 %v2688
        %2820 = vmatprep.subr.bf16.mxu0 %v2693
        %2821 = vmatpush1.bf16.msra.mxu0 %v2692
        %2822 = vmatprep.subr.bf16.mxu0 %v2697
        %2823 = vmatpush1.bf16.msra.mxu0 %v2696
        %2824 = vmatprep.subr.bf16.mxu0 %v2701
        %2825 = vmatpush1.bf16.msra.mxu0 %v2700
        %2826 = vmatprep.subr.bf16.mxu0 %v2705
        %2827 = vmatpush1.bf16.msra.mxu0 %v2704
        %2828 = vmatprep.subr.bf16.mxu0 %v2709
        %2829 = vmatpush1.bf16.msra.mxu0 %v2708
        %2830 = vmatprep.subr.bf16.mxu0 %v2713
        %2831 = vmatpush1.bf16.msra.mxu0 %v2712
        %2832 = vmatprep.mubr.bf16.mxu0 %v2781
        %2833 = vmatmul.mubr.bf16.gmra.mrb[0].mxu0 %v2780
        %v2834 = vpop.f32.mrb[0].mxu0
        %v2835 = vadd.f32 %v2787, %v2834
        %v2836 = vpop.f32.mrb[0].mxu0
        %v2837 = vadd.f32 %v2791, %v2836
        %v2838 = vpop.f32.mrb[0].mxu0
        %v2839 = vpop.f32.mrb[0].mxu0
        %2840 = vdwg.mxu0
        %2841 = vmatprep.subr.bf16.mxu0 %v2717
        %2842 = vmatpush1.bf16.msra.mxu0 %v2716
        %2843 = vmatprep.subr.bf16.mxu0 %v2721
        %2844 = vmatpush1.bf16.msra.mxu0 %v2720
        %2845 = vmatprep.subr.bf16.mxu0 %v2725
        %2846 = vmatpush1.bf16.msra.mxu0 %v2724
        %2847 = vmatprep.subr.bf16.mxu0 %v2729
        %2848 = vmatpush1.bf16.msra.mxu0 %v2728
        %2849 = vmatprep.subr.bf16.mxu0 %v2733
        %2850 = vmatpush1.bf16.msra.mxu0 %v2732
        %2851 = vmatprep.subr.bf16.mxu0 %v2737
        %2852 = vmatpush1.bf16.msra.mxu0 %v2736
        %2853 = vmatprep.subr.bf16.mxu0 %v2741
        %2854 = vmatpush1.bf16.msra.mxu0 %v2740
        %2855 = vmatprep.subr.bf16.mxu0 %v2745
        %2856 = vmatpush1.bf16.msra.mxu0 %v2744
        %2857 = vmatprep.subr.bf16.mxu0 %v2749
        %2858 = vmatpush1.bf16.msra.mxu0 %v2748
        %2859 = vmatprep.subr.bf16.mxu0 %v2753
        %2860 = vmatpush1.bf16.msra.mxu0 %v2752
        %2861 = vmatprep.subr.bf16.mxu0 %v2757
        %2862 = vmatpush1.bf16.msra.mxu0 %v2756
        %2863 = vmatprep.subr.bf16.mxu0 %v2761
        %2864 = vmatpush1.bf16.msra.mxu0 %v2760
        %2865 = vmatprep.subr.bf16.mxu0 %v2765
        %2866 = vmatpush1.bf16.msra.mxu0 %v2764
        %2867 = vmatprep.subr.bf16.mxu0 %v2769
        %2868 = vmatpush1.bf16.msra.mxu0 %v2768
        %2869 = vmatprep.subr.bf16.mxu0 %v2773
        %2870 = vmatpush1.bf16.msra.mxu0 %v2772
        %2871 = vmatprep.subr.bf16.mxu0 %v2777
        %2872 = vmatpush1.bf16.msra.mxu0 %v2776
        %2873 = vmatprep.mubr.bf16.mxu0 %v2783
        %2874 = vmatmul.mubr.bf16.gmra.mrb[0].mxu0 %v2782
        %v2875 = vpop.f32.mrb[0].mxu0
        %v2876 = vadd.f32 %v2835, %v2875
        %v2877 = vpop.f32.mrb[0].mxu0
        %v2878 = vadd.f32 %v2837, %v2877
        %v2879 = vpop.f32.mrb[0].mxu0
        %v2880 = vpop.f32.mrb[0].mxu0
        %2881 = vdwg.mxu0
        %2882 = vmatprep.subr.bf16.mxu0 %v2655
        %2883 = vmatpush1.bf16.msra.mxu0 %v2654
        %2884 = vmatprep.subr.bf16.mxu0 %v2659
        %2885 = vmatpush1.bf16.msra.mxu0 %v2658
        %2886 = vmatprep.subr.bf16.mxu0 %v2663
        %2887 = vmatpush1.bf16.msra.mxu0 %v2662
        %2888 = vmatprep.subr.bf16.mxu0 %v2667
        %2889 = vmatpush1.bf16.msra.mxu0 %v2666
        %2890 = vmatprep.subr.bf16.mxu0 %v2671
        %2891 = vmatpush1.bf16.msra.mxu0 %v2670
        %2892 = vmatprep.subr.bf16.mxu0 %v2675
        %2893 = vmatpush1.bf16.msra.mxu0 %v2674
        %2894 = vmatprep.subr.bf16.mxu0 %v2679
        %2895 = vmatpush1.bf16.msra.mxu0 %v2678
        %2896 = vmatprep.subr.bf16.mxu0 %v2683
        %2897 = vmatpush1.bf16.msra.mxu0 %v2682
        %2898 = vmatprep.subr.bf16.mxu0 %v2687
        %2899 = vmatpush1.bf16.msra.mxu0 %v2686
        %2900 = vmatprep.subr.bf16.mxu0 %v2691
        %2901 = vmatpush1.bf16.msra.mxu0 %v2690
        %2902 = vmatprep.subr.bf16.mxu0 %v2695
        %2903 = vmatpush1.bf16.msra.mxu0 %v2694
        %2904 = vmatprep.subr.bf16.mxu0 %v2699
        %2905 = vmatpush1.bf16.msra.mxu0 %v2698
        %2906 = vmatprep.subr.bf16.mxu0 %v2703
        %2907 = vmatpush1.bf16.msra.mxu0 %v2702
        %2908 = vmatprep.subr.bf16.mxu0 %v2707
        %2909 = vmatpush1.bf16.msra.mxu0 %v2706
        %2910 = vmatprep.subr.bf16.mxu0 %v2711
        %2911 = vmatpush1.bf16.msra.mxu0 %v2710
        %2912 = vmatprep.subr.bf16.mxu0 %v2715
        %2913 = vmatpush1.bf16.msra.mxu0 %v2714
        %2914 = vmatprep.mubr.bf16.mxu0 %v2781
        %2915 = vmatmul.mubr.bf16.gmra.mrb[0].mxu0 %v2780
        %v2916 = vpop.f32.mrb[0].mxu0
        %v2917 = vadd.f32 %v2795, %v2916
        %v2918 = vpop.f32.mrb[0].mxu0
        %v2919 = vadd.f32 %v2799, %v2918
        %v2920 = vpop.f32.mrb[0].mxu0
        %v2921 = vpop.f32.mrb[0].mxu0
        %2922 = vdwg.mxu0
        %2923 = vmatprep.subr.bf16.mxu0 %v2719
        %2924 = vmatpush1.bf16.msra.mxu0 %v2718
        %2925 = vmatprep.subr.bf16.mxu0 %v2723
        %2926 = vmatpush1.bf16.msra.mxu0 %v2722
        %2927 = vmatprep.subr.bf16.mxu0 %v2727
        %2928 = vmatpush1.bf16.msra.mxu0 %v2726
        %2929 = vmatprep.subr.bf16.mxu0 %v2731
        %2930 = vmatpush1.bf16.msra.mxu0 %v2730
        %2931 = vmatprep.subr.bf16.mxu0 %v2735
        %2932 = vmatpush1.bf16.msra.mxu0 %v2734
        %2933 = vmatprep.subr.bf16.mxu0 %v2739
        %2934 = vmatpush1.bf16.msra.mxu0 %v2738
        %2935 = vmatprep.subr.bf16.mxu0 %v2743
        %2936 = vmatpush1.bf16.msra.mxu0 %v2742
        %2937 = vmatprep.subr.bf16.mxu0 %v2747
        %2938 = vmatpush1.bf16.msra.mxu0 %v2746
        %2939 = vmatprep.subr.bf16.mxu0 %v2751
        %2940 = vmatpush1.bf16.msra.mxu0 %v2750
        %2941 = vmatprep.subr.bf16.mxu0 %v2755
        %2942 = vmatpush1.bf16.msra.mxu0 %v2754
        %2943 = vmatprep.subr.bf16.mxu0 %v2759
        %2944 = vmatpush1.bf16.msra.mxu0 %v2758
        %2945 = vmatprep.subr.bf16.mxu0 %v2763
        %2946 = vmatpush1.bf16.msra.mxu0 %v2762
        %2947 = vmatprep.subr.bf16.mxu0 %v2767
        %2948 = vmatpush1.bf16.msra.mxu0 %v2766
        %2949 = vmatprep.subr.bf16.mxu0 %v2771
        %2950 = vmatpush1.bf16.msra.mxu0 %v2770
        %2951 = vmatprep.subr.bf16.mxu0 %v2775
        %2952 = vmatpush1.bf16.msra.mxu0 %v2774
        %2953 = vmatprep.subr.bf16.mxu0 %v2779
        %2954 = vmatpush1.bf16.msra.mxu0 %v2778
        %2955 = vmatprep.mubr.bf16.mxu0 %v2783
        %2956 = vmatmul.mubr.bf16.gmra.mrb[0].mxu0 %v2782
        %v2957 = vpop.f32.mrb[0].mxu0
        %v2958 = vadd.f32 %v2917, %v2957
        %v2959 = vpop.f32.mrb[0].mxu0
        %v2960 = vadd.f32 %v2919, %v2959
        %v2961 = vpop.f32.mrb[0].mxu0
        %v2962 = vpop.f32.mrb[0].mxu0
        %2963 = vdwg.mxu0
        %v2964 = vsel %vm473, %v2876, 0.0
        %v2965 = vsel %vm473, %v2878, 0.0
        %v2966 = vadd.f32 %v2964, %v2965
        %v2967 = vsel %vm473, %v2958, 0.0
        %v2968 = vadd.f32 %v2966, %v2967
        %v2969 = vsel %vm473, %v2960, 0.0
        %v2970 = vadd.f32 %v2968, %v2969
        %2971 = vadd.xlane.f32.xlu0 %v2970
        %v2972 = vpop.xlane.xlu0 %2971
        %v2973 = vmul.f32 %v2972, %v712
        %v2974 = vsub.f32 %v2876, %v2973
        %v2975 = vsub.f32 %v2878, %v2973
        %v2976 = vsub.f32 %v2958, %v2973
        %v2977 = vsub.f32 %v2960, %v2973
        %v2978 = vmul.f32 %v2974, %v2974
        %v2979 = vmul.f32 %v2975, %v2975
        %v2980 = vmul.f32 %v2976, %v2976
        %v2981 = vmul.f32 %v2977, %v2977
        %v2982 = vsel %vm473, %v2978, 0.0
        %v2983 = vsel %vm473, %v2979, 0.0
        %v2984 = vadd.f32 %v2982, %v2983
        %v2985 = vsel %vm473, %v2980, 0.0
        %v2986 = vadd.f32 %v2984, %v2985
        %v2987 = vsel %vm473, %v2981, 0.0
        %v2988 = vadd.f32 %v2986, %v2987
        %2989 = vadd.xlane.f32.xlu0 %v2988
        %v2990 = vpop.xlane.xlu0 %2989
        %v2991 = vmul.f32 %v2990, %v731
        %v2992 = vrsqrt.pop %v2991
        %v2993 = vmul.f32 %v2991, %v2992
        %vm2994 = vcmp.eq.f32.partialorder %v2991, inf
        %v2995 = vsel %vm2994, %v2991, %v2993
        %vm2996 = vcmp.eq.f32.partialorder %v2991, 0.0
        %v2997 = vand.u32 %v2991, 2147483648
        %v2998 = vsel %vm2996, %v2997, %v2995
        %v2999 = vadd.f32 %v2998, 1e-06
        %v3000 = vrcp.pop %v2999
        %v3001 = vmul.f32 %v2974, %v3000
        %v3002 = vmul.f32 %v2975, %v3000
        %v3003 = vmul.f32 %v2976, %v3000
        %v3004 = vmul.f32 %v2977, %v3000
        %v3005 = vlaneseq
        %v3006 = vshrl.u32 %v3005, 7
        %v3007 = vsub.s32 4, %v3006
        %v3008 = vrot.slane %v2077, %v3007
        %v3009 = vlaneseq
        %v3010 = vshrl.u32 %v3009, 7
        %v3011 = vsub.s32 4, %v3010
        %v3012 = vrot.slane %v2078, %v3011
        %v3013 = vlaneseq
        %v3014 = vshrl.u32 %v3013, 7
        %v3015 = vsub.s32 4, %v3014
        %v3016 = vrot.slane %v2079, %v3015
        %v3017 = vlaneseq
        %v3018 = vshrl.u32 %v3017, 7
        %v3019 = vsub.s32 4, %v3018
        %v3020 = vrot.slane %v2080, %v3019
        %v3021 = vmul.f32 %v3008, %v3001
        %v3022 = vmul.f32 %v3012, %v3002
        %v3023 = vmul.f32 %v3016, %v3003
        %v3024 = vmul.f32 %v3020, %v3004
        %v3025 = vlaneseq
        %v3026 = vshrl.u32 %v3025, 7
        %v3027 = vsub.s32 5, %v3026
        %v3028 = vrot.slane %v2077, %v3027
        %v3029 = vlaneseq
        %v3030 = vshrl.u32 %v3029, 7
        %v3031 = vsub.s32 5, %v3030
        %v3032 = vrot.slane %v2078, %v3031
        %v3033 = vlaneseq
        %v3034 = vshrl.u32 %v3033, 7
        %v3035 = vsub.s32 5, %v3034
        %v3036 = vrot.slane %v2079, %v3035
        %v3037 = vlaneseq
        %v3038 = vshrl.u32 %v3037, 7
        %v3039 = vsub.s32 5, %v3038
        %v3040 = vrot.slane %v2080, %v3039
        %v3041 = vadd.f32 %v3021, %v3028
        %v3042 = vadd.f32 %v3022, %v3032
        %v3043 = vadd.f32 %v3023, %v3036
        %v3044 = vadd.f32 %v3024, %v3040
        %v3045 = vmul.f32 %v3041, 0.01
        %v3046 = vmul.f32 %v3042, 0.01
        %v3047 = vmul.f32 %v3043, 0.01
        %v3048 = vmul.f32 %v3044, 0.01
        %v3049 = vmax.f32 %v3041, %v3045
        %v3050 = vmax.f32 %v3042, %v3046
        %v3051 = vmax.f32 %v3043, %v3047
        %v3052 = vmax.f32 %v3044, %v3048
        %s3053 = scalar_lea.vmem %s348, 512 [#allocation4]
        %v3054 = vld [vmem:[%s3053] sm:$0xff]
        %v3055 = vld [vmem:[%s3053 + $0x8] sm:$0xff]
        %v3056 = vld [vmem:[%s3053 + $0x10] sm:$0xff]
        %v3057 = vld [vmem:[%s3053 + $0x18] sm:$0xff]
        %v3058 = vld [vmem:[%s3053 + $0x20] sm:$0xff]
        %v3059 = vld [vmem:[%s3053 + $0x28] sm:$0xff]
        %v3060 = vld [vmem:[%s3053 + $0x30] sm:$0xff]
        %v3061 = vld [vmem:[%s3053 + $0x38] sm:$0xff]
        %v3062 = vld [vmem:[%s3053 + $0x40] sm:$0xff]
        %v3063 = vld [vmem:[%s3053 + $0x48] sm:$0xff]
        %v3064 = vld [vmem:[%s3053 + $0x50] sm:$0xff]
        %v3065 = vld [vmem:[%s3053 + $0x58] sm:$0xff]
        %v3066 = vld [vmem:[%s3053 + $0x60] sm:$0xff]
        %v3067 = vld [vmem:[%s3053 + $0x68] sm:$0xff]
        %v3068 = vld [vmem:[%s3053 + $0x70] sm:$0xff]
        %v3069 = vld [vmem:[%s3053 + $0x78] sm:$0xff]
        %v3070 = vld [vmem:[%s3053 + $0x80] sm:$0xff]
        %v3071 = vld [vmem:[%s3053 + $0x88] sm:$0xff]
        %v3072 = vld [vmem:[%s3053 + $0x90] sm:$0xff]
        %v3073 = vld [vmem:[%s3053 + $0x98] sm:$0xff]
        %v3074 = vld [vmem:[%s3053 + $0xa0] sm:$0xff]
        %v3075 = vld [vmem:[%s3053 + $0xa8] sm:$0xff]
        %v3076 = vld [vmem:[%s3053 + $0xb0] sm:$0xff]
        %v3077 = vld [vmem:[%s3053 + $0xb8] sm:$0xff]
        %v3078 = vld [vmem:[%s3053 + $0xc0] sm:$0xff]
        %v3079 = vld [vmem:[%s3053 + $0xc8] sm:$0xff]
        %v3080 = vld [vmem:[%s3053 + $0xd0] sm:$0xff]
        %v3081 = vld [vmem:[%s3053 + $0xd8] sm:$0xff]
        %v3082 = vld [vmem:[%s3053 + $0xe0] sm:$0xff]
        %v3083 = vld [vmem:[%s3053 + $0xe8] sm:$0xff]
        %v3084 = vld [vmem:[%s3053 + $0xf0] sm:$0xff]
        %v3085 = vld [vmem:[%s3053 + $0xf8] sm:$0xff]
        %v3086 = vld [vmem:[%s3053 + $0x100] sm:$0xff]
        %v3087 = vld [vmem:[%s3053 + $0x108] sm:$0xff]
        %v3088 = vld [vmem:[%s3053 + $0x110] sm:$0xff]
        %v3089 = vld [vmem:[%s3053 + $0x118] sm:$0xff]
        %v3090 = vld [vmem:[%s3053 + $0x120] sm:$0xff]
        %v3091 = vld [vmem:[%s3053 + $0x128] sm:$0xff]
        %v3092 = vld [vmem:[%s3053 + $0x130] sm:$0xff]
        %v3093 = vld [vmem:[%s3053 + $0x138] sm:$0xff]
        %v3094 = vld [vmem:[%s3053 + $0x140] sm:$0xff]
        %v3095 = vld [vmem:[%s3053 + $0x148] sm:$0xff]
        %v3096 = vld [vmem:[%s3053 + $0x150] sm:$0xff]
        %v3097 = vld [vmem:[%s3053 + $0x158] sm:$0xff]
        %v3098 = vld [vmem:[%s3053 + $0x160] sm:$0xff]
        %v3099 = vld [vmem:[%s3053 + $0x168] sm:$0xff]
        %v3100 = vld [vmem:[%s3053 + $0x170] sm:$0xff]
        %v3101 = vld [vmem:[%s3053 + $0x178] sm:$0xff]
        %v3102 = vld [vmem:[%s3053 + $0x180] sm:$0xff]
        %v3103 = vld [vmem:[%s3053 + $0x188] sm:$0xff]
        %v3104 = vld [vmem:[%s3053 + $0x190] sm:$0xff]
        %v3105 = vld [vmem:[%s3053 + $0x198] sm:$0xff]
        %v3106 = vld [vmem:[%s3053 + $0x1a0] sm:$0xff]
        %v3107 = vld [vmem:[%s3053 + $0x1a8] sm:$0xff]
        %v3108 = vld [vmem:[%s3053 + $0x1b0] sm:$0xff]
        %v3109 = vld [vmem:[%s3053 + $0x1b8] sm:$0xff]
        %v3110 = vld [vmem:[%s3053 + $0x1c0] sm:$0xff]
        %v3111 = vld [vmem:[%s3053 + $0x1c8] sm:$0xff]
        %v3112 = vld [vmem:[%s3053 + $0x1d0] sm:$0xff]
        %v3113 = vld [vmem:[%s3053 + $0x1d8] sm:$0xff]
        %v3114 = vld [vmem:[%s3053 + $0x1e0] sm:$0xff]
        %v3115 = vld [vmem:[%s3053 + $0x1e8] sm:$0xff]
        %v3116 = vld [vmem:[%s3053 + $0x1f0] sm:$0xff]
        %v3117 = vld [vmem:[%s3053 + $0x1f8] sm:$0xff]
        %v3118 = vunpack.c.l.s8.bf16 %v3054
        %v3119 = vunpack.c.l.s8.bf16 %v3055
        %v3120 = vunpack.c.l.s8.bf16 %v3056
        %v3121 = vunpack.c.l.s8.bf16 %v3057
        %v3122 = vunpack.c.h.s8.bf16 %v3054
        %v3123 = vunpack.c.h.s8.bf16 %v3055
        %v3124 = vunpack.c.h.s8.bf16 %v3056
        %v3125 = vunpack.c.h.s8.bf16 %v3057
        %v3126 = vunpack.c.l.s8.bf16 %v3058
        %v3127 = vunpack.c.l.s8.bf16 %v3059
        %v3128 = vunpack.c.l.s8.bf16 %v3060
        %v3129 = vunpack.c.l.s8.bf16 %v3061
        %v3130 = vunpack.c.h.s8.bf16 %v3058
        %v3131 = vunpack.c.h.s8.bf16 %v3059
        %v3132 = vunpack.c.h.s8.bf16 %v3060
        %v3133 = vunpack.c.h.s8.bf16 %v3061
        %v3134 = vunpack.c.l.s8.bf16 %v3062
        %v3135 = vunpack.c.l.s8.bf16 %v3063
        %v3136 = vunpack.c.l.s8.bf16 %v3064
        %v3137 = vunpack.c.l.s8.bf16 %v3065
        %v3138 = vunpack.c.h.s8.bf16 %v3062
        %v3139 = vunpack.c.h.s8.bf16 %v3063
        %v3140 = vunpack.c.h.s8.bf16 %v3064
        %v3141 = vunpack.c.h.s8.bf16 %v3065
        %v3142 = vunpack.c.l.s8.bf16 %v3066
        %v3143 = vunpack.c.l.s8.bf16 %v3067
        %v3144 = vunpack.c.l.s8.bf16 %v3068
        %v3145 = vunpack.c.l.s8.bf16 %v3069
        %v3146 = vunpack.c.h.s8.bf16 %v3066
        %v3147 = vunpack.c.h.s8.bf16 %v3067
        %v3148 = vunpack.c.h.s8.bf16 %v3068
        %v3149 = vunpack.c.h.s8.bf16 %v3069
        %v3150 = vunpack.c.l.s8.bf16 %v3070
        %v3151 = vunpack.c.l.s8.bf16 %v3071
        %v3152 = vunpack.c.l.s8.bf16 %v3072
        %v3153 = vunpack.c.l.s8.bf16 %v3073
        %v3154 = vunpack.c.h.s8.bf16 %v3070
        %v3155 = vunpack.c.h.s8.bf16 %v3071
        %v3156 = vunpack.c.h.s8.bf16 %v3072
        %v3157 = vunpack.c.h.s8.bf16 %v3073
        %v3158 = vunpack.c.l.s8.bf16 %v3074
        %v3159 = vunpack.c.l.s8.bf16 %v3075
        %v3160 = vunpack.c.l.s8.bf16 %v3076
        %v3161 = vunpack.c.l.s8.bf16 %v3077
        %v3162 = vunpack.c.h.s8.bf16 %v3074
        %v3163 = vunpack.c.h.s8.bf16 %v3075
        %v3164 = vunpack.c.h.s8.bf16 %v3076
        %v3165 = vunpack.c.h.s8.bf16 %v3077
        %v3166 = vunpack.c.l.s8.bf16 %v3078
        %v3167 = vunpack.c.l.s8.bf16 %v3079
        %v3168 = vunpack.c.l.s8.bf16 %v3080
        %v3169 = vunpack.c.l.s8.bf16 %v3081
        %v3170 = vunpack.c.h.s8.bf16 %v3078
        %v3171 = vunpack.c.h.s8.bf16 %v3079
        %v3172 = vunpack.c.h.s8.bf16 %v3080
        %v3173 = vunpack.c.h.s8.bf16 %v3081
        %v3174 = vunpack.c.l.s8.bf16 %v3082
        %v3175 = vunpack.c.l.s8.bf16 %v3083
        %v3176 = vunpack.c.l.s8.bf16 %v3084
        %v3177 = vunpack.c.l.s8.bf16 %v3085
        %v3178 = vunpack.c.h.s8.bf16 %v3082
        %v3179 = vunpack.c.h.s8.bf16 %v3083
        %v3180 = vunpack.c.h.s8.bf16 %v3084
        %v3181 = vunpack.c.h.s8.bf16 %v3085
        %v3182 = vunpack.c.l.s8.bf16 %v3086
        %v3183 = vunpack.c.l.s8.bf16 %v3087
        %v3184 = vunpack.c.l.s8.bf16 %v3088
        %v3185 = vunpack.c.l.s8.bf16 %v3089
        %v3186 = vunpack.c.h.s8.bf16 %v3086
        %v3187 = vunpack.c.h.s8.bf16 %v3087
        %v3188 = vunpack.c.h.s8.bf16 %v3088
        %v3189 = vunpack.c.h.s8.bf16 %v3089
        %v3190 = vunpack.c.l.s8.bf16 %v3090
        %v3191 = vunpack.c.l.s8.bf16 %v3091
        %v3192 = vunpack.c.l.s8.bf16 %v3092
        %v3193 = vunpack.c.l.s8.bf16 %v3093
        %v3194 = vunpack.c.h.s8.bf16 %v3090
        %v3195 = vunpack.c.h.s8.bf16 %v3091
        %v3196 = vunpack.c.h.s8.bf16 %v3092
        %v3197 = vunpack.c.h.s8.bf16 %v3093
        %v3198 = vunpack.c.l.s8.bf16 %v3094
        %v3199 = vunpack.c.l.s8.bf16 %v3095
        %v3200 = vunpack.c.l.s8.bf16 %v3096
        %v3201 = vunpack.c.l.s8.bf16 %v3097
        %v3202 = vunpack.c.h.s8.bf16 %v3094
        %v3203 = vunpack.c.h.s8.bf16 %v3095
        %v3204 = vunpack.c.h.s8.bf16 %v3096
        %v3205 = vunpack.c.h.s8.bf16 %v3097
        %v3206 = vunpack.c.l.s8.bf16 %v3098
        %v3207 = vunpack.c.l.s8.bf16 %v3099
        %v3208 = vunpack.c.l.s8.bf16 %v3100
        %v3209 = vunpack.c.l.s8.bf16 %v3101
        %v3210 = vunpack.c.h.s8.bf16 %v3098
        %v3211 = vunpack.c.h.s8.bf16 %v3099
        %v3212 = vunpack.c.h.s8.bf16 %v3100
        %v3213 = vunpack.c.h.s8.bf16 %v3101
        %v3214 = vunpack.c.l.s8.bf16 %v3102
        %v3215 = vunpack.c.l.s8.bf16 %v3103
        %v3216 = vunpack.c.l.s8.bf16 %v3104
        %v3217 = vunpack.c.l.s8.bf16 %v3105
        %v3218 = vunpack.c.h.s8.bf16 %v3102
        %v3219 = vunpack.c.h.s8.bf16 %v3103
        %v3220 = vunpack.c.h.s8.bf16 %v3104
        %v3221 = vunpack.c.h.s8.bf16 %v3105
        %v3222 = vunpack.c.l.s8.bf16 %v3106
        %v3223 = vunpack.c.l.s8.bf16 %v3107
        %v3224 = vunpack.c.l.s8.bf16 %v3108
        %v3225 = vunpack.c.l.s8.bf16 %v3109
        %v3226 = vunpack.c.h.s8.bf16 %v3106
        %v3227 = vunpack.c.h.s8.bf16 %v3107
        %v3228 = vunpack.c.h.s8.bf16 %v3108
        %v3229 = vunpack.c.h.s8.bf16 %v3109
        %v3230 = vunpack.c.l.s8.bf16 %v3110
        %v3231 = vunpack.c.l.s8.bf16 %v3111
        %v3232 = vunpack.c.l.s8.bf16 %v3112
        %v3233 = vunpack.c.l.s8.bf16 %v3113
        %v3234 = vunpack.c.h.s8.bf16 %v3110
        %v3235 = vunpack.c.h.s8.bf16 %v3111
        %v3236 = vunpack.c.h.s8.bf16 %v3112
        %v3237 = vunpack.c.h.s8.bf16 %v3113
        %v3238 = vunpack.c.l.s8.bf16 %v3114
        %v3239 = vunpack.c.l.s8.bf16 %v3115
        %v3240 = vunpack.c.l.s8.bf16 %v3116
        %v3241 = vunpack.c.l.s8.bf16 %v3117
        %v3242 = vunpack.c.h.s8.bf16 %v3114
        %v3243 = vunpack.c.h.s8.bf16 %v3115
        %v3244 = vunpack.c.h.s8.bf16 %v3116
        %v3245 = vunpack.c.h.s8.bf16 %v3117
        %v3246 = vpack.i.b16 %v2616, %v2616
        %v3248 = vlaneseq
        %v3249 = vshrl.u32 %v3248, 7
        %v3250 = vsub.s32 2, %v3249
        %v3251 = vrot.slane %v3246, %v3250
        %v3252 = vpack.i.b16 %v2617, %v2617
        %v3254 = vlaneseq
        %v3255 = vshrl.u32 %v3254, 7
        %v3256 = vsub.s32 2, %v3255
        %v3257 = vrot.slane %v3252, %v3256
        %v3258 = vpack.i.b16 %v2618, %v2618
        %v3260 = vlaneseq
        %v3261 = vshrl.u32 %v3260, 7
        %v3262 = vsub.s32 2, %v3261
        %v3263 = vrot.slane %v3258, %v3262
        %v3264 = vpack.i.b16 %v2619, %v2619
        %v3266 = vlaneseq
        %v3267 = vshrl.u32 %v3266, 7
        %v3268 = vsub.s32 2, %v3267
        %v3269 = vrot.slane %v3264, %v3268
        %v3270 = vmul.bf16 %v3118, %v3251
        %v3271 = vmul.bf16 %v3119, %v3257
        %v3272 = vmul.bf16 %v3120, %v3263
        %v3273 = vmul.bf16 %v3121, %v3269
        %v3274 = vmul.bf16 %v3122, %v3251
        %v3275 = vmul.bf16 %v3123, %v3257
        %v3276 = vmul.bf16 %v3124, %v3263
        %v3277 = vmul.bf16 %v3125, %v3269
        %v3278 = vmul.bf16 %v3126, %v3251
        %v3279 = vmul.bf16 %v3127, %v3257
        %v3280 = vmul.bf16 %v3128, %v3263
        %v3281 = vmul.bf16 %v3129, %v3269
        %v3282 = vmul.bf16 %v3130, %v3251
        %v3283 = vmul.bf16 %v3131, %v3257
        %v3284 = vmul.bf16 %v3132, %v3263
        %v3285 = vmul.bf16 %v3133, %v3269
        %v3286 = vmul.bf16 %v3134, %v3251
        %v3287 = vmul.bf16 %v3135, %v3257
        %v3288 = vmul.bf16 %v3136, %v3263
        %v3289 = vmul.bf16 %v3137, %v3269
        %v3290 = vmul.bf16 %v3138, %v3251
        %v3291 = vmul.bf16 %v3139, %v3257
        %v3292 = vmul.bf16 %v3140, %v3263
        %v3293 = vmul.bf16 %v3141, %v3269
        %v3294 = vmul.bf16 %v3142, %v3251
        %v3295 = vmul.bf16 %v3143, %v3257
        %v3296 = vmul.bf16 %v3144, %v3263
        %v3297 = vmul.bf16 %v3145, %v3269
        %v3298 = vmul.bf16 %v3146, %v3251
        %v3299 = vmul.bf16 %v3147, %v3257
        %v3300 = vmul.bf16 %v3148, %v3263
        %v3301 = vmul.bf16 %v3149, %v3269
        %v3302 = vmul.bf16 %v3150, %v3251
        %v3303 = vmul.bf16 %v3151, %v3257
        %v3304 = vmul.bf16 %v3152, %v3263
        %v3305 = vmul.bf16 %v3153, %v3269
        %v3306 = vmul.bf16 %v3154, %v3251
        %v3307 = vmul.bf16 %v3155, %v3257
        %v3308 = vmul.bf16 %v3156, %v3263
        %v3309 = vmul.bf16 %v3157, %v3269
        %v3310 = vmul.bf16 %v3158, %v3251
        %v3311 = vmul.bf16 %v3159, %v3257
        %v3312 = vmul.bf16 %v3160, %v3263
        %v3313 = vmul.bf16 %v3161, %v3269
        %v3314 = vmul.bf16 %v3162, %v3251
        %v3315 = vmul.bf16 %v3163, %v3257
        %v3316 = vmul.bf16 %v3164, %v3263
        %v3317 = vmul.bf16 %v3165, %v3269
        %v3318 = vmul.bf16 %v3166, %v3251
        %v3319 = vmul.bf16 %v3167, %v3257
        %v3320 = vmul.bf16 %v3168, %v3263
        %v3321 = vmul.bf16 %v3169, %v3269
        %v3322 = vmul.bf16 %v3170, %v3251
        %v3323 = vmul.bf16 %v3171, %v3257
        %v3324 = vmul.bf16 %v3172, %v3263
        %v3325 = vmul.bf16 %v3173, %v3269
        %v3326 = vmul.bf16 %v3174, %v3251
        %v3327 = vmul.bf16 %v3175, %v3257
        %v3328 = vmul.bf16 %v3176, %v3263
        %v3329 = vmul.bf16 %v3177, %v3269
        %v3330 = vmul.bf16 %v3178, %v3251
        %v3331 = vmul.bf16 %v3179, %v3257
        %v3332 = vmul.bf16 %v3180, %v3263
        %v3333 = vmul.bf16 %v3181, %v3269
        %v3334 = vmul.bf16 %v3182, %v3251
        %v3335 = vmul.bf16 %v3183, %v3257
        %v3336 = vmul.bf16 %v3184, %v3263
        %v3337 = vmul.bf16 %v3185, %v3269
        %v3338 = vmul.bf16 %v3186, %v3251
        %v3339 = vmul.bf16 %v3187, %v3257
        %v3340 = vmul.bf16 %v3188, %v3263
        %v3341 = vmul.bf16 %v3189, %v3269
        %v3342 = vmul.bf16 %v3190, %v3251
        %v3343 = vmul.bf16 %v3191, %v3257
        %v3344 = vmul.bf16 %v3192, %v3263
        %v3345 = vmul.bf16 %v3193, %v3269
        %v3346 = vmul.bf16 %v3194, %v3251
        %v3347 = vmul.bf16 %v3195, %v3257
        %v3348 = vmul.bf16 %v3196, %v3263
        %v3349 = vmul.bf16 %v3197, %v3269
        %v3350 = vmul.bf16 %v3198, %v3251
        %v3351 = vmul.bf16 %v3199, %v3257
        %v3352 = vmul.bf16 %v3200, %v3263
        %v3353 = vmul.bf16 %v3201, %v3269
        %v3354 = vmul.bf16 %v3202, %v3251
        %v3355 = vmul.bf16 %v3203, %v3257
        %v3356 = vmul.bf16 %v3204, %v3263
        %v3357 = vmul.bf16 %v3205, %v3269
        %v3358 = vmul.bf16 %v3206, %v3251
        %v3359 = vmul.bf16 %v3207, %v3257
        %v3360 = vmul.bf16 %v3208, %v3263
        %v3361 = vmul.bf16 %v3209, %v3269
        %v3362 = vmul.bf16 %v3210, %v3251
        %v3363 = vmul.bf16 %v3211, %v3257
        %v3364 = vmul.bf16 %v3212, %v3263
        %v3365 = vmul.bf16 %v3213, %v3269
        %v3366 = vmul.bf16 %v3214, %v3251
        %v3367 = vmul.bf16 %v3215, %v3257
        %v3368 = vmul.bf16 %v3216, %v3263
        %v3369 = vmul.bf16 %v3217, %v3269
        %v3370 = vmul.bf16 %v3218, %v3251
        %v3371 = vmul.bf16 %v3219, %v3257
        %v3372 = vmul.bf16 %v3220, %v3263
        %v3373 = vmul.bf16 %v3221, %v3269
        %v3374 = vmul.bf16 %v3222, %v3251
        %v3375 = vmul.bf16 %v3223, %v3257
        %v3376 = vmul.bf16 %v3224, %v3263
        %v3377 = vmul.bf16 %v3225, %v3269
        %v3378 = vmul.bf16 %v3226, %v3251
        %v3379 = vmul.bf16 %v3227, %v3257
        %v3380 = vmul.bf16 %v3228, %v3263
        %v3381 = vmul.bf16 %v3229, %v3269
        %v3382 = vmul.bf16 %v3230, %v3251
        %v3383 = vmul.bf16 %v3231, %v3257
        %v3384 = vmul.bf16 %v3232, %v3263
        %v3385 = vmul.bf16 %v3233, %v3269
        %v3386 = vmul.bf16 %v3234, %v3251
        %v3387 = vmul.bf16 %v3235, %v3257
        %v3388 = vmul.bf16 %v3236, %v3263
        %v3389 = vmul.bf16 %v3237, %v3269
        %v3390 = vmul.bf16 %v3238, %v3251
        %v3391 = vmul.bf16 %v3239, %v3257
        %v3392 = vmul.bf16 %v3240, %v3263
        %v3393 = vmul.bf16 %v3241, %v3269
        %v3394 = vmul.bf16 %v3242, %v3251
        %v3395 = vmul.bf16 %v3243, %v3257
        %v3396 = vmul.bf16 %v3244, %v3263
        %v3397 = vmul.bf16 %v3245, %v3269
        %v3398 = vpack.c.bf16 %v3049, %v3049
        %v3399 = vpack.c.bf16 %v3050, %v3050
        %v3400 = vpack.c.bf16 %v3051, %v3051
        %v3401 = vpack.c.bf16 %v3052, %v3052
        %v3402 = vlaneseq
        %v3403 = vshrl.u32 %v3402, 7
        %v3404 = vsub.s32 6, %v3403
        %v3405 = vrot.slane %v2077, %v3404
        %v3406 = vlaneseq
        %v3407 = vshrl.u32 %v3406, 7
        %v3408 = vsub.s32 6, %v3407
        %v3409 = vrot.slane %v2078, %v3408
        %v3410 = vlaneseq
        %v3411 = vshrl.u32 %v3410, 7
        %v3412 = vsub.s32 6, %v3411
        %v3413 = vrot.slane %v2079, %v3412
        %v3414 = vlaneseq
        %v3415 = vshrl.u32 %v3414, 7
        %v3416 = vsub.s32 6, %v3415
        %v3417 = vrot.slane %v2080, %v3416
        %3418 = vmatprep.subr.bf16.mxu0 %v3271
        %3419 = vmatpush1.bf16.msra.mxu0 %v3270
        %3420 = vmatprep.subr.bf16.mxu0 %v3275
        %3421 = vmatpush1.bf16.msra.mxu0 %v3274
        %3422 = vmatprep.subr.bf16.mxu0 %v3279
        %3423 = vmatpush1.bf16.msra.mxu0 %v3278
        %3424 = vmatprep.subr.bf16.mxu0 %v3283
        %3425 = vmatpush1.bf16.msra.mxu0 %v3282
        %3426 = vmatprep.subr.bf16.mxu0 %v3287
        %3427 = vmatpush1.bf16.msra.mxu0 %v3286
        %3428 = vmatprep.subr.bf16.mxu0 %v3291
        %3429 = vmatpush1.bf16.msra.mxu0 %v3290
        %3430 = vmatprep.subr.bf16.mxu0 %v3295
        %3431 = vmatpush1.bf16.msra.mxu0 %v3294
        %3432 = vmatprep.subr.bf16.mxu0 %v3299
        %3433 = vmatpush1.bf16.msra.mxu0 %v3298
        %3434 = vmatprep.subr.bf16.mxu0 %v3303
        %3435 = vmatpush1.bf16.msra.mxu0 %v3302
        %3436 = vmatprep.subr.bf16.mxu0 %v3307
        %3437 = vmatpush1.bf16.msra.mxu0 %v3306
        %3438 = vmatprep.subr.bf16.mxu0 %v3311
        %3439 = vmatpush1.bf16.msra.mxu0 %v3310
        %3440 = vmatprep.subr.bf16.mxu0 %v3315
        %3441 = vmatpush1.bf16.msra.mxu0 %v3314
        %3442 = vmatprep.subr.bf16.mxu0 %v3319
        %3443 = vmatpush1.bf16.msra.mxu0 %v3318
        %3444 = vmatprep.subr.bf16.mxu0 %v3323
        %3445 = vmatpush1.bf16.msra.mxu0 %v3322
        %3446 = vmatprep.subr.bf16.mxu0 %v3327
        %3447 = vmatpush1.bf16.msra.mxu0 %v3326
        %3448 = vmatprep.subr.bf16.mxu0 %v3331
        %3449 = vmatpush1.bf16.msra.mxu0 %v3330
        %3450 = vmatprep.mubr.bf16.mxu0 %v3399
        %3451 = vmatmul.mubr.bf16.gmra.mrb[0].mxu0 %v3398
        %v3452 = vpop.f32.mrb[0].mxu0
        %v3453 = vadd.f32 %v3405, %v3452
        %v3454 = vpop.f32.mrb[0].mxu0
        %v3455 = vadd.f32 %v3409, %v3454
        %v3456 = vpop.f32.mrb[0].mxu0
        %v3457 = vpop.f32.mrb[0].mxu0
        %3458 = vdwg.mxu0
        %3459 = vmatprep.subr.bf16.mxu0 %v3335
        %3460 = vmatpush1.bf16.msra.mxu0 %v3334
        %3461 = vmatprep.subr.bf16.mxu0 %v3339
        %3462 = vmatpush1.bf16.msra.mxu0 %v3338
        %3463 = vmatprep.subr.bf16.mxu0 %v3343
        %3464 = vmatpush1.bf16.msra.mxu0 %v3342
        %3465 = vmatprep.subr.bf16.mxu0 %v3347
        %3466 = vmatpush1.bf16.msra.mxu0 %v3346
        %3467 = vmatprep.subr.bf16.mxu0 %v3351
        %3468 = vmatpush1.bf16.msra.mxu0 %v3350
        %3469 = vmatprep.subr.bf16.mxu0 %v3355
        %3470 = vmatpush1.bf16.msra.mxu0 %v3354
        %3471 = vmatprep.subr.bf16.mxu0 %v3359
        %3472 = vmatpush1.bf16.msra.mxu0 %v3358
        %3473 = vmatprep.subr.bf16.mxu0 %v3363
        %3474 = vmatpush1.bf16.msra.mxu0 %v3362
        %3475 = vmatprep.subr.bf16.mxu0 %v3367
        %3476 = vmatpush1.bf16.msra.mxu0 %v3366
        %3477 = vmatprep.subr.bf16.mxu0 %v3371
        %3478 = vmatpush1.bf16.msra.mxu0 %v3370
        %3479 = vmatprep.subr.bf16.mxu0 %v3375
        %3480 = vmatpush1.bf16.msra.mxu0 %v3374
        %3481 = vmatprep.subr.bf16.mxu0 %v3379
        %3482 = vmatpush1.bf16.msra.mxu0 %v3378
        %3483 = vmatprep.subr.bf16.mxu0 %v3383
        %3484 = vmatpush1.bf16.msra.mxu0 %v3382
        %3485 = vmatprep.subr.bf16.mxu0 %v3387
        %3486 = vmatpush1.bf16.msra.mxu0 %v3386
        %3487 = vmatprep.subr.bf16.mxu0 %v3391
        %3488 = vmatpush1.bf16.msra.mxu0 %v3390
        %3489 = vmatprep.subr.bf16.mxu0 %v3395
        %3490 = vmatpush1.bf16.msra.mxu0 %v3394
        %3491 = vmatprep.mubr.bf16.mxu0 %v3401
        %3492 = vmatmul.mubr.bf16.gmra.mrb[0].mxu0 %v3400
        %v3493 = vpop.f32.mrb[0].mxu0
        %v3494 = vadd.f32 %v3453, %v3493
        %v3495 = vpop.f32.mrb[0].mxu0
        %v3496 = vadd.f32 %v3455, %v3495
        %v3497 = vpop.f32.mrb[0].mxu0
        %v3498 = vpop.f32.mrb[0].mxu0
        %3499 = vdwg.mxu0
        %3500 = vmatprep.subr.bf16.mxu0 %v3273
        %3501 = vmatpush1.bf16.msra.mxu0 %v3272
        %3502 = vmatprep.subr.bf16.mxu0 %v3277
        %3503 = vmatpush1.bf16.msra.mxu0 %v3276
        %3504 = vmatprep.subr.bf16.mxu0 %v3281
        %3505 = vmatpush1.bf16.msra.mxu0 %v3280
        %3506 = vmatprep.subr.bf16.mxu0 %v3285
        %3507 = vmatpush1.bf16.msra.mxu0 %v3284
        %3508 = vmatprep.subr.bf16.mxu0 %v3289
        %3509 = vmatpush1.bf16.msra.mxu0 %v3288
        %3510 = vmatprep.subr.bf16.mxu0 %v3293
        %3511 = vmatpush1.bf16.msra.mxu0 %v3292
        %3512 = vmatprep.subr.bf16.mxu0 %v3297
        %3513 = vmatpush1.bf16.msra.mxu0 %v3296
        %3514 = vmatprep.subr.bf16.mxu0 %v3301
        %3515 = vmatpush1.bf16.msra.mxu0 %v3300
        %3516 = vmatprep.subr.bf16.mxu0 %v3305
        %3517 = vmatpush1.bf16.msra.mxu0 %v3304
        %3518 = vmatprep.subr.bf16.mxu0 %v3309
        %3519 = vmatpush1.bf16.msra.mxu0 %v3308
        %3520 = vmatprep.subr.bf16.mxu0 %v3313
        %3521 = vmatpush1.bf16.msra.mxu0 %v3312
        %3522 = vmatprep.subr.bf16.mxu0 %v3317
        %3523 = vmatpush1.bf16.msra.mxu0 %v3316
        %3524 = vmatprep.subr.bf16.mxu0 %v3321
        %3525 = vmatpush1.bf16.msra.mxu0 %v3320
        %3526 = vmatprep.subr.bf16.mxu0 %v3325
        %3527 = vmatpush1.bf16.msra.mxu0 %v3324
        %3528 = vmatprep.subr.bf16.mxu0 %v3329
        %3529 = vmatpush1.bf16.msra.mxu0 %v3328
        %3530 = vmatprep.subr.bf16.mxu0 %v3333
        %3531 = vmatpush1.bf16.msra.mxu0 %v3332
        %3532 = vmatprep.mubr.bf16.mxu0 %v3399
        %3533 = vmatmul.mubr.bf16.gmra.mrb[0].mxu0 %v3398
        %v3534 = vpop.f32.mrb[0].mxu0
        %v3535 = vadd.f32 %v3413, %v3534
        %v3536 = vpop.f32.mrb[0].mxu0
        %v3537 = vadd.f32 %v3417, %v3536
        %v3538 = vpop.f32.mrb[0].mxu0
        %v3539 = vpop.f32.mrb[0].mxu0
        %3540 = vdwg.mxu0
        %3541 = vmatprep.subr.bf16.mxu0 %v3337
        %3542 = vmatpush1.bf16.msra.mxu0 %v3336
        %3543 = vmatprep.subr.bf16.mxu0 %v3341
        %3544 = vmatpush1.bf16.msra.mxu0 %v3340
        %3545 = vmatprep.subr.bf16.mxu0 %v3345
        %3546 = vmatpush1.bf16.msra.mxu0 %v3344
        %3547 = vmatprep.subr.bf16.mxu0 %v3349
        %3548 = vmatpush1.bf16.msra.mxu0 %v3348
        %3549 = vmatprep.subr.bf16.mxu0 %v3353
        %3550 = vmatpush1.bf16.msra.mxu0 %v3352
        %3551 = vmatprep.subr.bf16.mxu0 %v3357
        %3552 = vmatpush1.bf16.msra.mxu0 %v3356
        %3553 = vmatprep.subr.bf16.mxu0 %v3361
        %3554 = vmatpush1.bf16.msra.mxu0 %v3360
        %3555 = vmatprep.subr.bf16.mxu0 %v3365
        %3556 = vmatpush1.bf16.msra.mxu0 %v3364
        %3557 = vmatprep.subr.bf16.mxu0 %v3369
        %3558 = vmatpush1.bf16.msra.mxu0 %v3368
        %3559 = vmatprep.subr.bf16.mxu0 %v3373
        %3560 = vmatpush1.bf16.msra.mxu0 %v3372
        %3561 = vmatprep.subr.bf16.mxu0 %v3377
        %3562 = vmatpush1.bf16.msra.mxu0 %v3376
        %3563 = vmatprep.subr.bf16.mxu0 %v3381
        %3564 = vmatpush1.bf16.msra.mxu0 %v3380
        %3565 = vmatprep.subr.bf16.mxu0 %v3385
        %3566 = vmatpush1.bf16.msra.mxu0 %v3384
        %3567 = vmatprep.subr.bf16.mxu0 %v3389
        %3568 = vmatpush1.bf16.msra.mxu0 %v3388
        %3569 = vmatprep.subr.bf16.mxu0 %v3393
        %3570 = vmatpush1.bf16.msra.mxu0 %v3392
        %3571 = vmatprep.subr.bf16.mxu0 %v3397
        %3572 = vmatpush1.bf16.msra.mxu0 %v3396
        %3573 = vmatprep.mubr.bf16.mxu0 %v3401
        %3574 = vmatmul.mubr.bf16.gmra.mrb[0].mxu0 %v3400
        %v3575 = vpop.f32.mrb[0].mxu0
        %v3576 = vadd.f32 %v3535, %v3575
        %v3577 = vpop.f32.mrb[0].mxu0
        %v3578 = vadd.f32 %v3537, %v3577
        %v3579 = vpop.f32.mrb[0].mxu0
        %v3580 = vpop.f32.mrb[0].mxu0
        %3581 = vdwg.mxu0
        %v3582 = vsel %vm473, %v3494, 0.0
        %v3583 = vsel %vm473, %v3496, 0.0
        %v3584 = vadd.f32 %v3582, %v3583
        %v3585 = vsel %vm473, %v3576, 0.0
        %v3586 = vadd.f32 %v3584, %v3585
        %v3587 = vsel %vm473, %v3578, 0.0
        %v3588 = vadd.f32 %v3586, %v3587
        %3589 = vadd.xlane.f32.xlu0 %v3588
        %v3590 = vpop.xlane.xlu0 %3589
        %v3591 = vmul.f32 %v3590, %v712
        %v3592 = vsub.f32 %v3494, %v3591
        %v3593 = vsub.f32 %v3496, %v3591
        %v3594 = vsub.f32 %v3576, %v3591
        %v3595 = vsub.f32 %v3578, %v3591
        %v3596 = vmul.f32 %v3592, %v3592
        %v3597 = vmul.f32 %v3593, %v3593
        %v3598 = vmul.f32 %v3594, %v3594
        %v3599 = vmul.f32 %v3595, %v3595
        %v3600 = vsel %vm473, %v3596, 0.0
        %v3601 = vsel %vm473, %v3597, 0.0
        %v3602 = vadd.f32 %v3600, %v3601
        %v3603 = vsel %vm473, %v3598, 0.0
        %v3604 = vadd.f32 %v3602, %v3603
        %v3605 = vsel %vm473, %v3599, 0.0
        %v3606 = vadd.f32 %v3604, %v3605
        %3607 = vadd.xlane.f32.xlu0 %v3606
        %v3608 = vpop.xlane.xlu0 %3607
        %v3609 = vmul.f32 %v3608, %v731
        %v3610 = vrsqrt.pop %v3609
        %v3611 = vmul.f32 %v3609, %v3610
        %vm3612 = vcmp.eq.f32.partialorder %v3609, inf
        %v3613 = vsel %vm3612, %v3609, %v3611
        %vm3614 = vcmp.eq.f32.partialorder %v3609, 0.0
        %v3615 = vand.u32 %v3609, 2147483648
        %v3616 = vsel %vm3614, %v3615, %v3613
        %v3617 = vadd.f32 %v3616, 1e-06
        %v3618 = vrcp.pop %v3617
        %v3619 = vmul.f32 %v3592, %v3618
        %v3620 = vmul.f32 %v3593, %v3618
        %v3621 = vmul.f32 %v3594, %v3618
        %v3622 = vmul.f32 %v3595, %v3618
        %v3623 = vlaneseq
        %v3624 = vshrl.u32 %v3623, 7
        %v3625 = vsub.s32 7, %v3624
        %v3626 = vrot.slane %v2077, %v3625
        %v3627 = vlaneseq
        %v3628 = vshrl.u32 %v3627, 7
        %v3629 = vsub.s32 7, %v3628
        %v3630 = vrot.slane %v2078, %v3629
        %v3631 = vlaneseq
        %v3632 = vshrl.u32 %v3631, 7
        %v3633 = vsub.s32 7, %v3632
        %v3634 = vrot.slane %v2079, %v3633
        %v3635 = vlaneseq
        %v3636 = vshrl.u32 %v3635, 7
        %v3637 = vsub.s32 7, %v3636
        %v3638 = vrot.slane %v2080, %v3637
        %v3639 = vmul.f32 %v3626, %v3619
        %v3640 = vmul.f32 %v3630, %v3620
        %v3641 = vmul.f32 %v3634, %v3621
        %v3642 = vmul.f32 %v3638, %v3622
        %v3643 = vlaneseq
        %v3644 = vshrl.u32 %v3643, 7
        %v3645 = vsub.s32 0, %v3644
        %v3646 = vrot.slane %v2081, %v3645
        %v3647 = vlaneseq
        %v3648 = vshrl.u32 %v3647, 7
        %v3649 = vsub.s32 0, %v3648
        %v3650 = vrot.slane %v2082, %v3649
        %v3651 = vlaneseq
        %v3652 = vshrl.u32 %v3651, 7
        %v3653 = vsub.s32 0, %v3652
        %v3654 = vrot.slane %v2083, %v3653
        %v3655 = vlaneseq
        %v3656 = vshrl.u32 %v3655, 7
        %v3657 = vsub.s32 0, %v3656
        %v3658 = vrot.slane %v2084, %v3657
        %v3659 = vadd.f32 %v3639, %v3646
        %v3660 = vadd.f32 %v3640, %v3650
        %v3661 = vadd.f32 %v3641, %v3654
        %v3662 = vadd.f32 %v3642, %v3658
        %v3663 = vmul.f32 %v3659, 0.01
        %v3664 = vmul.f32 %v3660, 0.01
        %v3665 = vmul.f32 %v3661, 0.01
        %v3666 = vmul.f32 %v3662, 0.01
        %v3667 = vmax.f32 %v3659, %v3663
        %v3668 = vmax.f32 %v3660, %v3664
        %v3669 = vmax.f32 %v3661, %v3665
        %v3670 = vmax.f32 %v3662, %v3666
        %v3671 = vlaneseq
        %v3672 = vshrl.u32 %v3671, 7
        %v3673 = vsub.s32 1, %v3672
        %v3674 = vrot.slane %v2081, %v3673
        %v3675 = vlaneseq
        %v3676 = vshrl.u32 %v3675, 7
        %v3677 = vsub.s32 1, %v3676
        %v3678 = vrot.slane %v2082, %v3677
        %v3679 = vlaneseq
        %v3680 = vshrl.u32 %v3679, 7
        %v3681 = vsub.s32 1, %v3680
        %v3682 = vrot.slane %v2083, %v3681
        %v3683 = vlaneseq
        %v3684 = vshrl.u32 %v3683, 7
        %v3685 = vsub.s32 1, %v3684
        %v3686 = vrot.slane %v2084, %v3685
        %v3687 = vmul.f32 %v3667, %v3674
        %v3688 = vmul.f32 %v3668, %v3678
        %v3689 = vmul.f32 %v3669, %v3682
        %v3690 = vmul.f32 %v3670, %v3686
        %v3691 = vsel %vm473, %v3687, 0.0
        %v3692 = vsel %vm473, %v3688, 0.0
        %v3693 = vadd.f32 %v3691, %v3692
        %v3694 = vsel %vm473, %v3689, 0.0
        %v3695 = vadd.f32 %v3693, %v3694
        %v3696 = vsel %vm473, %v3690, 0.0
        %v3697 = vadd.f32 %v3695, %v3696
        %3698 = vadd.xlane.f32.xlu0 %v3697
        %v3699 = vpop.xlane.xlu0 %3698
        %v3700 = vlaneseq
        %v3701 = vshrl.u32 %v3700, 7
        %v3702 = vsub.s32 2, %v3701
        %v3703 = vrot.slane %v2081, %v3702
        %v3704 = vadd.f32 %v3699, %v3703
        %s3705 = scalar_lea.vmem %s431, 2
        %3706 = vst.msk [vmem:[%s3705] sm:$0x3] %vm2074, %v3704
        %s3707 = smul.u32 2, %s24
        %p3708 = scmp.lt.s32.totalorder %s3707, 3
        %s3709 = scalar_select %p3708, %s3707, 3
        %s3710 = smul.addr %s3709, 2
        %s3711 = scalar_lea.vmem %s7, %s3710
        // Predicated region
        $region61: #{critic_forward.1} parent=47 // pred_check
          %p3712 = pneg %p214
        $region62: #{critic_forward.1} parent=47 // pred_check_branch
          %3714 = sbr.rel (%p3712) target = $region64
        $region63: #{critic_forward.1} parent=47 // pred_region
          %s3715 = smul.u32 2, %s24
        $region64: #{critic_forward.1} parent=47 // pred_fallthru
          _
      $region48: #{critic_forward.1} parent=5 // pred_fallthru
        _
      %p3716 = scmp.le.s32.totalorder 2, %s19
      // Predicated region
      $region65: #{critic_forward.1} parent=5 // pred_check
        %p3717 = pneg %p3716
      $region66: #{critic_forward.1} parent=5 // pred_check_branch
        %3719 = sbr.rel (%p3717) target = $region68
      $region67: #{critic_forward.1} parent=5 // pred_region
        %s3720 = ssub.s32 %s19, 2
        // Predicated region
        $region69: #{critic_forward.1} parent=67 // pred_check
          %p3721 = pneg %p220
        $region70: #{critic_forward.1} parent=67 // pred_check_branch
          %3723 = sbr.rel (%p3721) target = $region72
        $region71: #{critic_forward.1} parent=67 // pred_region
          %s3724 = smul.u32 2, %s25
          %p3725 = scmp.lt.s32.totalorder %s3724, 3
          %s3726 = scalar_select %p3725, %s3724, 3
          %s3727 = smul.addr %s3726, 2
          %s3728 = scalar_lea.vmem %s7, %s3727
        $region72: #{critic_forward.1} parent=67 // pred_fallthru
          _
      $region68: #{critic_forward.1} parent=5 // pred_fallthru
        _
    $region6: #{critic_forward.1} parent=1 // loop_footer
      %s23 = sadd.s32 1, %s19
    $region7: #{critic_forward.1} parent=1 // loop_footer_branch
      %18 = sbr.rel target = $region3
    $region8: #{critic_forward.1} parent=1 // loop_exit
      _
    %3729 = vsyncpa [#allocation3], 1
    %s3730 = scalar_lea.sflag [#allocation3], 1
    %3731 = vsyncpa %s3730, 1
    %3732 = vsyncpa [#allocation5], 1
    %s3733 = scalar_lea.sflag [#allocation5], 1
    %3734 = vsyncpa %s3733, 1

</llo_original>
